<compile_context>
chip_gen: v7x
topology: tpu7x:2x2x1
jax: 0.10.0
libtpu: 0.0.40
codegen_flags: <defaults>
</compile_context>

<pallas_src>
import functools

import jax
import jax.numpy as jnp
from jax.experimental import pallas as pl
from jax.experimental.pallas import tpu as pltpu


_TEMPERATURE = 2.0   # KD softmax temperature
_ALPHA = 0.5         # weight on hard-label CE loss
_BETA = 0.1          # weight on feature-distillation loss


# ---------------------------------------------------------------------------
# Fused kernel: per token tile, run both MLPs and accumulate CE/KD lane sums.
# ---------------------------------------------------------------------------
def _fused_kd_kernel(x_ref, w1t_ref, w2t_ref, w1s_ref, w2s_ref, labels_ref,
                     ce_ref, kd_ref, *, vocab, temperature):
    """One grid step = one token tile of one parallel shard.

    x_ref      : (TN, H)    bf16  token activations
    w1t_ref    : (H, Ft)    bf16  teacher fc1   (grid-resident)
    w2t_ref    : (Ft, V)    bf16  teacher fc2   (grid-resident)
    w1s_ref    : (H, Fs)    bf16  student fc1   (grid-resident)
    w2s_ref    : (Fs, V)    bf16  student fc2   (grid-resident)
    labels_ref : (TN, 1)    int32 hard labels (<0 == ignore_index)
    ce_ref     : (1, 1, V)  f32   per-shard CE per-lane partial sums (accumulator)
    kd_ref     : (1, 1, V)  f32   per-shard KD per-lane partial sums (accumulator)
    """
    i = pl.program_id(1)   # token-tile (reduction) axis

    @pl.when(i == 0)
    def _():
        ce_ref[...] = jnp.zeros_like(ce_ref)
        kd_ref[...] = jnp.zeros_like(kd_ref)

    x = x_ref[...]

    # Teacher / student MLPs share the x tile; separate dots avoid the
    # zero-padded block-diagonal W2 (half the layer-2 MACs, half the W2 bytes).
    h_t = jnp.maximum(
        jnp.dot(x, w1t_ref[...], preferred_element_type=jnp.float32), 0.0)
    t = jnp.dot(h_t.astype(jnp.bfloat16), w2t_ref[...],
                preferred_element_type=jnp.float32)                 # (TN, V) f32
    h_s = jnp.maximum(
        jnp.dot(x, w1s_ref[...], preferred_element_type=jnp.float32), 0.0)
    s = jnp.dot(h_s.astype(jnp.bfloat16), w2s_ref[...],
                preferred_element_type=jnp.float32)                 # (TN, V) f32

    tn = s.shape[0]
    labels = labels_ref[...]                       # (TN, 1) int32
    inv_t = jnp.float32(1.0 / temperature)

    # ---- student softmax: ONE EUP exp pass (at temperature T); since T == 2,
    #      exp(s_shift) is recovered with a VPU square. ----
    s_max = jnp.max(s, axis=-1, keepdims=True)
    s_shift = s - s_max
    st_shift = s_shift * inv_t
    exp_half = jnp.exp(st_shift)                   # exp(s_shift / T)
    if temperature == 2.0:
        exp_full = exp_half * exp_half             # == exp(s_shift)
    else:  # static fallback for a different temperature
        exp_full = jnp.exp(s_shift)
    s_lse = jnp.log(jnp.sum(exp_full, axis=-1, keepdims=True))
    st_lse = jnp.log(jnp.sum(exp_half, axis=-1, keepdims=True))

    # ---- hard-label CE, lane-partial sums. labels < 0 give an all-zero
    #      one-hot row, so ignore_index tokens contribute nothing; the valid
    #      token count is applied in the wrapper. ----
    s_logp = s_shift - s_lse                                        # (TN, V)
    col = jax.lax.broadcasted_iota(jnp.int32, (tn, vocab), 1)
    onehot = (col == labels).astype(jnp.float32)
    ce_lane = jnp.sum(onehot * (-s_logp), axis=0, keepdims=True)    # (1, V)

    # ---- KD: T^2 * KL(softmax(t/T) || softmax(s/T)) without materializing
    #      both log-prob tensors:
    #      p_t*(log p_t - log p_s) = p_t*((tt - st) + (st_lse - log tt_sum)). ----
    t_max = jnp.max(t, axis=-1, keepdims=True)
    tt_shift = (t - t_max) * inv_t
    exp_tt = jnp.exp(tt_shift)
    tt_sum = jnp.sum(exp_tt, axis=-1, keepdims=True)
    t_prob = exp_tt / tt_sum                 # exact division (no approx bias)
    diff = (tt_shift - st_shift) + (st_lse - jnp.log(tt_sum))
    kd_lane = jnp.sum(t_prob * diff, axis=0, keepdims=True)         # (1, V)

    ce_ref[...] += ce_lane.reshape(1, 1, vocab)
    kd_ref[...] += kd_lane.reshape(1, 1, vocab)


# ---------------------------------------------------------------------------
# Wrapper helpers
# ---------------------------------------------------------------------------
def _vmem_budget_bytes():
    """Per-generation VMEM budget (75% of capacity; 128 MiB fallback)."""
    cap = None
    try:
        cap = getattr(pltpu.get_tpu_info(), "vmem_capacity_bytes", None)
    except Exception:
        cap = None
    if not cap:
        cap = 128 * 1024 * 1024
    return int(cap) * 3 // 4


def _auto_token_tile(n, vocab, vmem_budget):
    """Largest clean-dividing token tile whose live (TN,V) f32 temps fit."""
    per_row = 8 * vocab * 4            # ~8 live f32 (TN, V) temporaries
    cap = max(8, min(1024, (vmem_budget // 2) // max(per_row, 1)))
    tn = min(n, int(cap))
    tn -= tn % 8
    tn = max(tn, 8)
    while tn > 8 and n % tn:
        tn -= 8
    if n % tn:
        tn = n
    return tn


# ---------------------------------------------------------------------------
# KnowledgeDistillation.forward equivalent (loss computation path).
# ---------------------------------------------------------------------------
def knowledge_distillation_forward(batch, teacher_params, student_params,
                                   feature_layers, *, token_tile=None):
    x = batch["input"]            # (B, S, H)
    labels = batch["labels"]      # (B, S)
    b, s_len, h = x.shape
    n = b * s_len
    assert n % 8 == 0, "token count must be a multiple of 8"

    f_t = teacher_params["fc1.weight"].shape[1]
    f_s = student_params["fc1.weight"].shape[1]
    v = student_params["fc2.weight"].shape[1]
    assert teacher_params["fc2.weight"].shape[1] == v, "vocab mismatch"

    vmem_budget = _vmem_budget_bytes()
    tn = token_tile if token_tile is not None else _auto_token_tile(n, v, vmem_budget)
    assert n % tn == 0 and tn % 8 == 0, "token count must tile cleanly"

    steps_total = n // tn
    # Leading "parallel" grid axis so v7x's two TensorCores each take half the
    # token tiles (on 1-TC chips this is just an outer loop). Each shard has
    # its own output row; rows are summed in the wrapper.
    num_shards = 2 if (steps_total >= 2 and steps_total % 2 == 0) else 1
    steps = steps_total // num_shards

    # bf16 MXU operands; f32 accumulation + f32 softmax math in-kernel.
    # (In a training loop, jit this wrapper so the casts fuse with producers.)
    x2d = x.reshape(n, h).astype(jnp.bfloat16)
    labels2d = labels.reshape(n, 1).astype(jnp.int32)
    w1_t = teacher_params["fc1.weight"].astype(jnp.bfloat16)
    w2_t = teacher_params["fc2.weight"].astype(jnp.bfloat16)
    w1_s = student_params["fc1.weight"].astype(jnp.bfloat16)
    w2_s = student_params["fc2.weight"].astype(jnp.bfloat16)

    # Feature-distillation term is token-independent -> plain XLA here, so no
    # feature weights sit resident in VMEM and the first tile starts sooner.
    # (Summed over ALL listed feature layers.)
    fd = jnp.float32(0.0)
    for name in feature_layers:
        d = (teacher_params[name].astype(jnp.float32)
             - student_params[name].astype(jnp.float32))
        fd = fd + jnp.mean(d * d)

    kernel = functools.partial(_fused_kd_kernel, vocab=v,
                               temperature=_TEMPERATURE)

    flops = 2 * n * h * (f_t + f_s) + 2 * n * v * (f_t + f_s)
    transcendentals = 2 * n * v            # one student + one teacher exp pass
    bytes_accessed = (x2d.size * 2 + labels2d.size * 4
                      + (w1_t.size + w2_t.size + w1_s.size + w2_s.size) * 2
                      + 2 * num_shards * v * 4)

    def _run(weight_mode):
        def wspec(shape):
            if weight_mode is None:
                return pl.BlockSpec(shape, lambda p, i: (0, 0))
            return pl.BlockSpec(shape, lambda p, i: (0, 0),
                                pipeline_mode=weight_mode)

        grid_spec = pltpu.PrefetchScalarGridSpec(
            num_scalar_prefetch=0,
            grid=(num_shards, steps),
            in_specs=[
                pl.BlockSpec((tn, h), lambda p, i: (p * steps + i, 0)),  # x tile
                wspec((h, f_t)),                                         # W1 teacher
                wspec((f_t, v)),                                         # W2 teacher
                wspec((h, f_s)),                                         # W1 student
                wspec((f_s, v)),                                         # W2 student
                pl.BlockSpec((tn, 1), lambda p, i: (p * steps + i, 0)),  # labels
            ],
            out_specs=[
                pl.BlockSpec((1, 1, v), lambda p, i: (p, 0, 0)),         # CE acc
                pl.BlockSpec((1, 1, v), lambda p, i: (p, 0, 0)),         # KD acc
            ],
        )
        return pl.pallas_call(
            kernel,
            out_shape=(jax.ShapeDtypeStruct((num_shards, 1, v), jnp.float32),
                       jax.ShapeDtypeStruct((num_shards, 1, v), jnp.float32)),
            grid_spec=grid_spec,
            compiler_params=pltpu.CompilerParams(
                dimension_semantics=("parallel", "arbitrary"),
                vmem_limit_bytes=vmem_budget,
            ),
            cost_estimate=pl.CostEstimate(
                flops=int(flops),
                transcendentals=int(transcendentals),
                bytes_accessed=int(bytes_accessed)),
        )(x2d, w1_t, w2_t, w1_s, w2_s, labels2d)

    try:
        # Grid-resident weights single-buffered (constant index_map -> double
        # buffering is pure VMEM waste; matters on v7x's 64 MiB VMEM).
        ce_acc, kd_acc = _run(pl.Buffered(1))
    except Exception:
        ce_acc, kd_acc = _run(None)   # fallback: default double buffering

    n_valid = jnp.maximum(jnp.sum((labels2d >= 0).astype(jnp.float32)), 1.0)
    ce = jnp.sum(ce_acc) / n_valid
    kd = jnp.sum(kd_acc) / jnp.float32(n) * jnp.float32(_TEMPERATURE * _TEMPERATURE)
    total = _ALPHA * ce + (1.0 - _ALPHA) * kd + _BETA * fd
    # TODO(synk): optimizer.zero_grad()/backward()/AdamW step omitted (no Pallas
    #             equivalent for autodiff/optimizer state update).
    return {"ce": ce, "kd": kd, "fd": fd, "overall_loss": total}


# ---------------------------------------------------------------------------
# Pure-JAX reference (mirrors the kernel's bf16 matmul / f32 softmax math).
# ---------------------------------------------------------------------------
def _reference_forward(batch, teacher_params, student_params, feature_layers):
    x = batch["input"]
    labels = batch["labels"].reshape(-1)
    n, h = x.shape[0] * x.shape[1], x.shape[-1]
    x2d = x.reshape(n, h).astype(jnp.bfloat16)

    def mlp(params):
        hdn = jnp.maximum(
            jnp.dot(x2d, params["fc1.weight"].astype(jnp.bfloat16),
                    preferred_element_type=jnp.float32), 0.0)
        return jnp.dot(hdn.astype(jnp.bfloat16),
                       params["fc2.weight"].astype(jnp.bfloat16),
                       preferred_element_type=jnp.float32)

    t = mlp(teacher_params)
    s = mlp(student_params)

    valid = labels >= 0
    n_valid = jnp.maximum(jnp.sum(valid.astype(jnp.float32)), 1.0)
    logp_s = jax.nn.log_softmax(s, axis=-1)
    picked = jnp.take_along_axis(logp_s, jnp.maximum(labels, 0)[:, None],
                                 axis=-1)[:, 0]
    ce = -jnp.sum(jnp.where(valid, picked, 0.0)) / n_valid

    temp = _TEMPERATURE
    p_t = jax.nn.softmax(t / temp, axis=-1)
    kd = jnp.sum(p_t * (jax.nn.log_softmax(t / temp, axis=-1)
                        - jax.nn.log_softmax(s / temp, axis=-1)))
    kd = kd / jnp.float32(n) * jnp.float32(temp * temp)

    fd = jnp.float32(0.0)
    for name in feature_layers:
        d = (teacher_params[name].astype(jnp.float32)
             - student_params[name].astype(jnp.float32))
        fd = fd + jnp.mean(d * d)

    total = _ALPHA * ce + (1.0 - _ALPHA) * kd + _BETA * fd
    return {"ce": ce, "kd": kd, "fd": fd, "overall_loss": total}


if __name__ == "__main__":
    B, S, H, F, V = 2, 256, 32, 64, 128   # N = B*S = 512 tokens

    key = jax.random.PRNGKey(0)
    k_x, k_lab, k_t1, k_t2, k_s1, k_s2 = jax.random.split(key, 6)

    labels = jax.random.randint(k_lab, (B, S), 0, V, dtype=jnp.int32)
    labels = labels.at[0, :4].set(-100)   # exercise ignore_index handling

    batch = {
        "input": jax.random.normal(k_x, (B, S, H), dtype=jnp.float32),
        "labels": labels,
    }
    teacher_params = {
        "fc1.weight": jax.random.normal(k_t1, (H, F), dtype=jnp.float32) * 0.1,
        "fc2.weight": jax.random.normal(k_t2, (F, V), dtype=jnp.float32) * 0.1,
    }
    student_params = {
        "fc1.weight": jax.random.normal(k_s1, (H, F), dtype=jnp.float32) * 0.1,
        "fc2.weight": jax.random.normal(k_s2, (F, V), dtype=jnp.float32) * 0.1,
    }
    feature_layers = ["fc1.weight"]

    # token_tile=128 -> 4 token tiles -> 2 parallel shards x 2 reduction steps.
    out = knowledge_distillation_forward(batch, teacher_params, student_params,
                                         feature_layers, token_tile=128)
    jax.block_until_ready(out["overall_loss"])

    ref = _reference_forward(batch, teacher_params, student_params,
                             feature_layers)
    for name in ("ce", "kd", "fd", "overall_loss"):
        assert jnp.isfinite(out[name]), name
        assert jnp.allclose(out[name], ref[name], rtol=5e-3, atol=5e-3), (
            name, float(out[name]), float(ref[name]))

    print("KERNEL_OK")
</pallas_src>

<mosaic_0001>
module attributes {stable_mosaic.version = 11 : i64} {
  func.func @_fused_kd_kernel(%arg0: i32, %arg1: i32, %arg2: memref<128x32xbf16, #tpu.memory_space<vmem>>, %arg3: memref<32x64xbf16, #tpu.memory_space<vmem>>, %arg4: memref<64x128xbf16, #tpu.memory_space<vmem>>, %arg5: memref<32x64xbf16, #tpu.memory_space<vmem>>, %arg6: memref<64x128xbf16, #tpu.memory_space<vmem>>, %arg7: memref<128x1xi32, #tpu.memory_space<vmem>>, %arg8: memref<1x1x128xf32, #tpu.memory_space<vmem>>, %arg9: memref<1x1x128xf32, #tpu.memory_space<vmem>>) attributes {dimension_semantics = [#tpu.dimension_semantics<parallel>, #tpu.dimension_semantics<arbitrary>], iteration_bounds = array<i64: 2, 2>, scalar_prefetch = 0 : i64, scratch_operands = 0 : i64, tpu.core_type = #tpu.core_type<tc>, window_params = [{transform_indices = @transform_0, window_bounds = array<i64: 128, 32>}, {pipeline_mode = #tpu.pipeline_mode<synchronous>, transform_indices = @transform_1, window_bounds = array<i64: 32, 64>}, {pipeline_mode = #tpu.pipeline_mode<synchronous>, transform_indices = @transform_2, window_bounds = array<i64: 64, 128>}, {pipeline_mode = #tpu.pipeline_mode<synchronous>, transform_indices = @transform_3, window_bounds = array<i64: 32, 64>}, {pipeline_mode = #tpu.pipeline_mode<synchronous>, transform_indices = @transform_4, window_bounds = array<i64: 64, 128>}, {transform_indices = @transform_5, window_bounds = array<i64: 128, 1>}, {transform_indices = @transform_6, window_bounds = array<i64: 1, 1, 128>}, {transform_indices = @transform_7, window_bounds = array<i64: 1, 1, 128>}]} {
    %c0_i32 = arith.constant 0 : i32
    %0 = arith.cmpi eq, %arg1, %c0_i32 : i32
    %1 = arith.extui %0 : i1 to i32
    %c0_i32_0 = arith.constant 0 : i32
    %2 = arith.cmpi ne, %1, %c0_i32_0 : i32
    scf.if %2 {
      %cst_39 = arith.constant 0.000000e+00 : f32
      %72 = vector.broadcast %cst_39 : f32 to vector<1x1x128xf32>
      %c0_40 = arith.constant 0 : index
      %c0_41 = arith.constant 0 : index
      %c0_42 = arith.constant 0 : index
      %73 = vector.load %arg8[%c0_40, %c0_41, %c0_42] : memref<1x1x128xf32, #tpu.memory_space<vmem>>, vector<1x1x128xf32>
      tpu.vector_store %arg8[%c0_40, %c0_41, %c0_42], %72 {strides = array<i32>} : memref<1x1x128xf32, #tpu.memory_space<vmem>>, vector<1x1x128xf32>,
      %cst_43 = arith.constant 0.000000e+00 : f32
      %74 = vector.broadcast %cst_43 : f32 to vector<1x1x128xf32>
      %c0_44 = arith.constant 0 : index
      %c0_45 = arith.constant 0 : index
      %c0_46 = arith.constant 0 : index
      %75 = vector.load %arg9[%c0_44, %c0_45, %c0_46] : memref<1x1x128xf32, #tpu.memory_space<vmem>>, vector<1x1x128xf32>
      tpu.vector_store %arg9[%c0_44, %c0_45, %c0_46], %74 {strides = array<i32>} : memref<1x1x128xf32, #tpu.memory_space<vmem>>, vector<1x1x128xf32>,
    } else {
    }
    %c0 = arith.constant 0 : index
    %c0_1 = arith.constant 0 : index
    %3 = vector.load %arg2[%c0, %c0_1] : memref<128x32xbf16, #tpu.memory_space<vmem>>, vector<128x32xbf16>
    %c0_2 = arith.constant 0 : index
    %c0_3 = arith.constant 0 : index
    %4 = vector.load %arg3[%c0_2, %c0_3] : memref<32x64xbf16, #tpu.memory_space<vmem>>, vector<32x64xbf16>
    %cst = arith.constant dense<0.000000e+00> : vector<128x64xf32>
    %5 = tpu.matmul %3, %4, %cst {dimension_numbers = #tpu.dot_dimension_numbers<[1], [0], [0], [1], [0, 0, 1, 1], [], []>} : vector<128x32xbf16>, vector<32x64xbf16>, vector<128x64xf32> -> vector<128x64xf32>
    %cst_4 = arith.constant 0.000000e+00 : f32
    %6 = vector.broadcast %cst_4 : f32 to vector<128x64xf32>
    %7 = arith.maximumf %5, %6 : vector<128x64xf32>
    %8 = arith.truncf %7 : vector<128x64xf32> to vector<128x64xbf16>
    %c0_5 = arith.constant 0 : index
    %c0_6 = arith.constant 0 : index
    %9 = vector.load %arg4[%c0_5, %c0_6] : memref<64x128xbf16, #tpu.memory_space<vmem>>, vector<64x128xbf16>
    %cst_7 = arith.constant dense<0.000000e+00> : vector<128x128xf32>
    %10 = tpu.matmul %8, %9, %cst_7 {dimension_numbers = #tpu.dot_dimension_numbers<[1], [0], [0], [1], [0, 0, 1, 1], [], []>} : vector<128x64xbf16>, vector<64x128xbf16>, vector<128x128xf32> -> vector<128x128xf32>
    %c0_8 = arith.constant 0 : index
    %c0_9 = arith.constant 0 : index
    %11 = vector.load %arg5[%c0_8, %c0_9] : memref<32x64xbf16, #tpu.memory_space<vmem>>, vector<32x64xbf16>
    %cst_10 = arith.constant dense<0.000000e+00> : vector<128x64xf32>
    %12 = tpu.matmul %3, %11, %cst_10 {dimension_numbers = #tpu.dot_dimension_numbers<[1], [0], [0], [1], [0, 0, 1, 1], [], []>} : vector<128x32xbf16>, vector<32x64xbf16>, vector<128x64xf32> -> vector<128x64xf32>
    %cst_11 = arith.constant 0.000000e+00 : f32
    %13 = vector.broadcast %cst_11 : f32 to vector<128x64xf32>
    %14 = arith.maximumf %12, %13 : vector<128x64xf32>
    %15 = arith.truncf %14 : vector<128x64xf32> to vector<128x64xbf16>
    %c0_12 = arith.constant 0 : index
    %c0_13 = arith.constant 0 : index
    %16 = vector.load %arg6[%c0_12, %c0_13] : memref<64x128xbf16, #tpu.memory_space<vmem>>, vector<64x128xbf16>
    %cst_14 = arith.constant dense<0.000000e+00> : vector<128x128xf32>
    %17 = tpu.matmul %15, %16, %cst_14 {dimension_numbers = #tpu.dot_dimension_numbers<[1], [0], [0], [1], [0, 0, 1, 1], [], []>} : vector<128x64xbf16>, vector<64x128xbf16>, vector<128x128xf32> -> vector<128x128xf32>
    %c0_15 = arith.constant 0 : index
    %c0_16 = arith.constant 0 : index
    %18 = vector.load %arg7[%c0_15, %c0_16] : memref<128x1xi32, #tpu.memory_space<vmem>>, vector<128x1xi32>
    %cst_17 = arith.constant dense<0xFF800000> : vector<128xf32>
    %19 = vector.multi_reduction <maximumf>, %17, %cst_17 [1] : vector<128x128xf32> to vector<128xf32>
    %20 = vector.shape_cast %19 : vector<128xf32> to vector<128x1xf32>
    %21 = vector.broadcast %20 : vector<128x1xf32> to vector<128x128xf32>
    %22 = arith.subf %17, %21 : vector<128x128xf32>
    %cst_18 = arith.constant 5.000000e-01 : f32
    %23 = vector.broadcast %cst_18 : f32 to vector<128x128xf32>
    %24 = arith.mulf %22, %23 : vector<128x128xf32>
    %25 = math.exp %24 : vector<128x128xf32>
    %26 = arith.mulf %25, %25 : vector<128x128xf32>
    %cst_19 = arith.constant dense<0.000000e+00> : vector<128xf32>
    %27 = vector.multi_reduction <add>, %26, %cst_19 [1] : vector<128x128xf32> to vector<128xf32>
    %28 = vector.shape_cast %27 : vector<128xf32> to vector<128x1xf32>
    %29 = math.log %28 : vector<128x1xf32>
    %cst_20 = arith.constant dense<0.000000e+00> : vector<128xf32>
    %30 = vector.multi_reduction <add>, %25, %cst_20 [1] : vector<128x128xf32> to vector<128xf32>
    %31 = vector.shape_cast %30 : vector<128xf32> to vector<128x1xf32>
    %32 = math.log %31 : vector<128x1xf32>
    %33 = vector.broadcast %29 : vector<128x1xf32> to vector<128x128xf32>
    %34 = arith.subf %22, %33 : vector<128x128xf32>
    %35 = tpu.iota {dimensions = array<i32: 1>} : vector<128x128xi32>
    %36 = vector.broadcast %18 : vector<128x1xi32> to vector<128x128xi32>
    %37 = arith.cmpi eq, %35, %36 : vector<128x128xi32>
    %38 = arith.extui %37 : vector<128x128xi1> to vector<128x128xi32>
    %39 = arith.sitofp %38 : vector<128x128xi32> to vector<128x128xf32>
    %cst_21 = arith.constant 0.000000e+00 : f32
    %40 = vector.broadcast %cst_21 : f32 to vector<128x128xf32>
    %41 = arith.subf %40, %34 : vector<128x128xf32>
    %42 = arith.mulf %39, %41 : vector<128x128xf32>
    %cst_22 = arith.constant dense<0.000000e+00> : vector<128xf32>
    %43 = vector.multi_reduction <add>, %42, %cst_22 [0] : vector<128x128xf32> to vector<128xf32>
    %44 = vector.shape_cast %43 : vector<128xf32> to vector<1x128xf32>
    %cst_23 = arith.constant dense<0xFF800000> : vector<128xf32>
    %45 = vector.multi_reduction <maximumf>, %10, %cst_23 [1] : vector<128x128xf32> to vector<128xf32>
    %46 = vector.shape_cast %45 : vector<128xf32> to vector<128x1xf32>
    %47 = vector.broadcast %46 : vector<128x1xf32> to vector<128x128xf32>
    %48 = arith.subf %10, %47 : vector<128x128xf32>
    %cst_24 = arith.constant 5.000000e-01 : f32
    %49 = vector.broadcast %cst_24 : f32 to vector<128x128xf32>
    %50 = arith.mulf %48, %49 : vector<128x128xf32>
    %51 = math.exp %50 : vector<128x128xf32>
    %cst_25 = arith.constant dense<0.000000e+00> : vector<128xf32>
    %52 = vector.multi_reduction <add>, %51, %cst_25 [1] : vector<128x128xf32> to vector<128xf32>
    %53 = vector.shape_cast %52 : vector<128xf32> to vector<128x1xf32>
    %54 = vector.broadcast %53 : vector<128x1xf32> to vector<128x128xf32>
    %55 = arith.divf %51, %54 : vector<128x128xf32>
    %56 = arith.subf %50, %24 : vector<128x128xf32>
    %57 = math.log %53 : vector<128x1xf32>
    %58 = arith.subf %32, %57 : vector<128x1xf32>
    %59 = vector.broadcast %58 : vector<128x1xf32> to vector<128x128xf32>
    %60 = arith.addf %56, %59 : vector<128x128xf32>
    %61 = arith.mulf %55, %60 : vector<128x128xf32>
    %cst_26 = arith.constant dense<0.000000e+00> : vector<128xf32>
    %62 = vector.multi_reduction <add>, %61, %cst_26 [0] : vector<128x128xf32> to vector<128xf32>
    %63 = vector.shape_cast %62 : vector<128xf32> to vector<1x128xf32>
    %c0_27 = arith.constant 0 : index
    %c0_28 = arith.constant 0 : index
    %c0_29 = arith.constant 0 : index
    %64 = vector.load %arg8[%c0_27, %c0_28, %c0_29] : memref<1x1x128xf32, #tpu.memory_space<vmem>>, vector<1x1x128xf32>
    %65 = vector.shape_cast %44 : vector<1x128xf32> to vector<1x1x128xf32>
    %66 = arith.addf %64, %65 : vector<1x1x128xf32>
    %c0_30 = arith.constant 0 : index
    %c0_31 = arith.constant 0 : index
    %c0_32 = arith.constant 0 : index
    %67 = vector.load %arg8[%c0_30, %c0_31, %c0_32] : memref<1x1x128xf32, #tpu.memory_space<vmem>>, vector<1x1x128xf32>
    tpu.vector_store %arg8[%c0_30, %c0_31, %c0_32], %66 {strides = array<i32>} : memref<1x1x128xf32, #tpu.memory_space<vmem>>, vector<1x1x128xf32>,
    %c0_33 = arith.constant 0 : index
    %c0_34 = arith.constant 0 : index
    %c0_35 = arith.constant 0 : index
    %68 = vector.load %arg9[%c0_33, %c0_34, %c0_35] : memref<1x1x128xf32, #tpu.memory_space<vmem>>, vector<1x1x128xf32>
    %69 = vector.shape_cast %63 : vector<1x128xf32> to vector<1x1x128xf32>
    %70 = arith.addf %68, %69 : vector<1x1x128xf32>
    %c0_36 = arith.constant 0 : index
    %c0_37 = arith.constant 0 : index
    %c0_38 = arith.constant 0 : index
    %71 = vector.load %arg9[%c0_36, %c0_37, %c0_38] : memref<1x1x128xf32, #tpu.memory_space<vmem>>, vector<1x1x128xf32>
    tpu.vector_store %arg9[%c0_36, %c0_37, %c0_38], %70 {strides = array<i32>} : memref<1x1x128xf32, #tpu.memory_space<vmem>>, vector<1x1x128xf32>,
    return
  }
  func.func @transform_0(%arg0: i32, %arg1: i32) -> (i32, i32) {
    %c2_i32 = arith.constant 2 : i32
    %0 = arith.muli %arg0, %c2_i32 : i32
    %1 = arith.addi %0, %arg1 : i32
    %c0_i32 = arith.constant 0 : i32
    %c0_i32_0 = arith.constant 0 : i32
    return %1, %c0_i32 : i32, i32
  }
  func.func @transform_1(%arg0: i32, %arg1: i32) -> (i32, i32) {
    %c0_i32 = arith.constant 0 : i32
    %c0_i32_0 = arith.constant 0 : i32
    %c0_i32_1 = arith.constant 0 : i32
    return %c0_i32, %c0_i32_0 : i32, i32
  }
  func.func @transform_2(%arg0: i32, %arg1: i32) -> (i32, i32) {
    %c0_i32 = arith.constant 0 : i32
    %c0_i32_0 = arith.constant 0 : i32
    %c0_i32_1 = arith.constant 0 : i32
    return %c0_i32, %c0_i32_0 : i32, i32
  }
  func.func @transform_3(%arg0: i32, %arg1: i32) -> (i32, i32) {
    %c0_i32 = arith.constant 0 : i32
    %c0_i32_0 = arith.constant 0 : i32
    %c0_i32_1 = arith.constant 0 : i32
    return %c0_i32, %c0_i32_0 : i32, i32
  }
  func.func @transform_4(%arg0: i32, %arg1: i32) -> (i32, i32) {
    %c0_i32 = arith.constant 0 : i32
    %c0_i32_0 = arith.constant 0 : i32
    %c0_i32_1 = arith.constant 0 : i32
    return %c0_i32, %c0_i32_0 : i32, i32
  }
  func.func @transform_5(%arg0: i32, %arg1: i32) -> (i32, i32) {
    %c2_i32 = arith.constant 2 : i32
    %0 = arith.muli %arg0, %c2_i32 : i32
    %1 = arith.addi %0, %arg1 : i32
    %c0_i32 = arith.constant 0 : i32
    %c0_i32_0 = arith.constant 0 : i32
    return %1, %c0_i32 : i32, i32
  }
  func.func @transform_6(%arg0: i32, %arg1: i32) -> (i32, i32, i32) {
    %c0_i32 = arith.constant 0 : i32
    %c0_i32_0 = arith.constant 0 : i32
    %c0_i32_1 = arith.constant 0 : i32
    return %arg0, %c0_i32, %c0_i32_0 : i32, i32, i32
  }
  func.func @transform_7(%arg0: i32, %arg1: i32) -> (i32, i32, i32) {
    %c0_i32 = arith.constant 0 : i32
    %c0_i32_0 = arith.constant 0 : i32
    %c0_i32_1 = arith.constant 0 : i32
    return %arg0, %c0_i32, %c0_i32_0 : i32, i32, i32
  }
}

module attributes {stable_mosaic.version = 11 : i64} {
  func.func @_fused_kd_kernel(%arg0: i32, %arg1: i32, %arg2: memref<128x32xbf16, #tpu.memory_space<vmem>>, %arg3: memref<32x64xbf16, #tpu.memory_space<vmem>>, %arg4: memref<64x128xbf16, #tpu.memory_space<vmem>>, %arg5: memref<32x64xbf16, #tpu.memory_space<vmem>>, %arg6: memref<64x128xbf16, #tpu.memory_space<vmem>>, %arg7: memref<128x1xi32, #tpu.memory_space<vmem>>, %arg8: memref<1x1x128xf32, #tpu.memory_space<vmem>>, %arg9: memref<1x1x128xf32, #tpu.memory_space<vmem>>) attributes {dimension_semantics = [#tpu.dimension_semantics<parallel>, #tpu.dimension_semantics<arbitrary>], iteration_bounds = array<i64: 2, 2>, scalar_prefetch = 0 : i64, scratch_operands = 0 : i64, tpu.core_type = #tpu.core_type<tc>, window_params = [{transform_indices = @transform_0, window_bounds = array<i64: 128, 32>}, {pipeline_mode = #tpu.pipeline_mode<synchronous>, transform_indices = @transform_1, window_bounds = array<i64: 32, 64>}, {pipeline_mode = #tpu.pipeline_mode<synchronous>, transform_indices = @transform_2, window_bounds = array<i64: 64, 128>}, {pipeline_mode = #tpu.pipeline_mode<synchronous>, transform_indices = @transform_3, window_bounds = array<i64: 32, 64>}, {pipeline_mode = #tpu.pipeline_mode<synchronous>, transform_indices = @transform_4, window_bounds = array<i64: 64, 128>}, {transform_indices = @transform_5, window_bounds = array<i64: 128, 1>}, {transform_indices = @transform_6, window_bounds = array<i64: 1, 1, 128>}, {transform_indices = @transform_7, window_bounds = array<i64: 1, 1, 128>}]} {
    %c0_i32 = arith.constant 0 : i32
    %0 = arith.cmpi eq, %arg1, %c0_i32 : i32
    %1 = arith.extui %0 : i1 to i32
    %c0_i32_0 = arith.constant 0 : i32
    %2 = arith.cmpi ne, %1, %c0_i32_0 : i32
    scf.if %2 {
      %cst_39 = arith.constant 0.000000e+00 : f32
      %72 = vector.broadcast %cst_39 : f32 to vector<1x1x128xf32>
      %c0_40 = arith.constant 0 : index
      %c0_41 = arith.constant 0 : index
      %c0_42 = arith.constant 0 : index
      %73 = vector.load %arg8[%c0_40, %c0_41, %c0_42] : memref<1x1x128xf32, #tpu.memory_space<vmem>>, vector<1x1x128xf32>
      tpu.vector_store %arg8[%c0_40, %c0_41, %c0_42], %72 {strides = array<i32>} : memref<1x1x128xf32, #tpu.memory_space<vmem>>, vector<1x1x128xf32>,
      %cst_43 = arith.constant 0.000000e+00 : f32
      %74 = vector.broadcast %cst_43 : f32 to vector<1x1x128xf32>
      %c0_44 = arith.constant 0 : index
      %c0_45 = arith.constant 0 : index
      %c0_46 = arith.constant 0 : index
      %75 = vector.load %arg9[%c0_44, %c0_45, %c0_46] : memref<1x1x128xf32, #tpu.memory_space<vmem>>, vector<1x1x128xf32>
      tpu.vector_store %arg9[%c0_44, %c0_45, %c0_46], %74 {strides = array<i32>} : memref<1x1x128xf32, #tpu.memory_space<vmem>>, vector<1x1x128xf32>,
    } else {
    }
    %c0 = arith.constant 0 : index
    %c0_1 = arith.constant 0 : index
    %3 = vector.load %arg2[%c0, %c0_1] : memref<128x32xbf16, #tpu.memory_space<vmem>>, vector<128x32xbf16>
    %c0_2 = arith.constant 0 : index
    %c0_3 = arith.constant 0 : index
    %4 = vector.load %arg3[%c0_2, %c0_3] : memref<32x64xbf16, #tpu.memory_space<vmem>>, vector<32x64xbf16>
    %cst = arith.constant dense<0.000000e+00> : vector<128x64xf32>
    %5 = tpu.matmul %3, %4, %cst {dimension_numbers = #tpu.dot_dimension_numbers<[1], [0], [0], [1], [0, 0, 1, 1], [], []>} : vector<128x32xbf16>, vector<32x64xbf16>, vector<128x64xf32> -> vector<128x64xf32>
    %cst_4 = arith.constant 0.000000e+00 : f32
    %6 = vector.broadcast %cst_4 : f32 to vector<128x64xf32>
    %7 = arith.maximumf %5, %6 : vector<128x64xf32>
    %8 = arith.truncf %7 : vector<128x64xf32> to vector<128x64xbf16>
    %c0_5 = arith.constant 0 : index
    %c0_6 = arith.constant 0 : index
    %9 = vector.load %arg4[%c0_5, %c0_6] : memref<64x128xbf16, #tpu.memory_space<vmem>>, vector<64x128xbf16>
    %cst_7 = arith.constant dense<0.000000e+00> : vector<128x128xf32>
    %10 = tpu.matmul %8, %9, %cst_7 {dimension_numbers = #tpu.dot_dimension_numbers<[1], [0], [0], [1], [0, 0, 1, 1], [], []>} : vector<128x64xbf16>, vector<64x128xbf16>, vector<128x128xf32> -> vector<128x128xf32>
    %c0_8 = arith.constant 0 : index
    %c0_9 = arith.constant 0 : index
    %11 = vector.load %arg5[%c0_8, %c0_9] : memref<32x64xbf16, #tpu.memory_space<vmem>>, vector<32x64xbf16>
    %cst_10 = arith.constant dense<0.000000e+00> : vector<128x64xf32>
    %12 = tpu.matmul %3, %11, %cst_10 {dimension_numbers = #tpu.dot_dimension_numbers<[1], [0], [0], [1], [0, 0, 1, 1], [], []>} : vector<128x32xbf16>, vector<32x64xbf16>, vector<128x64xf32> -> vector<128x64xf32>
    %cst_11 = arith.constant 0.000000e+00 : f32
    %13 = vector.broadcast %cst_11 : f32 to vector<128x64xf32>
    %14 = arith.maximumf %12, %13 : vector<128x64xf32>
    %15 = arith.truncf %14 : vector<128x64xf32> to vector<128x64xbf16>
    %c0_12 = arith.constant 0 : index
    %c0_13 = arith.constant 0 : index
    %16 = vector.load %arg6[%c0_12, %c0_13] : memref<64x128xbf16, #tpu.memory_space<vmem>>, vector<64x128xbf16>
    %cst_14 = arith.constant dense<0.000000e+00> : vector<128x128xf32>
    %17 = tpu.matmul %15, %16, %cst_14 {dimension_numbers = #tpu.dot_dimension_numbers<[1], [0], [0], [1], [0, 0, 1, 1], [], []>} : vector<128x64xbf16>, vector<64x128xbf16>, vector<128x128xf32> -> vector<128x128xf32>
    %c0_15 = arith.constant 0 : index
    %c0_16 = arith.constant 0 : index
    %18 = vector.load %arg7[%c0_15, %c0_16] : memref<128x1xi32, #tpu.memory_space<vmem>>, vector<128x1xi32>
    %cst_17 = arith.constant dense<0xFF800000> : vector<128xf32>
    %19 = vector.multi_reduction <maximumf>, %17, %cst_17 [1] : vector<128x128xf32> to vector<128xf32>
    %20 = vector.shape_cast %19 : vector<128xf32> to vector<128x1xf32>
    %21 = vector.broadcast %20 : vector<128x1xf32> to vector<128x128xf32>
    %22 = arith.subf %17, %21 : vector<128x128xf32>
    %cst_18 = arith.constant 5.000000e-01 : f32
    %23 = vector.broadcast %cst_18 : f32 to vector<128x128xf32>
    %24 = arith.mulf %22, %23 : vector<128x128xf32>
    %25 = math.exp %24 : vector<128x128xf32>
    %26 = arith.mulf %25, %25 : vector<128x128xf32>
    %cst_19 = arith.constant dense<0.000000e+00> : vector<128xf32>
    %27 = vector.multi_reduction <add>, %26, %cst_19 [1] : vector<128x128xf32> to vector<128xf32>
    %28 = vector.shape_cast %27 : vector<128xf32> to vector<128x1xf32>
    %29 = math.log %28 : vector<128x1xf32>
    %cst_20 = arith.constant dense<0.000000e+00> : vector<128xf32>
    %30 = vector.multi_reduction <add>, %25, %cst_20 [1] : vector<128x128xf32> to vector<128xf32>
    %31 = vector.shape_cast %30 : vector<128xf32> to vector<128x1xf32>
    %32 = math.log %31 : vector<128x1xf32>
    %33 = vector.broadcast %29 : vector<128x1xf32> to vector<128x128xf32>
    %34 = arith.subf %22, %33 : vector<128x128xf32>
    %35 = tpu.iota {dimensions = array<i32: 1>} : vector<128x128xi32>
    %36 = vector.broadcast %18 : vector<128x1xi32> to vector<128x128xi32>
    %37 = arith.cmpi eq, %35, %36 : vector<128x128xi32>
    %38 = arith.extui %37 : vector<128x128xi1> to vector<128x128xi32>
    %39 = arith.sitofp %38 : vector<128x128xi32> to vector<128x128xf32>
    %cst_21 = arith.constant 0.000000e+00 : f32
    %40 = vector.broadcast %cst_21 : f32 to vector<128x128xf32>
    %41 = arith.subf %40, %34 : vector<128x128xf32>
    %42 = arith.mulf %39, %41 : vector<128x128xf32>
    %cst_22 = arith.constant dense<0.000000e+00> : vector<128xf32>
    %43 = vector.multi_reduction <add>, %42, %cst_22 [0] : vector<128x128xf32> to vector<128xf32>
    %44 = vector.shape_cast %43 : vector<128xf32> to vector<1x128xf32>
    %cst_23 = arith.constant dense<0xFF800000> : vector<128xf32>
    %45 = vector.multi_reduction <maximumf>, %10, %cst_23 [1] : vector<128x128xf32> to vector<128xf32>
    %46 = vector.shape_cast %45 : vector<128xf32> to vector<128x1xf32>
    %47 = vector.broadcast %46 : vector<128x1xf32> to vector<128x128xf32>
    %48 = arith.subf %10, %47 : vector<128x128xf32>
    %cst_24 = arith.constant 5.000000e-01 : f32
    %49 = vector.broadcast %cst_24 : f32 to vector<128x128xf32>
    %50 = arith.mulf %48, %49 : vector<128x128xf32>
    %51 = math.exp %50 : vector<128x128xf32>
    %cst_25 = arith.constant dense<0.000000e+00> : vector<128xf32>
    %52 = vector.multi_reduction <add>, %51, %cst_25 [1] : vector<128x128xf32> to vector<128xf32>
    %53 = vector.shape_cast %52 : vector<128xf32> to vector<128x1xf32>
    %54 = vector.broadcast %53 : vector<128x1xf32> to vector<128x128xf32>
    %55 = arith.divf %51, %54 : vector<128x128xf32>
    %56 = arith.subf %50, %24 : vector<128x128xf32>
    %57 = math.log %53 : vector<128x1xf32>
    %58 = arith.subf %32, %57 : vector<128x1xf32>
    %59 = vector.broadcast %58 : vector<128x1xf32> to vector<128x128xf32>
    %60 = arith.addf %56, %59 : vector<128x128xf32>
    %61 = arith.mulf %55, %60 : vector<128x128xf32>
    %cst_26 = arith.constant dense<0.000000e+00> : vector<128xf32>
    %62 = vector.multi_reduction <add>, %61, %cst_26 [0] : vector<128x128xf32> to vector<128xf32>
    %63 = vector.shape_cast %62 : vector<128xf32> to vector<1x128xf32>
    %c0_27 = arith.constant 0 : index
    %c0_28 = arith.constant 0 : index
    %c0_29 = arith.constant 0 : index
    %64 = vector.load %arg8[%c0_27, %c0_28, %c0_29] : memref<1x1x128xf32, #tpu.memory_space<vmem>>, vector<1x1x128xf32>
    %65 = vector.shape_cast %44 : vector<1x128xf32> to vector<1x1x128xf32>
    %66 = arith.addf %64, %65 : vector<1x1x128xf32>
    %c0_30 = arith.constant 0 : index
    %c0_31 = arith.constant 0 : index
    %c0_32 = arith.constant 0 : index
    %67 = vector.load %arg8[%c0_30, %c0_31, %c0_32] : memref<1x1x128xf32, #tpu.memory_space<vmem>>, vector<1x1x128xf32>
    tpu.vector_store %arg8[%c0_30, %c0_31, %c0_32], %66 {strides = array<i32>} : memref<1x1x128xf32, #tpu.memory_space<vmem>>, vector<1x1x128xf32>,
    %c0_33 = arith.constant 0 : index
    %c0_34 = arith.constant 0 : index
    %c0_35 = arith.constant 0 : index
    %68 = vector.load %arg9[%c0_33, %c0_34, %c0_35] : memref<1x1x128xf32, #tpu.memory_space<vmem>>, vector<1x1x128xf32>
    %69 = vector.shape_cast %63 : vector<1x128xf32> to vector<1x1x128xf32>
    %70 = arith.addf %68, %69 : vector<1x1x128xf32>
    %c0_36 = arith.constant 0 : index
    %c0_37 = arith.constant 0 : index
    %c0_38 = arith.constant 0 : index
    %71 = vector.load %arg9[%c0_36, %c0_37, %c0_38] : memref<1x1x128xf32, #tpu.memory_space<vmem>>, vector<1x1x128xf32>
    tpu.vector_store %arg9[%c0_36, %c0_37, %c0_38], %70 {strides = array<i32>} : memref<1x1x128xf32, #tpu.memory_space<vmem>>, vector<1x1x128xf32>,
    return
  }
  func.func @transform_0(%arg0: i32, %arg1: i32) -> (i32, i32) {
    %c2_i32 = arith.constant 2 : i32
    %0 = arith.muli %arg0, %c2_i32 : i32
    %1 = arith.addi %0, %arg1 : i32
    %c0_i32 = arith.constant 0 : i32
    %c0_i32_0 = arith.constant 0 : i32
    return %1, %c0_i32 : i32, i32
  }
  func.func @transform_1(%arg0: i32, %arg1: i32) -> (i32, i32) {
    %c0_i32 = arith.constant 0 : i32
    %c0_i32_0 = arith.constant 0 : i32
    %c0_i32_1 = arith.constant 0 : i32
    return %c0_i32, %c0_i32_0 : i32, i32
  }
  func.func @transform_2(%arg0: i32, %arg1: i32) -> (i32, i32) {
    %c0_i32 = arith.constant 0 : i32
    %c0_i32_0 = arith.constant 0 : i32
    %c0_i32_1 = arith.constant 0 : i32
    return %c0_i32, %c0_i32_0 : i32, i32
  }
  func.func @transform_3(%arg0: i32, %arg1: i32) -> (i32, i32) {
    %c0_i32 = arith.constant 0 : i32
    %c0_i32_0 = arith.constant 0 : i32
    %c0_i32_1 = arith.constant 0 : i32
    return %c0_i32, %c0_i32_0 : i32, i32
  }
  func.func @transform_4(%arg0: i32, %arg1: i32) -> (i32, i32) {
    %c0_i32 = arith.constant 0 : i32
    %c0_i32_0 = arith.constant 0 : i32
    %c0_i32_1 = arith.constant 0 : i32
    return %c0_i32, %c0_i32_0 : i32, i32
  }
  func.func @transform_5(%arg0: i32, %arg1: i32) -> (i32, i32) {
    %c2_i32 = arith.constant 2 : i32
    %0 = arith.muli %arg0, %c2_i32 : i32
    %1 = arith.addi %0, %arg1 : i32
    %c0_i32 = arith.constant 0 : i32
    %c0_i32_0 = arith.constant 0 : i32
    return %1, %c0_i32 : i32, i32
  }
  func.func @transform_6(%arg0: i32, %arg1: i32) -> (i32, i32, i32) {
    %c0_i32 = arith.constant 0 : i32
    %c0_i32_0 = arith.constant 0 : i32
    %c0_i32_1 = arith.constant 0 : i32
    return %arg0, %c0_i32, %c0_i32_0 : i32, i32, i32
  }
  func.func @transform_7(%arg0: i32, %arg1: i32) -> (i32, i32, i32) {
    %c0_i32 = arith.constant 0 : i32
    %c0_i32_0 = arith.constant 0 : i32
    %c0_i32_1 = arith.constant 0 : i32
    return %arg0, %c0_i32, %c0_i32_0 : i32, i32, i32
  }
}

</mosaic_0001>

<llo_original>
// kernel: tpu_custom_call.1
$region0: #{tpu_custom_call.1}
  #allocation0 [shape = 'u32[]', space=smem, size = 0x4, offset = 0x4, fixed_abs, tag = 'smem constant byte address 0x4 - core index']
  #allocation1 [shape = 'u32[144,128]{1,0:T(1,128)}', space=vmem, size = 0x12000, scoped, tag = 'internal scratch']
  %s0 = inlined_call_operand.hbm [shape: bf16[512,32], index: 0, kind: input, shape index: {}]
  %s1 = inlined_call_operand.hbm [shape: bf16[32,64], index: 1, kind: input, shape index: {}]
  %s2 = inlined_call_operand.hbm [shape: bf16[64,128], index: 2, kind: input, shape index: {}]
  %s3 = inlined_call_operand.hbm [shape: bf16[32,64], index: 3, kind: input, shape index: {}]
  %s4 = inlined_call_operand.hbm [shape: bf16[64,128], index: 4, kind: input, shape index: {}]
  %s5 = inlined_call_operand.hbm [shape: s32[512,1], index: 5, kind: input, shape index: {}]
  %s6 = inlined_call_operand.hbm [shape: f32[2,1,128], index: 6, kind: output, shape index: {0}]
  %s7 = inlined_call_operand.hbm [shape: f32[2,1,128], index: 7, kind: output, shape index: {1}]
  %8 = xla_tuple %s6, %s7
  %s9 = sld [smem:[#allocation0]]
  $region93: #{tpu_custom_call.1} parent=0
    _
  %s11 = ssub.s32 1, %s9
  %s12 = scalar_select 0, %s11, %s9
  $region1: #{tpu_custom_call.1} parent=0
    #allocation2 [shape = 'u8[65536]{0}', space=vmem, size = 0x10000, scoped, tag = 'input window, operand 0']
    #allocation3 [shape = 's32[2]{0}', space=sflag, size = 0x8, scoped, tag = 'scoped memory for tpu_custom_call.1']
    #allocation4 [shape = 's32[2]{0}', space=sflag, size = 0x8, scoped, tag = 'scoped memory for tpu_custom_call.1']
    #allocation5 [shape = 'u8[8192]{0}', space=vmem, size = 0x2000, scoped, tag = 'input window, operand 1, single buffered']
    #allocation6 [shape = 's32[1]{0}', space=sflag, size = 0x4, scoped, tag = 'scoped memory for tpu_custom_call.1']
    #allocation7 [shape = 'u8[16384]{0}', space=vmem, size = 0x4000, scoped, tag = 'input window, operand 2, single buffered']
    #allocation8 [shape = 'u8[8192]{0}', space=vmem, size = 0x2000, scoped, tag = 'input window, operand 3, single buffered']
    #allocation9 [shape = 's32[1]{0}', space=sflag, size = 0x4, scoped, tag = 'scoped memory for tpu_custom_call.1']
    #allocation10 [shape = 'u8[16384]{0}', space=vmem, size = 0x4000, scoped, tag = 'input window, operand 4, single buffered']
    #allocation11 [shape = 'u8[131072]{0}', space=vmem, size = 0x20000, scoped, tag = 'input window, operand 5']
    #allocation12 [shape = 's32[2]{0}', space=sflag, size = 0x8, scoped, tag = 'scoped memory for tpu_custom_call.1']
    #allocation13 [shape = 'u8[1024]{0}', space=vmem, size = 0x400, scoped, tag = 'output window, operand 0']
    #allocation14 [shape = 'u8[1024]{0}', space=vmem, size = 0x400, scoped, tag = 'output window, operand 1']
    #allocation15 [shape = 's32[2]{0}', space=sflag, size = 0x8, scoped, tag = 'scoped memory for tpu_custom_call.1']
    %13 = vsyncpa [#allocation3], 0
    %s14 = scalar_lea.sflag [#allocation3], 1
    %15 = vsyncpa %s14, 0
    %16 = vsyncpa [#allocation6], 0
    %17 = vsyncpa [#allocation9], 0
    %18 = vsyncpa [#allocation12], 0
    %s19 = scalar_lea.sflag [#allocation12], 1
    %20 = vsyncpa %s19, 0
    %21 = vsyncpa [#allocation4], 0
    %s22 = scalar_lea.sflag [#allocation4], 1
    %23 = vsyncpa %s22, 0
    %24 = vsyncpa [#allocation15], 0
    %s25 = scalar_lea.sflag [#allocation15], 1
    %26 = vsyncpa %s25, 0
    loop: start=0, step=1, limit=6
    $region2: #{tpu_custom_call.1} parent=1 // loop_pre_header
      _
    $region3: #{tpu_custom_call.1} parent=1 // loop_header
      %s28 = sphi 0, %s32
      %p29 = scmp.ge.s32.totalorder %s28, 6
      %s35 = sphi 0, %s47
      %s36 = sphi 0, %s43
      %s37 = sphi 0, %s35
      %s38 = sphi 0, %s36
      %s39 = sphi 0, %s37
      %s40 = sphi 0, %s38
      %s54 = sphi 0, %s56
      %s57 = sphi 0, %s54
      %s58 = sphi 0, %s57
      %s74 = sphi 0, %s58
      %s78 = sphi 0, %s78
      %s80 = sphi 0, %s78
      %s81 = sphi 0, %s80
      %s95 = sphi 0, %s81
      %s99 = sphi 0, %s99
      %s101 = sphi 0, %s99
      %s102 = sphi 0, %s101
      %s116 = sphi 0, %s102
      %s120 = sphi 0, %s120
      %s122 = sphi 0, %s120
      %s123 = sphi 0, %s122
      %s137 = sphi 0, %s123
      %s141 = sphi 0, %s141
      %s143 = sphi 0, %s141
      %s144 = sphi 0, %s143
      %s158 = sphi 0, %s144
      %s168 = sphi 0, %s170
      %s171 = sphi 0, %s168
      %s172 = sphi 0, %s171
      %s188 = sphi 0, %s172
      %s194 = sphi 0, %s196
      %s197 = sphi 0, %s194
      %s198 = sphi 0, %s197
      %s214 = sphi 0, %s198
      %s220 = sphi 0, %s222
      %s223 = sphi 0, %s220
      %s224 = sphi 0, %s223
      %s240 = sphi 0, %s224
    $region4: #{tpu_custom_call.1} parent=1 // loop_header_branch
      %31 = sbr.rel (%p29) target = $region8
    $region5: #{tpu_custom_call.1} parent=1 // loop_body
      %s33 = ssub.s32 %s28, 1
      %s34 = ssub.s32 %s28, 2
      %s41 = sadd.s32 1, %s36
      %p42 = scmp.ge.s32.totalorder %s41, 2
      %s43 = scalar_select %p42, 0, %s41
      %s44 = sadd.s32 1, %s35
      %s45 = scalar_select %p42, %s44, %s35
      %p46 = scmp.ge.s32.totalorder %s45, 2
      %s47 = scalar_select %p46, 0, %s45
      %s48 = smul.u32 %s35, 2
      %s49 = sadd.s32 %s48, %s36
      %s50 = smul.u32 %s47, 2
      %s51 = sadd.s32 %s50, %s43
      %s52 = ssub.s32 %s49, %s51
      %p53 = scmp.eq.s32.totalorder %s52, 0
      %s55 = sadd.s32 %s54, 1
      %s56 = scalar_select %p53, %s54, %s55
      %p59 = pneg %p53
      %p60 = scmp.eq.s32.totalorder %s28, 3
      %p61 = por %p59, %p60
      %p62 = scmp.ne.s32.totalorder %s54, %s57
      %p63 = scmp.eq.s32.totalorder %s28, 0
      %p64 = por %p62, %p63
      %p65 = scmp.ne.s32.totalorder %s54, %s57
      %p66 = scmp.eq.s32.totalorder %s33, 3
      %p67 = por %p65, %p66
      %p68 = scmp.ne.s32.totalorder %s57, %s58
      %p69 = scmp.eq.s32.totalorder %s33, 0
      %p70 = por %p68, %p69
      %p71 = scmp.ne.s32.totalorder %s57, %s58
      %p72 = scmp.eq.s32.totalorder %s34, 3
      %p73 = por %p71, %p72
      %p75 = scmp.ne.s32.totalorder %s58, %s74
      %p76 = scmp.eq.s32.totalorder %s34, 0
      %p77 = por %p75, %p76
      %s79 = sadd.s32 %s78, 1
      %p82 = scmp.eq.s32.totalorder %s28, 3
      %p83 = scmp.ne.s32.totalorder %s78, %s80
      %p84 = scmp.eq.s32.totalorder %s28, 0
      %p85 = por %p83, %p84
      %p86 = scmp.ne.s32.totalorder %s78, %s80
      %p87 = scmp.eq.s32.totalorder %s33, 3
      %p88 = por %p86, %p87
      %p89 = scmp.ne.s32.totalorder %s80, %s81
      %p90 = scmp.eq.s32.totalorder %s33, 0
      %p91 = por %p89, %p90
      %p92 = scmp.ne.s32.totalorder %s80, %s81
      %p93 = scmp.eq.s32.totalorder %s34, 3
      %p94 = por %p92, %p93
      %p96 = scmp.ne.s32.totalorder %s81, %s95
      %p97 = scmp.eq.s32.totalorder %s34, 0
      %p98 = por %p96, %p97
      %s100 = sadd.s32 %s99, 1
      %p103 = scmp.eq.s32.totalorder %s28, 3
      %p104 = scmp.ne.s32.totalorder %s99, %s101
      %p105 = scmp.eq.s32.totalorder %s28, 0
      %p106 = por %p104, %p105
      %p107 = scmp.ne.s32.totalorder %s99, %s101
      %p108 = scmp.eq.s32.totalorder %s33, 3
      %p109 = por %p107, %p108
      %p110 = scmp.ne.s32.totalorder %s101, %s102
      %p111 = scmp.eq.s32.totalorder %s33, 0
      %p112 = por %p110, %p111
      %p113 = scmp.ne.s32.totalorder %s101, %s102
      %p114 = scmp.eq.s32.totalorder %s34, 3
      %p115 = por %p113, %p114
      %p117 = scmp.ne.s32.totalorder %s102, %s116
      %p118 = scmp.eq.s32.totalorder %s34, 0
      %p119 = por %p117, %p118
      %s121 = sadd.s32 %s120, 1
      %p124 = scmp.eq.s32.totalorder %s28, 3
      %p125 = scmp.ne.s32.totalorder %s120, %s122
      %p126 = scmp.eq.s32.totalorder %s28, 0
      %p127 = por %p125, %p126
      %p128 = scmp.ne.s32.totalorder %s120, %s122
      %p129 = scmp.eq.s32.totalorder %s33, 3
      %p130 = por %p128, %p129
      %p131 = scmp.ne.s32.totalorder %s122, %s123
      %p132 = scmp.eq.s32.totalorder %s33, 0
      %p133 = por %p131, %p132
      %p134 = scmp.ne.s32.totalorder %s122, %s123
      %p135 = scmp.eq.s32.totalorder %s34, 3
      %p136 = por %p134, %p135
      %p138 = scmp.ne.s32.totalorder %s123, %s137
      %p139 = scmp.eq.s32.totalorder %s34, 0
      %p140 = por %p138, %p139
      %s142 = sadd.s32 %s141, 1
      %p145 = scmp.eq.s32.totalorder %s28, 3
      %p146 = scmp.ne.s32.totalorder %s141, %s143
      %p147 = scmp.eq.s32.totalorder %s28, 0
      %p148 = por %p146, %p147
      %p149 = scmp.ne.s32.totalorder %s141, %s143
      %p150 = scmp.eq.s32.totalorder %s33, 3
      %p151 = por %p149, %p150
      %p152 = scmp.ne.s32.totalorder %s143, %s144
      %p153 = scmp.eq.s32.totalorder %s33, 0
      %p154 = por %p152, %p153
      %p155 = scmp.ne.s32.totalorder %s143, %s144
      %p156 = scmp.eq.s32.totalorder %s34, 3
      %p157 = por %p155, %p156
      %p159 = scmp.ne.s32.totalorder %s144, %s158
      %p160 = scmp.eq.s32.totalorder %s34, 0
      %p161 = por %p159, %p160
      %s162 = smul.u32 %s35, 2
      %s163 = sadd.s32 %s162, %s36
      %s164 = smul.u32 %s47, 2
      %s165 = sadd.s32 %s164, %s43
      %s166 = ssub.s32 %s163, %s165
      %p167 = scmp.eq.s32.totalorder %s166, 0
      %s169 = sadd.s32 %s168, 1
      %s170 = scalar_select %p167, %s168, %s169
      %p173 = pneg %p167
      %p174 = scmp.eq.s32.totalorder %s28, 3
      %p175 = por %p173, %p174
      %p176 = scmp.ne.s32.totalorder %s168, %s171
      %p177 = scmp.eq.s32.totalorder %s28, 0
      %p178 = por %p176, %p177
      %p179 = scmp.ne.s32.totalorder %s168, %s171
      %p180 = scmp.eq.s32.totalorder %s33, 3
      %p181 = por %p179, %p180
      %p182 = scmp.ne.s32.totalorder %s171, %s172
      %p183 = scmp.eq.s32.totalorder %s33, 0
      %p184 = por %p182, %p183
      %p185 = scmp.ne.s32.totalorder %s171, %s172
      %p186 = scmp.eq.s32.totalorder %s34, 3
      %p187 = por %p185, %p186
      %p189 = scmp.ne.s32.totalorder %s172, %s188
      %p190 = scmp.eq.s32.totalorder %s34, 0
      %p191 = por %p189, %p190
      %s192 = ssub.s32 %s35, %s47
      %p193 = scmp.eq.s32.totalorder %s192, 0
      %s195 = sadd.s32 %s194, 1
      %s196 = scalar_select %p193, %s194, %s195
      %p199 = pneg %p193
      %p200 = scmp.eq.s32.totalorder %s28, 3
      %p201 = por %p199, %p200
      %p202 = scmp.ne.s32.totalorder %s194, %s197
      %p203 = scmp.eq.s32.totalorder %s28, 0
      %p204 = por %p202, %p203
      %p205 = scmp.ne.s32.totalorder %s194, %s197
      %p206 = scmp.eq.s32.totalorder %s33, 3
      %p207 = por %p205, %p206
      %p208 = scmp.ne.s32.totalorder %s197, %s198
      %p209 = scmp.eq.s32.totalorder %s33, 0
      %p210 = por %p208, %p209
      %p211 = scmp.ne.s32.totalorder %s197, %s198
      %p212 = scmp.eq.s32.totalorder %s34, 3
      %p213 = por %p211, %p212
      %p215 = scmp.ne.s32.totalorder %s198, %s214
      %p216 = scmp.eq.s32.totalorder %s34, 0
      %p217 = por %p215, %p216
      %s218 = ssub.s32 %s35, %s47
      %p219 = scmp.eq.s32.totalorder %s218, 0
      %s221 = sadd.s32 %s220, 1
      %s222 = scalar_select %p219, %s220, %s221
      %p225 = pneg %p219
      %p226 = scmp.eq.s32.totalorder %s28, 3
      %p227 = por %p225, %p226
      %p228 = scmp.ne.s32.totalorder %s220, %s223
      %p229 = scmp.eq.s32.totalorder %s28, 0
      %p230 = por %p228, %p229
      %p231 = scmp.ne.s32.totalorder %s220, %s223
      %p232 = scmp.eq.s32.totalorder %s33, 3
      %p233 = por %p231, %p232
      %p234 = scmp.ne.s32.totalorder %s223, %s224
      %p235 = scmp.eq.s32.totalorder %s33, 0
      %p236 = por %p234, %p235
      %p237 = scmp.ne.s32.totalorder %s223, %s224
      %p238 = scmp.eq.s32.totalorder %s34, 3
      %p239 = por %p237, %p238
      %p241 = scmp.ne.s32.totalorder %s224, %s240
      %p242 = scmp.eq.s32.totalorder %s34, 0
      %p243 = por %p241, %p242
      %p244 = scmp.le.s32.totalorder 1, %s28
      %p245 = scmp.lt.s32.totalorder %s28, 5
      %p246 = pnand %p244, %p245
      %p247 = pneg %p246
      // Predicated region
      $region9: #{tpu_custom_call.1} parent=5 // pred_check
        _
      $region10: #{tpu_custom_call.1} parent=5 // pred_check_branch
        %249 = sbr.rel (%p246) target = $region12
      $region11: #{tpu_custom_call.1} parent=5 // pred_region
        %s250 = ssub.s32 %s28, 1
        // Predicated region
        $region13: #{tpu_custom_call.1} parent=11 // pred_check
          %p251 = pneg %p91
        $region14: #{tpu_custom_call.1} parent=11 // pred_check_branch
          %253 = sbr.rel (%p251) target = $region16
        $region15: #{tpu_custom_call.1} parent=11 // pred_region
          %s255 = ssub.s32 256, 256
          %256 = vsyncadd [#allocation6], %s255
          %s257 = sshll.u32 [#allocation5], 4
          %s258 = int_to_ptr.vmem [resolvable:$true] %s257
          %263 = dma.hbm_to_vmem [thread:$0]  %s1, 256, %s258, [#allocation6], 64, 64, 4
        $region16: #{tpu_custom_call.1} parent=11 // pred_fallthru
          _
        // Predicated region
        $region17: #{tpu_custom_call.1} parent=11 // pred_check
          %p264 = pneg %p112
        $region18: #{tpu_custom_call.1} parent=11 // pred_check_branch
          %266 = sbr.rel (%p264) target = $region20
        $region19: #{tpu_custom_call.1} parent=11 // pred_region
          %s268 = ssub.s32 512, 512
          %269 = vsyncadd [#allocation6], %s268
          %s270 = sshll.u32 [#allocation7], 4
          %s271 = int_to_ptr.vmem [resolvable:$true] %s270
          %276 = dma.hbm_to_vmem [thread:$0]  %s2, 512, %s271, [#allocation6], 64, 64, 4
        $region20: #{tpu_custom_call.1} parent=11 // pred_fallthru
          _
        // Predicated region
        $region21: #{tpu_custom_call.1} parent=11 // pred_check
          %p277 = pneg %p133
        $region22: #{tpu_custom_call.1} parent=11 // pred_check_branch
          %279 = sbr.rel (%p277) target = $region24
        $region23: #{tpu_custom_call.1} parent=11 // pred_region
          %s281 = ssub.s32 256, 256
          %282 = vsyncadd [#allocation9], %s281
          %s283 = sshll.u32 [#allocation8], 4
          %s284 = int_to_ptr.vmem [resolvable:$true] %s283
          %289 = dma.hbm_to_vmem [thread:$0]  %s3, 256, %s284, [#allocation9], 64, 64, 4
        $region24: #{tpu_custom_call.1} parent=11 // pred_fallthru
          _
        // Predicated region
        $region25: #{tpu_custom_call.1} parent=11 // pred_check
          %p290 = pneg %p154
        $region26: #{tpu_custom_call.1} parent=11 // pred_check_branch
          %292 = sbr.rel (%p290) target = $region28
        $region27: #{tpu_custom_call.1} parent=11 // pred_region
          %s294 = ssub.s32 512, 512
          %295 = vsyncadd [#allocation9], %s294
          %s296 = sshll.u32 [#allocation10], 4
          %s297 = int_to_ptr.vmem [resolvable:$true] %s296
          %302 = dma.hbm_to_vmem [thread:$0]  %s4, 512, %s297, [#allocation9], 64, 64, 4
        $region28: #{tpu_custom_call.1} parent=11 // pred_fallthru
          _
      $region12: #{tpu_custom_call.1} parent=5 // pred_fallthru
        _
      %p303 = scmp.lt.s32.totalorder %s28, 4
      // Predicated region
      $region29: #{tpu_custom_call.1} parent=5 // pred_check
        %p304 = pneg %p303
      $region30: #{tpu_custom_call.1} parent=5 // pred_check_branch
        %306 = sbr.rel (%p304) target = $region32
      $region31: #{tpu_custom_call.1} parent=5 // pred_region
        // Predicated region
        $region33: #{tpu_custom_call.1} parent=31 // pred_check
          %p307 = pneg %p64
        $region34: #{tpu_custom_call.1} parent=31 // pred_check_branch
          %309 = sbr.rel (%p307) target = $region36
        $region35: #{tpu_custom_call.1} parent=31 // pred_region
          %s310 = sand.u32 %s54, 1
          %s311 = scalar_lea.sflag [#allocation3], %s310
          %s312 = sand.u32 %s54, 1
          %s313 = smul.addr %s312, 64
          %s314 = scalar_lea.vmem [#allocation2], %s313
          %s315 = smul.u32 %s35, 2
          %s316 = sadd.s32 %s315, %s36
          %s317 = smul.u32 16, %s316
          %s319 = ssub.s32 1024, 1024
          %320 = vsyncadd %s311, %s319
          %s321 = smul.addr %s317, 64
          %s322 = scalar_lea.hbm %s0, %s321
          %s323 = sshll.u32 %s314, 4
          %s324 = int_to_ptr.vmem [resolvable:$true] %s323
          %329 = dma.hbm_to_vmem [thread:$0]  %s322, 1024, %s324, %s311, 64, 64, 4
        $region36: #{tpu_custom_call.1} parent=31 // pred_fallthru
          _
        // Predicated region
        $region37: #{tpu_custom_call.1} parent=31 // pred_check
          %p330 = pneg %p178
        $region38: #{tpu_custom_call.1} parent=31 // pred_check_branch
          %332 = sbr.rel (%p330) target = $region40
        $region39: #{tpu_custom_call.1} parent=31 // pred_region
          %s333 = sand.u32 %s168, 1
          %s334 = scalar_lea.sflag [#allocation12], %s333
          %s335 = sand.u32 %s168, 1
          %s336 = smul.addr %s335, 128
          %s337 = scalar_lea.vmem [#allocation11], %s336
          %s338 = smul.u32 %s35, 2
          %s339 = sadd.s32 %s338, %s36
          %s340 = smul.u32 16, %s339
          %s342 = ssub.s32 2048, 2048
          %343 = vsyncadd %s334, %s342
          %s344 = smul.addr %s340, 128
          %s345 = scalar_lea.hbm %s5, %s344
          %s346 = sshll.u32 %s337, 4
          %s347 = int_to_ptr.vmem [resolvable:$true] %s346
          %352 = dma.hbm_to_vmem [thread:$0]  %s345, 2048, %s347, %s334, 128, 128, 8
        $region40: #{tpu_custom_call.1} parent=31 // pred_fallthru
          _
      $region32: #{tpu_custom_call.1} parent=5 // pred_fallthru
        _
      %p353 = scmp.le.s32.totalorder 1, %s28
      %p354 = scmp.lt.s32.totalorder %s28, 5
      %p355 = pnand %p353, %p354
      %p356 = pneg %p355
      // Predicated region
      $region41: #{tpu_custom_call.1} parent=5 // pred_check
        _
      $region42: #{tpu_custom_call.1} parent=5 // pred_check_branch
        %358 = sbr.rel (%p355) target = $region44
      $region43: #{tpu_custom_call.1} parent=5 // pred_region
        %s359 = ssub.s32 %s28, 1
        %s360 = sand.u32 %s57, 1
        %s361 = scalar_lea.sflag [#allocation3], %s360
        %s362 = sand.u32 %s57, 1
        %s363 = smul.addr %s362, 64
        %s364 = scalar_lea.vmem [#allocation2], %s363
        // Predicated region
        $region45: #{tpu_custom_call.1} parent=43 // pred_check
          %p365 = pneg %p70
        $region46: #{tpu_custom_call.1} parent=43 // pred_check_branch
          %367 = sbr.rel (%p365) target = $region48
        $region47: #{tpu_custom_call.1} parent=43 // pred_region
          %368 = dma.done %s361, 1024
        $region48: #{tpu_custom_call.1} parent=43 // pred_fallthru
          _
        // Predicated region
        $region49: #{tpu_custom_call.1} parent=43 // pred_check
          %p369 = pneg %p91
        $region50: #{tpu_custom_call.1} parent=43 // pred_check_branch
          %371 = sbr.rel (%p369) target = $region52
        $region51: #{tpu_custom_call.1} parent=43 // pred_region
          %372 = dma.done [#allocation6], 256
        $region52: #{tpu_custom_call.1} parent=43 // pred_fallthru
          _
        // Predicated region
        $region53: #{tpu_custom_call.1} parent=43 // pred_check
          %p373 = pneg %p112
        $region54: #{tpu_custom_call.1} parent=43 // pred_check_branch
          %375 = sbr.rel (%p373) target = $region56
        $region55: #{tpu_custom_call.1} parent=43 // pred_region
          %376 = dma.done [#allocation6], 512
        $region56: #{tpu_custom_call.1} parent=43 // pred_fallthru
          _
        // Predicated region
        $region57: #{tpu_custom_call.1} parent=43 // pred_check
          %p377 = pneg %p133
        $region58: #{tpu_custom_call.1} parent=43 // pred_check_branch
          %379 = sbr.rel (%p377) target = $region60
        $region59: #{tpu_custom_call.1} parent=43 // pred_region
          %380 = dma.done [#allocation9], 256
        $region60: #{tpu_custom_call.1} parent=43 // pred_fallthru
          _
        // Predicated region
        $region61: #{tpu_custom_call.1} parent=43 // pred_check
          %p381 = pneg %p154
        $region62: #{tpu_custom_call.1} parent=43 // pred_check_branch
          %383 = sbr.rel (%p381) target = $region64
        $region63: #{tpu_custom_call.1} parent=43 // pred_region
          %384 = dma.done [#allocation9], 512
        $region64: #{tpu_custom_call.1} parent=43 // pred_fallthru
          _
        %s385 = sand.u32 %s171, 1
        %s386 = scalar_lea.sflag [#allocation12], %s385
        %s387 = sand.u32 %s171, 1
        %s388 = smul.addr %s387, 128
        %s389 = scalar_lea.vmem [#allocation11], %s388
        // Predicated region
        $region65: #{tpu_custom_call.1} parent=43 // pred_check
          %p390 = pneg %p184
        $region66: #{tpu_custom_call.1} parent=43 // pred_check_branch
          %392 = sbr.rel (%p390) target = $region68
        $region67: #{tpu_custom_call.1} parent=43 // pred_region
          %393 = dma.done %s386, 2048
        $region68: #{tpu_custom_call.1} parent=43 // pred_fallthru
          _
        %s394 = sand.u32 %s57, 1
        %s395 = scalar_lea.sflag [#allocation3], %s394
        %s396 = sand.u32 %s57, 1
        %s397 = smul.addr %s396, 64
        %s398 = scalar_lea.vmem [#allocation2], %s397
        %p399 = pneg %p70
        %p400 = pneg %p67
        %p401 = pneg %p91
        %p402 = pneg %p88
        %p403 = pneg %p112
        %p404 = pneg %p109
        %p405 = pneg %p133
        %p406 = pneg %p130
        %p407 = pneg %p154
        %p408 = pneg %p151
        %s409 = sand.u32 %s171, 1
        %s410 = scalar_lea.sflag [#allocation12], %s409
        %s411 = sand.u32 %s171, 1
        %s412 = smul.addr %s411, 128
        %s413 = scalar_lea.vmem [#allocation11], %s412
        %p414 = pneg %p184
        %p415 = pneg %p181
        %p416 = pneg %p210
        %p417 = pneg %p207
        %s418 = sand.u32 %s197, 1
        %s419 = scalar_lea.sflag [#allocation4], %s418
        %s420 = sand.u32 %s197, 1
        %s421 = scalar_lea.vmem [#allocation13], %s420
        %p422 = pneg %p236
        %p423 = pneg %p233
        %s424 = sand.u32 %s223, 1
        %s425 = scalar_lea.sflag [#allocation15], %s424
        %s426 = sand.u32 %s223, 1
        %s427 = scalar_lea.vmem [#allocation14], %s426
        %s428 = smul.u32 %s37, 2
        %s429 = sadd.s32 %s428, %s38
        %s430 = smul.u32 16, %s429
        %s431 = smul.u32 %s37, 2
        %s432 = sadd.s32 %s431, %s38
        %s433 = smul.u32 16, %s432
        %p435 = scmp.eq.s32.totalorder %s38, 0
        // Predicated region
        $region69: #{tpu_custom_call.1} parent=43 // pred_check
          %p436 = pneg %p435
        $region70: #{tpu_custom_call.1} parent=43 // pred_check_branch
          %438 = sbr.rel (%p436) target = $region72
        $region71: #{tpu_custom_call.1} parent=43 // pred_region
          %439 = vst [vmem:[%s421] sm:$0x1] 0.0
          %440 = vst [vmem:[%s427] sm:$0x1] 0.0
        $region72: #{tpu_custom_call.1} parent=43 // pred_fallthru
          _
        %v441 = vld [vmem:[%s364] sm:$0xf]
        %v442 = vld [vmem:[%s364 + $0x4] sm:$0xf]
        %v443 = vld [vmem:[%s364 + $0x8] sm:$0xf]
        %v444 = vld [vmem:[%s364 + $0xc] sm:$0xf]
        %v445 = vld [vmem:[%s364 + $0x10] sm:$0xf]
        %v446 = vld [vmem:[%s364 + $0x14] sm:$0xf]
        %v447 = vld [vmem:[%s364 + $0x18] sm:$0xf]
        %v448 = vld [vmem:[%s364 + $0x1c] sm:$0xf]
        %v449 = vld [vmem:[%s364 + $0x20] sm:$0xf]
        %v450 = vld [vmem:[%s364 + $0x24] sm:$0xf]
        %v451 = vld [vmem:[%s364 + $0x28] sm:$0xf]
        %v452 = vld [vmem:[%s364 + $0x2c] sm:$0xf]
        %v453 = vld [vmem:[%s364 + $0x30] sm:$0xf]
        %v454 = vld [vmem:[%s364 + $0x34] sm:$0xf]
        %v455 = vld [vmem:[%s364 + $0x38] sm:$0xf]
        %v456 = vld [vmem:[%s364 + $0x3c] sm:$0xf]
        %v457 = vld [vmem:[#allocation5] sm:$0xf]
        %v458 = vld [vmem:[#allocation5 + $0x4] sm:$0xf]
        %v459 = vld [vmem:[#allocation5 + $0x8] sm:$0xf]
        %v460 = vld [vmem:[#allocation5 + $0xc] sm:$0xf]
        %v477 = vunpack.c.l.b16 %v441
        %v478 = vunpack.c.l.b16 %v442
        %v479 = vunpack.c.l.b16 %v443
        %v480 = vunpack.c.l.b16 %v444
        %v481 = vunpack.c.l.b16 %v445
        %v482 = vunpack.c.l.b16 %v446
        %v483 = vunpack.c.l.b16 %v447
        %v484 = vunpack.c.l.b16 %v448
        %v485 = vunpack.c.l.b16 %v449
        %v486 = vunpack.c.l.b16 %v450
        %v487 = vunpack.c.l.b16 %v451
        %v488 = vunpack.c.l.b16 %v452
        %v489 = vunpack.c.l.b16 %v453
        %v490 = vunpack.c.l.b16 %v454
        %v491 = vunpack.c.l.b16 %v455
        %v492 = vunpack.c.l.b16 %v456
        %v493 = vpack.c.b16 %v478, %v477
        %v494 = vpack.c.b16 %v480, %v479
        %v495 = vpack.c.b16 %v482, %v481
        %v496 = vpack.c.b16 %v484, %v483
        %v497 = vpack.c.b16 %v486, %v485
        %v498 = vpack.c.b16 %v488, %v487
        %v499 = vpack.c.b16 %v490, %v489
        %v500 = vpack.c.b16 %v492, %v491
        %v505 = vunpack.c.l.b16 %v457
        %v506 = vunpack.c.l.b16 %v458
        %v507 = vunpack.c.l.b16 %v459
        %v508 = vunpack.c.l.b16 %v460
        %v509 = vpack.c.b16 %v506, %v505
        %v510 = vpack.c.b16 %v508, %v507
        %vm513 = vcmask 261120
        %v515 = vsel %vm513, %v493, 0
        %v518 = vsel %vm513, %v494, 0
        %v521 = vsel %vm513, %v495, 0
        %v524 = vsel %vm513, %v496, 0
        %v527 = vsel %vm513, %v497, 0
        %v530 = vsel %vm513, %v498, 0
        %v533 = vsel %vm513, %v499, 0
        %v536 = vsel %vm513, %v500, 0
        %538 = vmatprep.subr.bf16.mxu0 0
        %539 = vmatpush1.bf16.msra.mxu0 %v509
        %540 = vmatprep.subr.bf16.mxu0 0
        %541 = vmatpush1.bf16.msra.mxu0 %v510
        %542 = vmatprep.subr.bf16.mxu0 0
        %543 = vmatpush1.bf16.msra.mxu0 0
        %544 = vmatprep.subr.bf16.mxu0 0
        %545 = vmatpush1.bf16.msra.mxu0 0
        %546 = vmatprep.subr.bf16.mxu0 0
        %547 = vmatpush1.bf16.msra.mxu0 0
        %548 = vmatprep.subr.bf16.mxu0 0
        %549 = vmatpush1.bf16.msra.mxu0 0
        %550 = vmatprep.subr.bf16.mxu0 0
        %551 = vmatpush1.bf16.msra.mxu0 0
        %552 = vmatprep.subr.bf16.mxu0 0
        %553 = vmatpush1.bf16.msra.mxu0 0
        %554 = vmatprep.subr.bf16.mxu0 0
        %555 = vmatpush1.bf16.msra.mxu0 0
        %556 = vmatprep.subr.bf16.mxu0 0
        %557 = vmatpush1.bf16.msra.mxu0 0
        %558 = vmatprep.subr.bf16.mxu0 0
        %559 = vmatpush1.bf16.msra.mxu0 0
        %560 = vmatprep.subr.bf16.mxu0 0
        %561 = vmatpush1.bf16.msra.mxu0 0
        %562 = vmatprep.subr.bf16.mxu0 0
        %563 = vmatpush1.bf16.msra.mxu0 0
        %564 = vmatprep.subr.bf16.mxu0 0
        %565 = vmatpush1.bf16.msra.mxu0 0
        %566 = vmatprep.subr.bf16.mxu0 0
        %567 = vmatpush1.bf16.msra.mxu0 0
        %568 = vmatprep.subr.bf16.mxu0 0
        %569 = vmatpush1.bf16.msra.mxu0 0
        %570 = vmatprep.mubr.bf16.mxu0 0
        %571 = vmatmul.mubr.bf16.gmra.mrb[0].mxu0 %v515
        %v572 = vpop.f32.mrb[0].mxu0
        %v573 = vadd.f32 0.0, %v572
        %v574 = vpop.f32.mrb[0].mxu0
        %v575 = vpop.f32.mrb[0].mxu0
        %v576 = vadd.f32 0.0, %v575
        %v577 = vpop.f32.mrb[0].mxu0
        %578 = vmatprep.mubr.bf16.mxu0 0
        %579 = vmatmul.mubr.bf16.gmra.mrb[0].mxu0 %v518
        %v580 = vpop.f32.mrb[0].mxu0
        %v581 = vadd.f32 0.0, %v580
        %v582 = vpop.f32.mrb[0].mxu0
        %v583 = vpop.f32.mrb[0].mxu0
        %v584 = vadd.f32 0.0, %v583
        %v585 = vpop.f32.mrb[0].mxu0
        %586 = vmatprep.mubr.bf16.mxu0 0
        %587 = vmatmul.mubr.bf16.gmra.mrb[0].mxu0 %v521
        %v588 = vpop.f32.mrb[0].mxu0
        %v589 = vadd.f32 0.0, %v588
        %v590 = vpop.f32.mrb[0].mxu0
        %v591 = vpop.f32.mrb[0].mxu0
        %v592 = vadd.f32 0.0, %v591
        %v593 = vpop.f32.mrb[0].mxu0
        %594 = vmatprep.mubr.bf16.mxu0 0
        %595 = vmatmul.mubr.bf16.gmra.mrb[0].mxu0 %v524
        %v596 = vpop.f32.mrb[0].mxu0
        %v597 = vadd.f32 0.0, %v596
        %v598 = vpop.f32.mrb[0].mxu0
        %v599 = vpop.f32.mrb[0].mxu0
        %v600 = vadd.f32 0.0, %v599
        %v601 = vpop.f32.mrb[0].mxu0
        %602 = vmatprep.mubr.bf16.mxu0 0
        %603 = vmatmul.mubr.bf16.gmra.mrb[0].mxu0 %v527
        %v604 = vpop.f32.mrb[0].mxu0
        %v605 = vadd.f32 0.0, %v604
        %v606 = vpop.f32.mrb[0].mxu0
        %v607 = vpop.f32.mrb[0].mxu0
        %v608 = vadd.f32 0.0, %v607
        %v609 = vpop.f32.mrb[0].mxu0
        %610 = vmatprep.mubr.bf16.mxu0 0
        %611 = vmatmul.mubr.bf16.gmra.mrb[0].mxu0 %v530
        %v612 = vpop.f32.mrb[0].mxu0
        %v613 = vadd.f32 0.0, %v612
        %v614 = vpop.f32.mrb[0].mxu0
        %v615 = vpop.f32.mrb[0].mxu0
        %v616 = vadd.f32 0.0, %v615
        %v617 = vpop.f32.mrb[0].mxu0
        %618 = vmatprep.mubr.bf16.mxu0 0
        %619 = vmatmul.mubr.bf16.gmra.mrb[0].mxu0 %v533
        %v620 = vpop.f32.mrb[0].mxu0
        %v621 = vadd.f32 0.0, %v620
        %v622 = vpop.f32.mrb[0].mxu0
        %v623 = vpop.f32.mrb[0].mxu0
        %v624 = vadd.f32 0.0, %v623
        %v625 = vpop.f32.mrb[0].mxu0
        %626 = vmatprep.mubr.bf16.mxu0 0
        %627 = vmatmul.mubr.bf16.gmra.mrb[0].mxu0 %v536
        %v628 = vpop.f32.mrb[0].mxu0
        %v629 = vadd.f32 0.0, %v628
        %v630 = vpop.f32.mrb[0].mxu0
        %v631 = vpop.f32.mrb[0].mxu0
        %v632 = vadd.f32 0.0, %v631
        %v633 = vpop.f32.mrb[0].mxu0
        %634 = vdwg.mxu0
        %v635 = vmax.f32 %v573, 0.0
        %v636 = vmax.f32 %v576, 0.0
        %v637 = vmax.f32 %v581, 0.0
        %v638 = vmax.f32 %v584, 0.0
        %v639 = vmax.f32 %v589, 0.0
        %v640 = vmax.f32 %v592, 0.0
        %v641 = vmax.f32 %v597, 0.0
        %v642 = vmax.f32 %v600, 0.0
        %v643 = vmax.f32 %v605, 0.0
        %v644 = vmax.f32 %v608, 0.0
        %v645 = vmax.f32 %v613, 0.0
        %v646 = vmax.f32 %v616, 0.0
        %v647 = vmax.f32 %v621, 0.0
        %v648 = vmax.f32 %v624, 0.0
        %v649 = vmax.f32 %v629, 0.0
        %v650 = vmax.f32 %v632, 0.0
        %v651 = vpack.c.bf16 %v636, %v635
        %v652 = vpack.c.bf16 %v638, %v637
        %v653 = vpack.c.bf16 %v640, %v639
        %v654 = vpack.c.bf16 %v642, %v641
        %v655 = vpack.c.bf16 %v644, %v643
        %v656 = vpack.c.bf16 %v646, %v645
        %v657 = vpack.c.bf16 %v648, %v647
        %v658 = vpack.c.bf16 %v650, %v649
        %v659 = vld [vmem:[#allocation7] sm:$0xf]
        %v660 = vld [vmem:[#allocation7 + $0x4] sm:$0xf]
        %v661 = vld [vmem:[#allocation7 + $0x8] sm:$0xf]
        %v662 = vld [vmem:[#allocation7 + $0xc] sm:$0xf]
        %v663 = vld [vmem:[#allocation7 + $0x10] sm:$0xf]
        %v664 = vld [vmem:[#allocation7 + $0x14] sm:$0xf]
        %v665 = vld [vmem:[#allocation7 + $0x18] sm:$0xf]
        %v666 = vld [vmem:[#allocation7 + $0x1c] sm:$0xf]
        %v675 = vunpack.c.l.b16 %v659
        %v676 = vunpack.c.l.b16 %v660
        %v677 = vunpack.c.l.b16 %v661
        %v678 = vunpack.c.l.b16 %v662
        %v679 = vunpack.c.l.b16 %v663
        %v680 = vunpack.c.l.b16 %v664
        %v681 = vunpack.c.l.b16 %v665
        %v682 = vunpack.c.l.b16 %v666
        %v683 = vpack.c.b16 %v676, %v675
        %v684 = vpack.c.b16 %v678, %v677
        %v685 = vpack.c.b16 %v680, %v679
        %v686 = vpack.c.b16 %v682, %v681
        %vm691 = vcmask 523264
        %v693 = vsel %vm691, %v651, 0
        %v696 = vsel %vm691, %v652, 0
        %v699 = vsel %vm691, %v653, 0
        %v702 = vsel %vm691, %v654, 0
        %v705 = vsel %vm691, %v655, 0
        %v708 = vsel %vm691, %v656, 0
        %v711 = vsel %vm691, %v657, 0
        %v714 = vsel %vm691, %v658, 0
        %716 = vmatprep.subr.bf16.mxu0 0
        %717 = vmatpush1.bf16.msra.mxu0 %v683
        %718 = vmatprep.subr.bf16.mxu0 0
        %719 = vmatpush1.bf16.msra.mxu0 %v684
        %720 = vmatprep.subr.bf16.mxu0 0
        %721 = vmatpush1.bf16.msra.mxu0 %v685
        %722 = vmatprep.subr.bf16.mxu0 0
        %723 = vmatpush1.bf16.msra.mxu0 %v686
        %724 = vmatprep.subr.bf16.mxu0 0
        %725 = vmatpush1.bf16.msra.mxu0 0
        %726 = vmatprep.subr.bf16.mxu0 0
        %727 = vmatpush1.bf16.msra.mxu0 0
        %728 = vmatprep.subr.bf16.mxu0 0
        %729 = vmatpush1.bf16.msra.mxu0 0
        %730 = vmatprep.subr.bf16.mxu0 0
        %731 = vmatpush1.bf16.msra.mxu0 0
        %732 = vmatprep.subr.bf16.mxu0 0
        %733 = vmatpush1.bf16.msra.mxu0 0
        %734 = vmatprep.subr.bf16.mxu0 0
        %735 = vmatpush1.bf16.msra.mxu0 0
        %736 = vmatprep.subr.bf16.mxu0 0
        %737 = vmatpush1.bf16.msra.mxu0 0
        %738 = vmatprep.subr.bf16.mxu0 0
        %739 = vmatpush1.bf16.msra.mxu0 0
        %740 = vmatprep.subr.bf16.mxu0 0
        %741 = vmatpush1.bf16.msra.mxu0 0
        %742 = vmatprep.subr.bf16.mxu0 0
        %743 = vmatpush1.bf16.msra.mxu0 0
        %744 = vmatprep.subr.bf16.mxu0 0
        %745 = vmatpush1.bf16.msra.mxu0 0
        %746 = vmatprep.subr.bf16.mxu0 0
        %747 = vmatpush1.bf16.msra.mxu0 0
        %748 = vmatprep.mubr.bf16.mxu0 0
        %749 = vmatmul.mubr.bf16.gmra.mrb[0].mxu0 %v693
        %v750 = vpop.f32.mrb[0].mxu0
        %v751 = vadd.f32 0.0, %v750
        %v752 = vpop.f32.mrb[0].mxu0
        %v753 = vpop.f32.mrb[0].mxu0
        %v754 = vadd.f32 0.0, %v753
        %v755 = vpop.f32.mrb[0].mxu0
        %756 = vmatprep.mubr.bf16.mxu0 0
        %757 = vmatmul.mubr.bf16.gmra.mrb[0].mxu0 %v696
        %v758 = vpop.f32.mrb[0].mxu0
        %v759 = vadd.f32 0.0, %v758
        %v760 = vpop.f32.mrb[0].mxu0
        %v761 = vpop.f32.mrb[0].mxu0
        %v762 = vadd.f32 0.0, %v761
        %v763 = vpop.f32.mrb[0].mxu0
        %764 = vmatprep.mubr.bf16.mxu0 0
        %765 = vmatmul.mubr.bf16.gmra.mrb[0].mxu0 %v699
        %v766 = vpop.f32.mrb[0].mxu0
        %v767 = vadd.f32 0.0, %v766
        %v768 = vpop.f32.mrb[0].mxu0
        %v769 = vpop.f32.mrb[0].mxu0
        %v770 = vadd.f32 0.0, %v769
        %v771 = vpop.f32.mrb[0].mxu0
        %772 = vmatprep.mubr.bf16.mxu0 0
        %773 = vmatmul.mubr.bf16.gmra.mrb[0].mxu0 %v702
        %v774 = vpop.f32.mrb[0].mxu0
        %v775 = vadd.f32 0.0, %v774
        %v776 = vpop.f32.mrb[0].mxu0
        %v777 = vpop.f32.mrb[0].mxu0
        %v778 = vadd.f32 0.0, %v777
        %v779 = vpop.f32.mrb[0].mxu0
        %780 = vmatprep.mubr.bf16.mxu0 0
        %781 = vmatmul.mubr.bf16.gmra.mrb[0].mxu0 %v705
        %v782 = vpop.f32.mrb[0].mxu0
        %v783 = vadd.f32 0.0, %v782
        %v784 = vpop.f32.mrb[0].mxu0
        %v785 = vpop.f32.mrb[0].mxu0
        %v786 = vadd.f32 0.0, %v785
        %v787 = vpop.f32.mrb[0].mxu0
        %788 = vmatprep.mubr.bf16.mxu0 0
        %789 = vmatmul.mubr.bf16.gmra.mrb[0].mxu0 %v708
        %v790 = vpop.f32.mrb[0].mxu0
        %v791 = vadd.f32 0.0, %v790
        %v792 = vpop.f32.mrb[0].mxu0
        %v793 = vpop.f32.mrb[0].mxu0
        %v794 = vadd.f32 0.0, %v793
        %v795 = vpop.f32.mrb[0].mxu0
        %796 = vmatprep.mubr.bf16.mxu0 0
        %797 = vmatmul.mubr.bf16.gmra.mrb[0].mxu0 %v711
        %v798 = vpop.f32.mrb[0].mxu0
        %v799 = vadd.f32 0.0, %v798
        %v800 = vpop.f32.mrb[0].mxu0
        %v801 = vpop.f32.mrb[0].mxu0
        %v802 = vadd.f32 0.0, %v801
        %v803 = vpop.f32.mrb[0].mxu0
        %804 = vmatprep.mubr.bf16.mxu0 0
        %805 = vmatmul.mubr.bf16.gmra.mrb[0].mxu0 %v714
        %v806 = vpop.f32.mrb[0].mxu0
        %v807 = vadd.f32 0.0, %v806
        %v808 = vpop.f32.mrb[0].mxu0
        %v809 = vpop.f32.mrb[0].mxu0
        %v810 = vadd.f32 0.0, %v809
        %v811 = vpop.f32.mrb[0].mxu0
        %812 = vdwg.mxu0
        %v813 = vld [vmem:[#allocation8] sm:$0xf]
        %v814 = vld [vmem:[#allocation8 + $0x4] sm:$0xf]
        %v815 = vld [vmem:[#allocation8 + $0x8] sm:$0xf]
        %v816 = vld [vmem:[#allocation8 + $0xc] sm:$0xf]
        %v821 = vunpack.c.l.b16 %v813
        %v822 = vunpack.c.l.b16 %v814
        %v823 = vunpack.c.l.b16 %v815
        %v824 = vunpack.c.l.b16 %v816
        %v825 = vpack.c.b16 %v822, %v821
        %v826 = vpack.c.b16 %v824, %v823
        %829 = vmatprep.subr.bf16.mxu0 0
        %830 = vmatpush1.bf16.msra.mxu0 %v825
        %831 = vmatprep.subr.bf16.mxu0 0
        %832 = vmatpush1.bf16.msra.mxu0 %v826
        %833 = vmatprep.subr.bf16.mxu0 0
        %834 = vmatpush1.bf16.msra.mxu0 0
        %835 = vmatprep.subr.bf16.mxu0 0
        %836 = vmatpush1.bf16.msra.mxu0 0
        %837 = vmatprep.subr.bf16.mxu0 0
        %838 = vmatpush1.bf16.msra.mxu0 0
        %839 = vmatprep.subr.bf16.mxu0 0
        %840 = vmatpush1.bf16.msra.mxu0 0
        %841 = vmatprep.subr.bf16.mxu0 0
        %842 = vmatpush1.bf16.msra.mxu0 0
        %843 = vmatprep.subr.bf16.mxu0 0
        %844 = vmatpush1.bf16.msra.mxu0 0
        %845 = vmatprep.subr.bf16.mxu0 0
        %846 = vmatpush1.bf16.msra.mxu0 0
        %847 = vmatprep.subr.bf16.mxu0 0
        %848 = vmatpush1.bf16.msra.mxu0 0
        %849 = vmatprep.subr.bf16.mxu0 0
        %850 = vmatpush1.bf16.msra.mxu0 0
        %851 = vmatprep.subr.bf16.mxu0 0
        %852 = vmatpush1.bf16.msra.mxu0 0
        %853 = vmatprep.subr.bf16.mxu0 0
        %854 = vmatpush1.bf16.msra.mxu0 0
        %855 = vmatprep.subr.bf16.mxu0 0
        %856 = vmatpush1.bf16.msra.mxu0 0
        %857 = vmatprep.subr.bf16.mxu0 0
        %858 = vmatpush1.bf16.msra.mxu0 0
        %859 = vmatprep.subr.bf16.mxu0 0
        %860 = vmatpush1.bf16.msra.mxu0 0
        %861 = vmatprep.mubr.bf16.mxu0 0
        %862 = vmatmul.mubr.bf16.gmra.mrb[0].mxu0 %v515
        %v863 = vpop.f32.mrb[0].mxu0
        %v864 = vadd.f32 0.0, %v863
        %v865 = vpop.f32.mrb[0].mxu0
        %v866 = vpop.f32.mrb[0].mxu0
        %v867 = vadd.f32 0.0, %v866
        %v868 = vpop.f32.mrb[0].mxu0
        %869 = vmatprep.mubr.bf16.mxu0 0
        %870 = vmatmul.mubr.bf16.gmra.mrb[0].mxu0 %v518
        %v871 = vpop.f32.mrb[0].mxu0
        %v872 = vadd.f32 0.0, %v871
        %v873 = vpop.f32.mrb[0].mxu0
        %v874 = vpop.f32.mrb[0].mxu0
        %v875 = vadd.f32 0.0, %v874
        %v876 = vpop.f32.mrb[0].mxu0
        %877 = vmatprep.mubr.bf16.mxu0 0
        %878 = vmatmul.mubr.bf16.gmra.mrb[0].mxu0 %v521
        %v879 = vpop.f32.mrb[0].mxu0
        %v880 = vadd.f32 0.0, %v879
        %v881 = vpop.f32.mrb[0].mxu0
        %v882 = vpop.f32.mrb[0].mxu0
        %v883 = vadd.f32 0.0, %v882
        %v884 = vpop.f32.mrb[0].mxu0
        %885 = vmatprep.mubr.bf16.mxu0 0
        %886 = vmatmul.mubr.bf16.gmra.mrb[0].mxu0 %v524
        %v887 = vpop.f32.mrb[0].mxu0
        %v888 = vadd.f32 0.0, %v887
        %v889 = vpop.f32.mrb[0].mxu0
        %v890 = vpop.f32.mrb[0].mxu0
        %v891 = vadd.f32 0.0, %v890
        %v892 = vpop.f32.mrb[0].mxu0
        %893 = vmatprep.mubr.bf16.mxu0 0
        %894 = vmatmul.mubr.bf16.gmra.mrb[0].mxu0 %v527
        %v895 = vpop.f32.mrb[0].mxu0
        %v896 = vadd.f32 0.0, %v895
        %v897 = vpop.f32.mrb[0].mxu0
        %v898 = vpop.f32.mrb[0].mxu0
        %v899 = vadd.f32 0.0, %v898
        %v900 = vpop.f32.mrb[0].mxu0
        %901 = vmatprep.mubr.bf16.mxu0 0
        %902 = vmatmul.mubr.bf16.gmra.mrb[0].mxu0 %v530
        %v903 = vpop.f32.mrb[0].mxu0
        %v904 = vadd.f32 0.0, %v903
        %v905 = vpop.f32.mrb[0].mxu0
        %v906 = vpop.f32.mrb[0].mxu0
        %v907 = vadd.f32 0.0, %v906
        %v908 = vpop.f32.mrb[0].mxu0
        %909 = vmatprep.mubr.bf16.mxu0 0
        %910 = vmatmul.mubr.bf16.gmra.mrb[0].mxu0 %v533
        %v911 = vpop.f32.mrb[0].mxu0
        %v912 = vadd.f32 0.0, %v911
        %v913 = vpop.f32.mrb[0].mxu0
        %v914 = vpop.f32.mrb[0].mxu0
        %v915 = vadd.f32 0.0, %v914
        %v916 = vpop.f32.mrb[0].mxu0
        %917 = vmatprep.mubr.bf16.mxu0 0
        %918 = vmatmul.mubr.bf16.gmra.mrb[0].mxu0 %v536
        %v919 = vpop.f32.mrb[0].mxu0
        %v920 = vadd.f32 0.0, %v919
        %v921 = vpop.f32.mrb[0].mxu0
        %v922 = vpop.f32.mrb[0].mxu0
        %v923 = vadd.f32 0.0, %v922
        %v924 = vpop.f32.mrb[0].mxu0
        %925 = vdwg.mxu0
        %v926 = vmax.f32 %v864, 0.0
        %v927 = vmax.f32 %v867, 0.0
        %v928 = vmax.f32 %v872, 0.0
        %v929 = vmax.f32 %v875, 0.0
        %v930 = vmax.f32 %v880, 0.0
        %v931 = vmax.f32 %v883, 0.0
        %v932 = vmax.f32 %v888, 0.0
        %v933 = vmax.f32 %v891, 0.0
        %v934 = vmax.f32 %v896, 0.0
        %v935 = vmax.f32 %v899, 0.0
        %v936 = vmax.f32 %v904, 0.0
        %v937 = vmax.f32 %v907, 0.0
        %v938 = vmax.f32 %v912, 0.0
        %v939 = vmax.f32 %v915, 0.0
        %v940 = vmax.f32 %v920, 0.0
        %v941 = vmax.f32 %v923, 0.0
        %v942 = vpack.c.bf16 %v927, %v926
        %v943 = vpack.c.bf16 %v929, %v928
        %v944 = vpack.c.bf16 %v931, %v930
        %v945 = vpack.c.bf16 %v933, %v932
        %v946 = vpack.c.bf16 %v935, %v934
        %v947 = vpack.c.bf16 %v937, %v936
        %v948 = vpack.c.bf16 %v939, %v938
        %v949 = vpack.c.bf16 %v941, %v940
        %v950 = vld [vmem:[#allocation10] sm:$0xf]
        %v951 = vld [vmem:[#allocation10 + $0x4] sm:$0xf]
        %v952 = vld [vmem:[#allocation10 + $0x8] sm:$0xf]
        %v953 = vld [vmem:[#allocation10 + $0xc] sm:$0xf]
        %v954 = vld [vmem:[#allocation10 + $0x10] sm:$0xf]
        %v955 = vld [vmem:[#allocation10 + $0x14] sm:$0xf]
        %v956 = vld [vmem:[#allocation10 + $0x18] sm:$0xf]
        %v957 = vld [vmem:[#allocation10 + $0x1c] sm:$0xf]
        %v966 = vunpack.c.l.b16 %v950
        %v967 = vunpack.c.l.b16 %v951
        %v968 = vunpack.c.l.b16 %v952
        %v969 = vunpack.c.l.b16 %v953
        %v970 = vunpack.c.l.b16 %v954
        %v971 = vunpack.c.l.b16 %v955
        %v972 = vunpack.c.l.b16 %v956
        %v973 = vunpack.c.l.b16 %v957
        %v974 = vpack.c.b16 %v967, %v966
        %v975 = vpack.c.b16 %v969, %v968
        %v976 = vpack.c.b16 %v971, %v970
        %v977 = vpack.c.b16 %v973, %v972
        %v983 = vsel %vm691, %v942, 0
        %v986 = vsel %vm691, %v943, 0
        %v989 = vsel %vm691, %v944, 0
        %v992 = vsel %vm691, %v945, 0
        %v995 = vsel %vm691, %v946, 0
        %v998 = vsel %vm691, %v947, 0
        %v1001 = vsel %vm691, %v948, 0
        %v1004 = vsel %vm691, %v949, 0
        %1006 = vmatprep.subr.bf16.mxu0 0
        %1007 = vmatpush1.bf16.msra.mxu0 %v974
        %1008 = vmatprep.subr.bf16.mxu0 0
        %1009 = vmatpush1.bf16.msra.mxu0 %v975
        %1010 = vmatprep.subr.bf16.mxu0 0
        %1011 = vmatpush1.bf16.msra.mxu0 %v976
        %1012 = vmatprep.subr.bf16.mxu0 0
        %1013 = vmatpush1.bf16.msra.mxu0 %v977
        %1014 = vmatprep.subr.bf16.mxu0 0
        %1015 = vmatpush1.bf16.msra.mxu0 0
        %1016 = vmatprep.subr.bf16.mxu0 0
        %1017 = vmatpush1.bf16.msra.mxu0 0
        %1018 = vmatprep.subr.bf16.mxu0 0
        %1019 = vmatpush1.bf16.msra.mxu0 0
        %1020 = vmatprep.subr.bf16.mxu0 0
        %1021 = vmatpush1.bf16.msra.mxu0 0
        %1022 = vmatprep.subr.bf16.mxu0 0
        %1023 = vmatpush1.bf16.msra.mxu0 0
        %1024 = vmatprep.subr.bf16.mxu0 0
        %1025 = vmatpush1.bf16.msra.mxu0 0
        %1026 = vmatprep.subr.bf16.mxu0 0
        %1027 = vmatpush1.bf16.msra.mxu0 0
        %1028 = vmatprep.subr.bf16.mxu0 0
        %1029 = vmatpush1.bf16.msra.mxu0 0
        %1030 = vmatprep.subr.bf16.mxu0 0
        %1031 = vmatpush1.bf16.msra.mxu0 0
        %1032 = vmatprep.subr.bf16.mxu0 0
        %1033 = vmatpush1.bf16.msra.mxu0 0
        %1034 = vmatprep.subr.bf16.mxu0 0
        %1035 = vmatpush1.bf16.msra.mxu0 0
        %1036 = vmatprep.subr.bf16.mxu0 0
        %1037 = vmatpush1.bf16.msra.mxu0 0
        %1038 = vmatprep.mubr.bf16.mxu0 0
        %1039 = vmatmul.mubr.bf16.gmra.mrb[0].mxu0 %v983
        %v1040 = vpop.f32.mrb[0].mxu0
        %v1041 = vadd.f32 0.0, %v1040
        %v1042 = vpop.f32.mrb[0].mxu0
        %v1043 = vpop.f32.mrb[0].mxu0
        %v1044 = vadd.f32 0.0, %v1043
        %v1045 = vpop.f32.mrb[0].mxu0
        %1046 = vmatprep.mubr.bf16.mxu0 0
        %1047 = vmatmul.mubr.bf16.gmra.mrb[0].mxu0 %v986
        %v1048 = vpop.f32.mrb[0].mxu0
        %v1049 = vadd.f32 0.0, %v1048
        %v1050 = vpop.f32.mrb[0].mxu0
        %v1051 = vpop.f32.mrb[0].mxu0
        %v1052 = vadd.f32 0.0, %v1051
        %v1053 = vpop.f32.mrb[0].mxu0
        %1054 = vmatprep.mubr.bf16.mxu0 0
        %1055 = vmatmul.mubr.bf16.gmra.mrb[0].mxu0 %v989
        %v1056 = vpop.f32.mrb[0].mxu0
        %v1057 = vadd.f32 0.0, %v1056
        %v1058 = vpop.f32.mrb[0].mxu0
        %v1059 = vpop.f32.mrb[0].mxu0
        %v1060 = vadd.f32 0.0, %v1059
        %v1061 = vpop.f32.mrb[0].mxu0
        %1062 = vmatprep.mubr.bf16.mxu0 0
        %1063 = vmatmul.mubr.bf16.gmra.mrb[0].mxu0 %v992
        %v1064 = vpop.f32.mrb[0].mxu0
        %v1065 = vadd.f32 0.0, %v1064
        %v1066 = vpop.f32.mrb[0].mxu0
        %v1067 = vpop.f32.mrb[0].mxu0
        %v1068 = vadd.f32 0.0, %v1067
        %v1069 = vpop.f32.mrb[0].mxu0
        %1070 = vmatprep.mubr.bf16.mxu0 0
        %1071 = vmatmul.mubr.bf16.gmra.mrb[0].mxu0 %v995
        %v1072 = vpop.f32.mrb[0].mxu0
        %v1073 = vadd.f32 0.0, %v1072
        %v1074 = vpop.f32.mrb[0].mxu0
        %v1075 = vpop.f32.mrb[0].mxu0
        %v1076 = vadd.f32 0.0, %v1075
        %v1077 = vpop.f32.mrb[0].mxu0
        %1078 = vmatprep.mubr.bf16.mxu0 0
        %1079 = vmatmul.mubr.bf16.gmra.mrb[0].mxu0 %v998
        %v1080 = vpop.f32.mrb[0].mxu0
        %v1081 = vadd.f32 0.0, %v1080
        %v1082 = vpop.f32.mrb[0].mxu0
        %v1083 = vpop.f32.mrb[0].mxu0
        %v1084 = vadd.f32 0.0, %v1083
        %v1085 = vpop.f32.mrb[0].mxu0
        %1086 = vmatprep.mubr.bf16.mxu0 0
        %1087 = vmatmul.mubr.bf16.gmra.mrb[0].mxu0 %v1001
        %v1088 = vpop.f32.mrb[0].mxu0
        %v1089 = vadd.f32 0.0, %v1088
        %v1090 = vpop.f32.mrb[0].mxu0
        %v1091 = vpop.f32.mrb[0].mxu0
        %v1092 = vadd.f32 0.0, %v1091
        %v1093 = vpop.f32.mrb[0].mxu0
        %1094 = vmatprep.mubr.bf16.mxu0 0
        %1095 = vmatmul.mubr.bf16.gmra.mrb[0].mxu0 %v1004
        %v1096 = vpop.f32.mrb[0].mxu0
        %v1097 = vadd.f32 0.0, %v1096
        %v1098 = vpop.f32.mrb[0].mxu0
        %v1099 = vpop.f32.mrb[0].mxu0
        %v1100 = vadd.f32 0.0, %v1099
        %v1101 = vpop.f32.mrb[0].mxu0
        %1102 = vdwg.mxu0
        %v1103 = vld [vmem:[%s389] sm:$0xff]
        %v1104 = vld [vmem:[%s389 + $0x8] sm:$0xff]
        %v1105 = vld [vmem:[%s389 + $0x10] sm:$0xff]
        %v1106 = vld [vmem:[%s389 + $0x18] sm:$0xff]
        %v1107 = vld [vmem:[%s389 + $0x20] sm:$0xff]
        %v1108 = vld [vmem:[%s389 + $0x28] sm:$0xff]
        %v1109 = vld [vmem:[%s389 + $0x30] sm:$0xff]
        %v1110 = vld [vmem:[%s389 + $0x38] sm:$0xff]
        %v1111 = vld [vmem:[%s389 + $0x40] sm:$0xff]
        %v1112 = vld [vmem:[%s389 + $0x48] sm:$0xff]
        %v1113 = vld [vmem:[%s389 + $0x50] sm:$0xff]
        %v1114 = vld [vmem:[%s389 + $0x58] sm:$0xff]
        %v1115 = vld [vmem:[%s389 + $0x60] sm:$0xff]
        %v1116 = vld [vmem:[%s389 + $0x68] sm:$0xff]
        %v1117 = vld [vmem:[%s389 + $0x70] sm:$0xff]
        %v1118 = vld [vmem:[%s389 + $0x78] sm:$0xff]
        %1119 = vmax.xlane.f32.xlu0 %v1041
        %v1120 = vpop.xlane.xlu0 %1119
        %1121 = vmax.xlane.f32.xlu0 %v1044
        %v1122 = vpop.xlane.xlu0 %1121
        %1123 = vmax.xlane.f32.xlu0 %v1049
        %v1124 = vpop.xlane.xlu0 %1123
        %1125 = vmax.xlane.f32.xlu0 %v1052
        %v1126 = vpop.xlane.xlu0 %1125
        %1127 = vmax.xlane.f32.xlu0 %v1057
        %v1128 = vpop.xlane.xlu0 %1127
        %1129 = vmax.xlane.f32.xlu0 %v1060
        %v1130 = vpop.xlane.xlu0 %1129
        %1131 = vmax.xlane.f32.xlu0 %v1065
        %v1132 = vpop.xlane.xlu0 %1131
        %1133 = vmax.xlane.f32.xlu0 %v1068
        %v1134 = vpop.xlane.xlu0 %1133
        %1135 = vmax.xlane.f32.xlu0 %v1073
        %v1136 = vpop.xlane.xlu0 %1135
        %1137 = vmax.xlane.f32.xlu0 %v1076
        %v1138 = vpop.xlane.xlu0 %1137
        %1139 = vmax.xlane.f32.xlu0 %v1081
        %v1140 = vpop.xlane.xlu0 %1139
        %1141 = vmax.xlane.f32.xlu0 %v1084
        %v1142 = vpop.xlane.xlu0 %1141
        %1143 = vmax.xlane.f32.xlu0 %v1089
        %v1144 = vpop.xlane.xlu0 %1143
        %1145 = vmax.xlane.f32.xlu0 %v1092
        %v1146 = vpop.xlane.xlu0 %1145
        %1147 = vmax.xlane.f32.xlu0 %v1097
        %v1148 = vpop.xlane.xlu0 %1147
        %1149 = vmax.xlane.f32.xlu0 %v1100
        %v1150 = vpop.xlane.xlu0 %1149
        %v1151 = vsub.f32 %v1041, %v1120
        %v1152 = vsub.f32 %v1044, %v1122
        %v1153 = vsub.f32 %v1049, %v1124
        %v1154 = vsub.f32 %v1052, %v1126
        %v1155 = vsub.f32 %v1057, %v1128
        %v1156 = vsub.f32 %v1060, %v1130
        %v1157 = vsub.f32 %v1065, %v1132
        %v1158 = vsub.f32 %v1068, %v1134
        %v1159 = vsub.f32 %v1073, %v1136
        %v1160 = vsub.f32 %v1076, %v1138
        %v1161 = vsub.f32 %v1081, %v1140
        %v1162 = vsub.f32 %v1084, %v1142
        %v1163 = vsub.f32 %v1089, %v1144
        %v1164 = vsub.f32 %v1092, %v1146
        %v1165 = vsub.f32 %v1097, %v1148
        %v1166 = vsub.f32 %v1100, %v1150
        %v1167 = vmul.f32 %v1151, 0.5
        %v1168 = vmul.f32 %v1152, 0.5
        %v1169 = vmul.f32 %v1153, 0.5
        %v1170 = vmul.f32 %v1154, 0.5
        %v1171 = vmul.f32 %v1155, 0.5
        %v1172 = vmul.f32 %v1156, 0.5
        %v1173 = vmul.f32 %v1157, 0.5
        %v1174 = vmul.f32 %v1158, 0.5
        %v1175 = vmul.f32 %v1159, 0.5
        %v1176 = vmul.f32 %v1160, 0.5
        %v1177 = vmul.f32 %v1161, 0.5
        %v1178 = vmul.f32 %v1162, 0.5
        %v1179 = vmul.f32 %v1163, 0.5
        %v1180 = vmul.f32 %v1164, 0.5
        %v1181 = vmul.f32 %v1165, 0.5
        %v1182 = vmul.f32 %v1166, 0.5
        %v1183 = vmul.f32 %v1167, 1.442695
        %v1184 = vpow.pop %v1183
        %v1185 = vmul.f32 %v1168, 1.442695
        %v1186 = vpow.pop %v1185
        %v1187 = vmul.f32 %v1169, 1.442695
        %v1188 = vpow.pop %v1187
        %v1189 = vmul.f32 %v1170, 1.442695
        %v1190 = vpow.pop %v1189
        %v1191 = vmul.f32 %v1171, 1.442695
        %v1192 = vpow.pop %v1191
        %v1193 = vmul.f32 %v1172, 1.442695
        %v1194 = vpow.pop %v1193
        %v1195 = vmul.f32 %v1173, 1.442695
        %v1196 = vpow.pop %v1195
        %v1197 = vmul.f32 %v1174, 1.442695
        %v1198 = vpow.pop %v1197
        %v1199 = vmul.f32 %v1175, 1.442695
        %v1200 = vpow.pop %v1199
        %v1201 = vmul.f32 %v1176, 1.442695
        %v1202 = vpow.pop %v1201
        %v1203 = vmul.f32 %v1177, 1.442695
        %v1204 = vpow.pop %v1203
        %v1205 = vmul.f32 %v1178, 1.442695
        %v1206 = vpow.pop %v1205
        %v1207 = vmul.f32 %v1179, 1.442695
        %v1208 = vpow.pop %v1207
        %v1209 = vmul.f32 %v1180, 1.442695
        %v1210 = vpow.pop %v1209
        %v1211 = vmul.f32 %v1181, 1.442695
        %v1212 = vpow.pop %v1211
        %v1213 = vmul.f32 %v1182, 1.442695
        %v1214 = vpow.pop %v1213
        %v1215 = vmul.f32 %v1184, %v1184
        %v1216 = vmul.f32 %v1186, %v1186
        %v1217 = vmul.f32 %v1188, %v1188
        %v1218 = vmul.f32 %v1190, %v1190
        %v1219 = vmul.f32 %v1192, %v1192
        %v1220 = vmul.f32 %v1194, %v1194
        %v1221 = vmul.f32 %v1196, %v1196
        %v1222 = vmul.f32 %v1198, %v1198
        %v1223 = vmul.f32 %v1200, %v1200
        %v1224 = vmul.f32 %v1202, %v1202
        %v1225 = vmul.f32 %v1204, %v1204
        %v1226 = vmul.f32 %v1206, %v1206
        %v1227 = vmul.f32 %v1208, %v1208
        %v1228 = vmul.f32 %v1210, %v1210
        %v1229 = vmul.f32 %v1212, %v1212
        %v1230 = vmul.f32 %v1214, %v1214
        %1231 = vadd.xlane.f32.xlu0 %v1215
        %v1232 = vpop.xlane.xlu0 %1231
        %1233 = vadd.xlane.f32.xlu0 %v1216
        %v1234 = vpop.xlane.xlu0 %1233
        %1235 = vadd.xlane.f32.xlu0 %v1217
        %v1236 = vpop.xlane.xlu0 %1235
        %1237 = vadd.xlane.f32.xlu0 %v1218
        %v1238 = vpop.xlane.xlu0 %1237
        %1239 = vadd.xlane.f32.xlu0 %v1219
        %v1240 = vpop.xlane.xlu0 %1239
        %1241 = vadd.xlane.f32.xlu0 %v1220
        %v1242 = vpop.xlane.xlu0 %1241
        %1243 = vadd.xlane.f32.xlu0 %v1221
        %v1244 = vpop.xlane.xlu0 %1243
        %1245 = vadd.xlane.f32.xlu0 %v1222
        %v1246 = vpop.xlane.xlu0 %1245
        %1247 = vadd.xlane.f32.xlu0 %v1223
        %v1248 = vpop.xlane.xlu0 %1247
        %1249 = vadd.xlane.f32.xlu0 %v1224
        %v1250 = vpop.xlane.xlu0 %1249
        %1251 = vadd.xlane.f32.xlu0 %v1225
        %v1252 = vpop.xlane.xlu0 %1251
        %1253 = vadd.xlane.f32.xlu0 %v1226
        %v1254 = vpop.xlane.xlu0 %1253
        %1255 = vadd.xlane.f32.xlu0 %v1227
        %v1256 = vpop.xlane.xlu0 %1255
        %1257 = vadd.xlane.f32.xlu0 %v1228
        %v1258 = vpop.xlane.xlu0 %1257
        %1259 = vadd.xlane.f32.xlu0 %v1229
        %v1260 = vpop.xlane.xlu0 %1259
        %1261 = vadd.xlane.f32.xlu0 %v1230
        %v1262 = vpop.xlane.xlu0 %1261
        %v1263 = vlog2.pop %v1232
        %v1264 = vmul.f32 %v1263, 0.6931472
        %v1265 = vlog2.pop %v1234
        %v1266 = vmul.f32 %v1265, 0.6931472
        %v1267 = vlog2.pop %v1236
        %v1268 = vmul.f32 %v1267, 0.6931472
        %v1269 = vlog2.pop %v1238
        %v1270 = vmul.f32 %v1269, 0.6931472
        %v1271 = vlog2.pop %v1240
        %v1272 = vmul.f32 %v1271, 0.6931472
        %v1273 = vlog2.pop %v1242
        %v1274 = vmul.f32 %v1273, 0.6931472
        %v1275 = vlog2.pop %v1244
        %v1276 = vmul.f32 %v1275, 0.6931472
        %v1277 = vlog2.pop %v1246
        %v1278 = vmul.f32 %v1277, 0.6931472
        %v1279 = vlog2.pop %v1248
        %v1280 = vmul.f32 %v1279, 0.6931472
        %v1281 = vlog2.pop %v1250
        %v1282 = vmul.f32 %v1281, 0.6931472
        %v1283 = vlog2.pop %v1252
        %v1284 = vmul.f32 %v1283, 0.6931472
        %v1285 = vlog2.pop %v1254
        %v1286 = vmul.f32 %v1285, 0.6931472
        %v1287 = vlog2.pop %v1256
        %v1288 = vmul.f32 %v1287, 0.6931472
        %v1289 = vlog2.pop %v1258
        %v1290 = vmul.f32 %v1289, 0.6931472
        %v1291 = vlog2.pop %v1260
        %v1292 = vmul.f32 %v1291, 0.6931472
        %v1293 = vlog2.pop %v1262
        %v1294 = vmul.f32 %v1293, 0.6931472
        %1295 = vadd.xlane.f32.xlu0 %v1184
        %v1296 = vpop.xlane.xlu0 %1295
        %1297 = vadd.xlane.f32.xlu0 %v1186
        %v1298 = vpop.xlane.xlu0 %1297
        %1299 = vadd.xlane.f32.xlu0 %v1188
        %v1300 = vpop.xlane.xlu0 %1299
        %1301 = vadd.xlane.f32.xlu0 %v1190
        %v1302 = vpop.xlane.xlu0 %1301
        %1303 = vadd.xlane.f32.xlu0 %v1192
        %v1304 = vpop.xlane.xlu0 %1303
        %1305 = vadd.xlane.f32.xlu0 %v1194
        %v1306 = vpop.xlane.xlu0 %1305
        %1307 = vadd.xlane.f32.xlu0 %v1196
        %v1308 = vpop.xlane.xlu0 %1307
        %1309 = vadd.xlane.f32.xlu0 %v1198
        %v1310 = vpop.xlane.xlu0 %1309
        %1311 = vadd.xlane.f32.xlu0 %v1200
        %v1312 = vpop.xlane.xlu0 %1311
        %1313 = vadd.xlane.f32.xlu0 %v1202
        %v1314 = vpop.xlane.xlu0 %1313
        %1315 = vadd.xlane.f32.xlu0 %v1204
        %v1316 = vpop.xlane.xlu0 %1315
        %1317 = vadd.xlane.f32.xlu0 %v1206
        %v1318 = vpop.xlane.xlu0 %1317
        %1319 = vadd.xlane.f32.xlu0 %v1208
        %v1320 = vpop.xlane.xlu0 %1319
        %1321 = vadd.xlane.f32.xlu0 %v1210
        %v1322 = vpop.xlane.xlu0 %1321
        %1323 = vadd.xlane.f32.xlu0 %v1212
        %v1324 = vpop.xlane.xlu0 %1323
        %1325 = vadd.xlane.f32.xlu0 %v1214
        %v1326 = vpop.xlane.xlu0 %1325
        %v1327 = vlog2.pop %v1296
        %v1328 = vmul.f32 %v1327, 0.6931472
        %v1329 = vlog2.pop %v1298
        %v1330 = vmul.f32 %v1329, 0.6931472
        %v1331 = vlog2.pop %v1300
        %v1332 = vmul.f32 %v1331, 0.6931472
        %v1333 = vlog2.pop %v1302
        %v1334 = vmul.f32 %v1333, 0.6931472
        %v1335 = vlog2.pop %v1304
        %v1336 = vmul.f32 %v1335, 0.6931472
        %v1337 = vlog2.pop %v1306
        %v1338 = vmul.f32 %v1337, 0.6931472
        %v1339 = vlog2.pop %v1308
        %v1340 = vmul.f32 %v1339, 0.6931472
        %v1341 = vlog2.pop %v1310
        %v1342 = vmul.f32 %v1341, 0.6931472
        %v1343 = vlog2.pop %v1312
        %v1344 = vmul.f32 %v1343, 0.6931472
        %v1345 = vlog2.pop %v1314
        %v1346 = vmul.f32 %v1345, 0.6931472
        %v1347 = vlog2.pop %v1316
        %v1348 = vmul.f32 %v1347, 0.6931472
        %v1349 = vlog2.pop %v1318
        %v1350 = vmul.f32 %v1349, 0.6931472
        %v1351 = vlog2.pop %v1320
        %v1352 = vmul.f32 %v1351, 0.6931472
        %v1353 = vlog2.pop %v1322
        %v1354 = vmul.f32 %v1353, 0.6931472
        %v1355 = vlog2.pop %v1324
        %v1356 = vmul.f32 %v1355, 0.6931472
        %v1357 = vlog2.pop %v1326
        %v1358 = vmul.f32 %v1357, 0.6931472
        %v1359 = vsub.f32 %v1151, %v1264
        %v1360 = vsub.f32 %v1152, %v1266
        %v1361 = vsub.f32 %v1153, %v1268
        %v1362 = vsub.f32 %v1154, %v1270
        %v1363 = vsub.f32 %v1155, %v1272
        %v1364 = vsub.f32 %v1156, %v1274
        %v1365 = vsub.f32 %v1157, %v1276
        %v1366 = vsub.f32 %v1158, %v1278
        %v1367 = vsub.f32 %v1159, %v1280
        %v1368 = vsub.f32 %v1160, %v1282
        %v1369 = vsub.f32 %v1161, %v1284
        %v1370 = vsub.f32 %v1162, %v1286
        %v1371 = vsub.f32 %v1163, %v1288
        %v1372 = vsub.f32 %v1164, %v1290
        %v1373 = vsub.f32 %v1165, %v1292
        %v1374 = vsub.f32 %v1166, %v1294
        %v1375 = vlaneseq
        %v1376 = vand.u32 %v1375, 127
        %1377 = vset.pattern.permute.xlu0 0
        %1378 = vperm.xlu0 %1377, %v1103
        %v1379 = vpop.permute.xlu0 %1378
        %1380 = vset.pattern.permute.xlu0 0
        %1381 = vperm.xlu0 %1380, %v1104
        %v1382 = vpop.permute.xlu0 %1381
        %1383 = vset.pattern.permute.xlu0 0
        %1384 = vperm.xlu0 %1383, %v1105
        %v1385 = vpop.permute.xlu0 %1384
        %1386 = vset.pattern.permute.xlu0 0
        %1387 = vperm.xlu0 %1386, %v1106
        %v1388 = vpop.permute.xlu0 %1387
        %1389 = vset.pattern.permute.xlu0 0
        %1390 = vperm.xlu0 %1389, %v1107
        %v1391 = vpop.permute.xlu0 %1390
        %1392 = vset.pattern.permute.xlu0 0
        %1393 = vperm.xlu0 %1392, %v1108
        %v1394 = vpop.permute.xlu0 %1393
        %1395 = vset.pattern.permute.xlu0 0
        %1396 = vperm.xlu0 %1395, %v1109
        %v1397 = vpop.permute.xlu0 %1396
        %1398 = vset.pattern.permute.xlu0 0
        %1399 = vperm.xlu0 %1398, %v1110
        %v1400 = vpop.permute.xlu0 %1399
        %1401 = vset.pattern.permute.xlu0 0
        %1402 = vperm.xlu0 %1401, %v1111
        %v1403 = vpop.permute.xlu0 %1402
        %1404 = vset.pattern.permute.xlu0 0
        %1405 = vperm.xlu0 %1404, %v1112
        %v1406 = vpop.permute.xlu0 %1405
        %1407 = vset.pattern.permute.xlu0 0
        %1408 = vperm.xlu0 %1407, %v1113
        %v1409 = vpop.permute.xlu0 %1408
        %1410 = vset.pattern.permute.xlu0 0
        %1411 = vperm.xlu0 %1410, %v1114
        %v1412 = vpop.permute.xlu0 %1411
        %1413 = vset.pattern.permute.xlu0 0
        %1414 = vperm.xlu0 %1413, %v1115
        %v1415 = vpop.permute.xlu0 %1414
        %1416 = vset.pattern.permute.xlu0 0
        %1417 = vperm.xlu0 %1416, %v1116
        %v1418 = vpop.permute.xlu0 %1417
        %1419 = vset.pattern.permute.xlu0 0
        %1420 = vperm.xlu0 %1419, %v1117
        %v1421 = vpop.permute.xlu0 %1420
        %1422 = vset.pattern.permute.xlu0 0
        %1423 = vperm.xlu0 %1422, %v1118
        %v1424 = vpop.permute.xlu0 %1423
        %vm1425 = vcmp.eq.s32.totalorder %v1376, %v1379
        %vm1426 = vcmp.eq.s32.totalorder %v1376, %v1382
        %vm1427 = vcmp.eq.s32.totalorder %v1376, %v1385
        %vm1428 = vcmp.eq.s32.totalorder %v1376, %v1388
        %vm1429 = vcmp.eq.s32.totalorder %v1376, %v1391
        %vm1430 = vcmp.eq.s32.totalorder %v1376, %v1394
        %vm1431 = vcmp.eq.s32.totalorder %v1376, %v1397
        %vm1432 = vcmp.eq.s32.totalorder %v1376, %v1400
        %vm1433 = vcmp.eq.s32.totalorder %v1376, %v1403
        %vm1434 = vcmp.eq.s32.totalorder %v1376, %v1406
        %vm1435 = vcmp.eq.s32.totalorder %v1376, %v1409
        %vm1436 = vcmp.eq.s32.totalorder %v1376, %v1412
        %vm1437 = vcmp.eq.s32.totalorder %v1376, %v1415
        %vm1438 = vcmp.eq.s32.totalorder %v1376, %v1418
        %vm1439 = vcmp.eq.s32.totalorder %v1376, %v1421
        %vm1440 = vcmp.eq.s32.totalorder %v1376, %v1424
        %v1441 = vsel %vm1425, 1, 0
        %v1442 = vsel %vm1426, 1, 0
        %v1443 = vsel %vm1427, 1, 0
        %v1444 = vsel %vm1428, 1, 0
        %v1445 = vsel %vm1429, 1, 0
        %v1446 = vsel %vm1430, 1, 0
        %v1447 = vsel %vm1431, 1, 0
        %v1448 = vsel %vm1432, 1, 0
        %v1449 = vsel %vm1433, 1, 0
        %v1450 = vsel %vm1434, 1, 0
        %v1451 = vsel %vm1435, 1, 0
        %v1452 = vsel %vm1436, 1, 0
        %v1453 = vsel %vm1437, 1, 0
        %v1454 = vsel %vm1438, 1, 0
        %v1455 = vsel %vm1439, 1, 0
        %v1456 = vsel %vm1440, 1, 0
        %v1457 = vcvt.s32.f32 %v1441
        %v1458 = vcvt.s32.f32 %v1442
        %v1459 = vcvt.s32.f32 %v1443
        %v1460 = vcvt.s32.f32 %v1444
        %v1461 = vcvt.s32.f32 %v1445
        %v1462 = vcvt.s32.f32 %v1446
        %v1463 = vcvt.s32.f32 %v1447
        %v1464 = vcvt.s32.f32 %v1448
        %v1465 = vcvt.s32.f32 %v1449
        %v1466 = vcvt.s32.f32 %v1450
        %v1467 = vcvt.s32.f32 %v1451
        %v1468 = vcvt.s32.f32 %v1452
        %v1469 = vcvt.s32.f32 %v1453
        %v1470 = vcvt.s32.f32 %v1454
        %v1471 = vcvt.s32.f32 %v1455
        %v1472 = vcvt.s32.f32 %v1456
        %v1473 = vsub.f32 0.0, %v1359
        %v1474 = vsub.f32 0.0, %v1360
        %v1475 = vsub.f32 0.0, %v1361
        %v1476 = vsub.f32 0.0, %v1362
        %v1477 = vsub.f32 0.0, %v1363
        %v1478 = vsub.f32 0.0, %v1364
        %v1479 = vsub.f32 0.0, %v1365
        %v1480 = vsub.f32 0.0, %v1366
        %v1481 = vsub.f32 0.0, %v1367
        %v1482 = vsub.f32 0.0, %v1368
        %v1483 = vsub.f32 0.0, %v1369
        %v1484 = vsub.f32 0.0, %v1370
        %v1485 = vsub.f32 0.0, %v1371
        %v1486 = vsub.f32 0.0, %v1372
        %v1487 = vsub.f32 0.0, %v1373
        %v1488 = vsub.f32 0.0, %v1374
        %v1489 = vmul.f32 %v1457, %v1473
        %v1490 = vmul.f32 %v1458, %v1474
        %v1491 = vmul.f32 %v1459, %v1475
        %v1492 = vmul.f32 %v1460, %v1476
        %v1493 = vmul.f32 %v1461, %v1477
        %v1494 = vmul.f32 %v1462, %v1478
        %v1495 = vmul.f32 %v1463, %v1479
        %v1496 = vmul.f32 %v1464, %v1480
        %v1497 = vmul.f32 %v1465, %v1481
        %v1498 = vmul.f32 %v1466, %v1482
        %v1499 = vmul.f32 %v1467, %v1483
        %v1500 = vmul.f32 %v1468, %v1484
        %v1501 = vmul.f32 %v1469, %v1485
        %v1502 = vmul.f32 %v1470, %v1486
        %v1503 = vmul.f32 %v1471, %v1487
        %v1504 = vmul.f32 %v1472, %v1488
        %v1505 = vadd.f32 %v1489, %v1490
        %v1506 = vadd.f32 %v1505, %v1491
        %v1507 = vadd.f32 %v1506, %v1492
        %v1508 = vadd.f32 %v1507, %v1493
        %v1509 = vadd.f32 %v1508, %v1494
        %v1510 = vadd.f32 %v1509, %v1495
        %v1511 = vadd.f32 %v1510, %v1496
        %v1512 = vadd.f32 %v1511, %v1497
        %v1513 = vadd.f32 %v1512, %v1498
        %v1514 = vadd.f32 %v1513, %v1499
        %v1515 = vadd.f32 %v1514, %v1500
        %v1516 = vadd.f32 %v1515, %v1501
        %v1517 = vadd.f32 %v1516, %v1502
        %v1518 = vadd.f32 %v1517, %v1503
        %v1519 = vadd.f32 %v1518, %v1504
        %v1520 = vrot.slane %v1519, 4
        %v1521 = vadd.f32 %v1519, %v1520
        %v1522 = vrot.slane %v1521, 2
        %v1523 = vadd.f32 %v1521, %v1522
        %v1524 = vrot.slane %v1523, 1
        %v1525 = vadd.f32 %v1523, %v1524
        %1526 = vmax.xlane.f32.xlu0 %v751
        %v1527 = vpop.xlane.xlu0 %1526
        %1528 = vmax.xlane.f32.xlu0 %v754
        %v1529 = vpop.xlane.xlu0 %1528
        %1530 = vmax.xlane.f32.xlu0 %v759
        %v1531 = vpop.xlane.xlu0 %1530
        %1532 = vmax.xlane.f32.xlu0 %v762
        %v1533 = vpop.xlane.xlu0 %1532
        %1534 = vmax.xlane.f32.xlu0 %v767
        %v1535 = vpop.xlane.xlu0 %1534
        %1536 = vmax.xlane.f32.xlu0 %v770
        %v1537 = vpop.xlane.xlu0 %1536
        %1538 = vmax.xlane.f32.xlu0 %v775
        %v1539 = vpop.xlane.xlu0 %1538
        %1540 = vmax.xlane.f32.xlu0 %v778
        %v1541 = vpop.xlane.xlu0 %1540
        %1542 = vmax.xlane.f32.xlu0 %v783
        %v1543 = vpop.xlane.xlu0 %1542
        %1544 = vmax.xlane.f32.xlu0 %v786
        %v1545 = vpop.xlane.xlu0 %1544
        %1546 = vmax.xlane.f32.xlu0 %v791
        %v1547 = vpop.xlane.xlu0 %1546
        %1548 = vmax.xlane.f32.xlu0 %v794
        %v1549 = vpop.xlane.xlu0 %1548
        %1550 = vmax.xlane.f32.xlu0 %v799
        %v1551 = vpop.xlane.xlu0 %1550
        %1552 = vmax.xlane.f32.xlu0 %v802
        %v1553 = vpop.xlane.xlu0 %1552
        %1554 = vmax.xlane.f32.xlu0 %v807
        %v1555 = vpop.xlane.xlu0 %1554
        %1556 = vmax.xlane.f32.xlu0 %v810
        %v1557 = vpop.xlane.xlu0 %1556
        %v1558 = vsub.f32 %v751, %v1527
        %v1559 = vsub.f32 %v754, %v1529
        %v1560 = vsub.f32 %v759, %v1531
        %v1561 = vsub.f32 %v762, %v1533
        %v1562 = vsub.f32 %v767, %v1535
        %v1563 = vsub.f32 %v770, %v1537
        %v1564 = vsub.f32 %v775, %v1539
        %v1565 = vsub.f32 %v778, %v1541
        %v1566 = vsub.f32 %v783, %v1543
        %v1567 = vsub.f32 %v786, %v1545
        %v1568 = vsub.f32 %v791, %v1547
        %v1569 = vsub.f32 %v794, %v1549
        %v1570 = vsub.f32 %v799, %v1551
        %v1571 = vsub.f32 %v802, %v1553
        %v1572 = vsub.f32 %v807, %v1555
        %v1573 = vsub.f32 %v810, %v1557
        %v1574 = vmul.f32 %v1558, 0.5
        %v1575 = vmul.f32 %v1559, 0.5
        %v1576 = vmul.f32 %v1560, 0.5
        %v1577 = vmul.f32 %v1561, 0.5
        %v1578 = vmul.f32 %v1562, 0.5
        %v1579 = vmul.f32 %v1563, 0.5
        %v1580 = vmul.f32 %v1564, 0.5
        %v1581 = vmul.f32 %v1565, 0.5
        %v1582 = vmul.f32 %v1566, 0.5
        %v1583 = vmul.f32 %v1567, 0.5
        %v1584 = vmul.f32 %v1568, 0.5
        %v1585 = vmul.f32 %v1569, 0.5
        %v1586 = vmul.f32 %v1570, 0.5
        %v1587 = vmul.f32 %v1571, 0.5
        %v1588 = vmul.f32 %v1572, 0.5
        %v1589 = vmul.f32 %v1573, 0.5
        %v1590 = vmul.f32 %v1574, 1.442695
        %v1591 = vpow.pop %v1590
        %v1592 = vmul.f32 %v1575, 1.442695
        %v1593 = vpow.pop %v1592
        %v1594 = vmul.f32 %v1576, 1.442695
        %v1595 = vpow.pop %v1594
        %v1596 = vmul.f32 %v1577, 1.442695
        %v1597 = vpow.pop %v1596
        %v1598 = vmul.f32 %v1578, 1.442695
        %v1599 = vpow.pop %v1598
        %v1600 = vmul.f32 %v1579, 1.442695
        %v1601 = vpow.pop %v1600
        %v1602 = vmul.f32 %v1580, 1.442695
        %v1603 = vpow.pop %v1602
        %v1604 = vmul.f32 %v1581, 1.442695
        %v1605 = vpow.pop %v1604
        %v1606 = vmul.f32 %v1582, 1.442695
        %v1607 = vpow.pop %v1606
        %v1608 = vmul.f32 %v1583, 1.442695
        %v1609 = vpow.pop %v1608
        %v1610 = vmul.f32 %v1584, 1.442695
        %v1611 = vpow.pop %v1610
        %v1612 = vmul.f32 %v1585, 1.442695
        %v1613 = vpow.pop %v1612
        %v1614 = vmul.f32 %v1586, 1.442695
        %v1615 = vpow.pop %v1614
        %v1616 = vmul.f32 %v1587, 1.442695
        %v1617 = vpow.pop %v1616
        %v1618 = vmul.f32 %v1588, 1.442695
        %v1619 = vpow.pop %v1618
        %v1620 = vmul.f32 %v1589, 1.442695
        %v1621 = vpow.pop %v1620
        %1622 = vadd.xlane.f32.xlu0 %v1591
        %v1623 = vpop.xlane.xlu0 %1622
        %1624 = vadd.xlane.f32.xlu0 %v1593
        %v1625 = vpop.xlane.xlu0 %1624
        %1626 = vadd.xlane.f32.xlu0 %v1595
        %v1627 = vpop.xlane.xlu0 %1626
        %1628 = vadd.xlane.f32.xlu0 %v1597
        %v1629 = vpop.xlane.xlu0 %1628
        %1630 = vadd.xlane.f32.xlu0 %v1599
        %v1631 = vpop.xlane.xlu0 %1630
        %1632 = vadd.xlane.f32.xlu0 %v1601
        %v1633 = vpop.xlane.xlu0 %1632
        %1634 = vadd.xlane.f32.xlu0 %v1603
        %v1635 = vpop.xlane.xlu0 %1634
        %1636 = vadd.xlane.f32.xlu0 %v1605
        %v1637 = vpop.xlane.xlu0 %1636
        %1638 = vadd.xlane.f32.xlu0 %v1607
        %v1639 = vpop.xlane.xlu0 %1638
        %1640 = vadd.xlane.f32.xlu0 %v1609
        %v1641 = vpop.xlane.xlu0 %1640
        %1642 = vadd.xlane.f32.xlu0 %v1611
        %v1643 = vpop.xlane.xlu0 %1642
        %1644 = vadd.xlane.f32.xlu0 %v1613
        %v1645 = vpop.xlane.xlu0 %1644
        %1646 = vadd.xlane.f32.xlu0 %v1615
        %v1647 = vpop.xlane.xlu0 %1646
        %1648 = vadd.xlane.f32.xlu0 %v1617
        %v1649 = vpop.xlane.xlu0 %1648
        %1650 = vadd.xlane.f32.xlu0 %v1619
        %v1651 = vpop.xlane.xlu0 %1650
        %1652 = vadd.xlane.f32.xlu0 %v1621
        %v1653 = vpop.xlane.xlu0 %1652
        %v1654 = vrcp.pop %v1623
        %v1655 = vmul.f32 %v1591, %v1654
        %v1656 = vrcp.pop %v1625
        %v1657 = vmul.f32 %v1593, %v1656
        %v1658 = vrcp.pop %v1627
        %v1659 = vmul.f32 %v1595, %v1658
        %v1660 = vrcp.pop %v1629
        %v1661 = vmul.f32 %v1597, %v1660
        %v1662 = vrcp.pop %v1631
        %v1663 = vmul.f32 %v1599, %v1662
        %v1664 = vrcp.pop %v1633
        %v1665 = vmul.f32 %v1601, %v1664
        %v1666 = vrcp.pop %v1635
        %v1667 = vmul.f32 %v1603, %v1666
        %v1668 = vrcp.pop %v1637
        %v1669 = vmul.f32 %v1605, %v1668
        %v1670 = vrcp.pop %v1639
        %v1671 = vmul.f32 %v1607, %v1670
        %v1672 = vrcp.pop %v1641
        %v1673 = vmul.f32 %v1609, %v1672
        %v1674 = vrcp.pop %v1643
        %v1675 = vmul.f32 %v1611, %v1674
        %v1676 = vrcp.pop %v1645
        %v1677 = vmul.f32 %v1613, %v1676
        %v1678 = vrcp.pop %v1647
        %v1679 = vmul.f32 %v1615, %v1678
        %v1680 = vrcp.pop %v1649
        %v1681 = vmul.f32 %v1617, %v1680
        %v1682 = vrcp.pop %v1651
        %v1683 = vmul.f32 %v1619, %v1682
        %v1684 = vrcp.pop %v1653
        %v1685 = vmul.f32 %v1621, %v1684
        %v1686 = vsub.f32 %v1574, %v1167
        %v1687 = vsub.f32 %v1575, %v1168
        %v1688 = vsub.f32 %v1576, %v1169
        %v1689 = vsub.f32 %v1577, %v1170
        %v1690 = vsub.f32 %v1578, %v1171
        %v1691 = vsub.f32 %v1579, %v1172
        %v1692 = vsub.f32 %v1580, %v1173
        %v1693 = vsub.f32 %v1581, %v1174
        %v1694 = vsub.f32 %v1582, %v1175
        %v1695 = vsub.f32 %v1583, %v1176
        %v1696 = vsub.f32 %v1584, %v1177
        %v1697 = vsub.f32 %v1585, %v1178
        %v1698 = vsub.f32 %v1586, %v1179
        %v1699 = vsub.f32 %v1587, %v1180
        %v1700 = vsub.f32 %v1588, %v1181
        %v1701 = vsub.f32 %v1589, %v1182
        %v1702 = vlog2.pop %v1623
        %v1703 = vmul.f32 %v1702, 0.6931472
        %v1704 = vlog2.pop %v1625
        %v1705 = vmul.f32 %v1704, 0.6931472
        %v1706 = vlog2.pop %v1627
        %v1707 = vmul.f32 %v1706, 0.6931472
        %v1708 = vlog2.pop %v1629
        %v1709 = vmul.f32 %v1708, 0.6931472
        %v1710 = vlog2.pop %v1631
        %v1711 = vmul.f32 %v1710, 0.6931472
        %v1712 = vlog2.pop %v1633
        %v1713 = vmul.f32 %v1712, 0.6931472
        %v1714 = vlog2.pop %v1635
        %v1715 = vmul.f32 %v1714, 0.6931472
        %v1716 = vlog2.pop %v1637
        %v1717 = vmul.f32 %v1716, 0.6931472
        %v1718 = vlog2.pop %v1639
        %v1719 = vmul.f32 %v1718, 0.6931472
        %v1720 = vlog2.pop %v1641
        %v1721 = vmul.f32 %v1720, 0.6931472
        %v1722 = vlog2.pop %v1643
        %v1723 = vmul.f32 %v1722, 0.6931472
        %v1724 = vlog2.pop %v1645
        %v1725 = vmul.f32 %v1724, 0.6931472
        %v1726 = vlog2.pop %v1647
        %v1727 = vmul.f32 %v1726, 0.6931472
        %v1728 = vlog2.pop %v1649
        %v1729 = vmul.f32 %v1728, 0.6931472
        %v1730 = vlog2.pop %v1651
        %v1731 = vmul.f32 %v1730, 0.6931472
        %v1732 = vlog2.pop %v1653
        %v1733 = vmul.f32 %v1732, 0.6931472
        %v1734 = vsub.f32 %v1328, %v1703
        %v1735 = vsub.f32 %v1330, %v1705
        %v1736 = vsub.f32 %v1332, %v1707
        %v1737 = vsub.f32 %v1334, %v1709
        %v1738 = vsub.f32 %v1336, %v1711
        %v1739 = vsub.f32 %v1338, %v1713
        %v1740 = vsub.f32 %v1340, %v1715
        %v1741 = vsub.f32 %v1342, %v1717
        %v1742 = vsub.f32 %v1344, %v1719
        %v1743 = vsub.f32 %v1346, %v1721
        %v1744 = vsub.f32 %v1348, %v1723
        %v1745 = vsub.f32 %v1350, %v1725
        %v1746 = vsub.f32 %v1352, %v1727
        %v1747 = vsub.f32 %v1354, %v1729
        %v1748 = vsub.f32 %v1356, %v1731
        %v1749 = vsub.f32 %v1358, %v1733
        %v1750 = vadd.f32 %v1686, %v1734
        %v1751 = vadd.f32 %v1687, %v1735
        %v1752 = vadd.f32 %v1688, %v1736
        %v1753 = vadd.f32 %v1689, %v1737
        %v1754 = vadd.f32 %v1690, %v1738
        %v1755 = vadd.f32 %v1691, %v1739
        %v1756 = vadd.f32 %v1692, %v1740
        %v1757 = vadd.f32 %v1693, %v1741
        %v1758 = vadd.f32 %v1694, %v1742
        %v1759 = vadd.f32 %v1695, %v1743
        %v1760 = vadd.f32 %v1696, %v1744
        %v1761 = vadd.f32 %v1697, %v1745
        %v1762 = vadd.f32 %v1698, %v1746
        %v1763 = vadd.f32 %v1699, %v1747
        %v1764 = vadd.f32 %v1700, %v1748
        %v1765 = vadd.f32 %v1701, %v1749
        %v1766 = vmul.f32 %v1655, %v1750
        %v1767 = vmul.f32 %v1657, %v1751
        %v1768 = vmul.f32 %v1659, %v1752
        %v1769 = vmul.f32 %v1661, %v1753
        %v1770 = vmul.f32 %v1663, %v1754
        %v1771 = vmul.f32 %v1665, %v1755
        %v1772 = vmul.f32 %v1667, %v1756
        %v1773 = vmul.f32 %v1669, %v1757
        %v1774 = vmul.f32 %v1671, %v1758
        %v1775 = vmul.f32 %v1673, %v1759
        %v1776 = vmul.f32 %v1675, %v1760
        %v1777 = vmul.f32 %v1677, %v1761
        %v1778 = vmul.f32 %v1679, %v1762
        %v1779 = vmul.f32 %v1681, %v1763
        %v1780 = vmul.f32 %v1683, %v1764
        %v1781 = vmul.f32 %v1685, %v1765
        %v1782 = vadd.f32 %v1766, %v1767
        %v1783 = vadd.f32 %v1782, %v1768
        %v1784 = vadd.f32 %v1783, %v1769
        %v1785 = vadd.f32 %v1784, %v1770
        %v1786 = vadd.f32 %v1785, %v1771
        %v1787 = vadd.f32 %v1786, %v1772
        %v1788 = vadd.f32 %v1787, %v1773
        %v1789 = vadd.f32 %v1788, %v1774
        %v1790 = vadd.f32 %v1789, %v1775
        %v1791 = vadd.f32 %v1790, %v1776
        %v1792 = vadd.f32 %v1791, %v1777
        %v1793 = vadd.f32 %v1792, %v1778
        %v1794 = vadd.f32 %v1793, %v1779
        %v1795 = vadd.f32 %v1794, %v1780
        %v1796 = vadd.f32 %v1795, %v1781
        %v1797 = vrot.slane %v1796, 4
        %v1798 = vadd.f32 %v1796, %v1797
        %v1799 = vrot.slane %v1798, 2
        %v1800 = vadd.f32 %v1798, %v1799
        %v1801 = vrot.slane %v1800, 1
        %v1802 = vadd.f32 %v1800, %v1801
        %v1803 = vld [vmem:[%s421] sm:$0x1]
        %v1804 = vadd.f32 %v1803, %v1525
        %1805 = vst [vmem:[%s421] sm:$0x1] %v1804
        %v1806 = vld [vmem:[%s427] sm:$0x1]
        %v1807 = vadd.f32 %v1806, %v1802
        %1808 = vst [vmem:[%s427] sm:$0x1] %v1807
        %s1809 = sand.u32 %s197, 1
        %s1810 = scalar_lea.sflag [#allocation4], %s1809
        %s1811 = sand.u32 %s197, 1
        %s1812 = scalar_lea.vmem [#allocation13], %s1811
        %s1813 = sand.u32 %s223, 1
        %s1814 = scalar_lea.sflag [#allocation15], %s1813
        %s1815 = sand.u32 %s223, 1
        %s1816 = scalar_lea.vmem [#allocation14], %s1815
        // Predicated region
        $region73: #{tpu_custom_call.1} parent=43 // pred_check
          %p1817 = pneg %p207
        $region74: #{tpu_custom_call.1} parent=43 // pred_check_branch
          %1819 = sbr.rel (%p1817) target = $region76
        $region75: #{tpu_custom_call.1} parent=43 // pred_region
          %s1821 = ssub.s32 16, 16
          %1822 = vsyncadd %s1810, %s1821
          %s1823 = smul.addr %s37, 16
          %s1824 = scalar_lea.hbm %s6, %s1823
          %s1826 = sshll.u32 %s1812, 4
          %s1827 = int_to_ptr.vmem [resolvable:$true] %s1826
          %1829 = dma.vmem_to_hbm [thread:$0]  %s1827, 16, %s1824, %s1810
        $region76: #{tpu_custom_call.1} parent=43 // pred_fallthru
          _
        // Predicated region
        $region77: #{tpu_custom_call.1} parent=43 // pred_check
          %p1830 = pneg %p233
        $region78: #{tpu_custom_call.1} parent=43 // pred_check_branch
          %1832 = sbr.rel (%p1830) target = $region80
        $region79: #{tpu_custom_call.1} parent=43 // pred_region
          %s1834 = ssub.s32 16, 16
          %1835 = vsyncadd %s1814, %s1834
          %s1836 = smul.addr %s37, 16
          %s1837 = scalar_lea.hbm %s7, %s1836
          %s1839 = sshll.u32 %s1816, 4
          %s1840 = int_to_ptr.vmem [resolvable:$true] %s1839
          %1842 = dma.vmem_to_hbm [thread:$0]  %s1840, 16, %s1837, %s1814
        $region80: #{tpu_custom_call.1} parent=43 // pred_fallthru
          _
      $region44: #{tpu_custom_call.1} parent=5 // pred_fallthru
        _
      %p1843 = scmp.le.s32.totalorder 2, %s28
      // Predicated region
      $region81: #{tpu_custom_call.1} parent=5 // pred_check
        %p1844 = pneg %p1843
      $region82: #{tpu_custom_call.1} parent=5 // pred_check_branch
        %1846 = sbr.rel (%p1844) target = $region84
      $region83: #{tpu_custom_call.1} parent=5 // pred_region
        %s1847 = ssub.s32 %s28, 2
        // Predicated region
        $region85: #{tpu_custom_call.1} parent=83 // pred_check
          %p1848 = pneg %p213
        $region86: #{tpu_custom_call.1} parent=83 // pred_check_branch
          %1850 = sbr.rel (%p1848) target = $region88
        $region87: #{tpu_custom_call.1} parent=83 // pred_region
          %s1851 = sand.u32 %s198, 1
          %s1852 = scalar_lea.sflag [#allocation4], %s1851
          %s1853 = sand.u32 %s198, 1
          %s1854 = scalar_lea.vmem [#allocation13], %s1853
          %1855 = dma.done %s1852, 16
        $region88: #{tpu_custom_call.1} parent=83 // pred_fallthru
          _
        // Predicated region
        $region89: #{tpu_custom_call.1} parent=83 // pred_check
          %p1856 = pneg %p239
        $region90: #{tpu_custom_call.1} parent=83 // pred_check_branch
          %1858 = sbr.rel (%p1856) target = $region92
        $region91: #{tpu_custom_call.1} parent=83 // pred_region
          %s1859 = sand.u32 %s224, 1
          %s1860 = scalar_lea.sflag [#allocation15], %s1859
          %s1861 = sand.u32 %s224, 1
          %s1862 = scalar_lea.vmem [#allocation14], %s1861
          %1863 = dma.done %s1860, 16
        $region92: #{tpu_custom_call.1} parent=83 // pred_fallthru
          _
      $region84: #{tpu_custom_call.1} parent=5 // pred_fallthru
        _
    $region6: #{tpu_custom_call.1} parent=1 // loop_footer
      %s32 = sadd.s32 1, %s28
    $region7: #{tpu_custom_call.1} parent=1 // loop_footer_branch
      %27 = sbr.rel target = $region3
    $region8: #{tpu_custom_call.1} parent=1 // loop_exit
      _
    %1864 = vsyncpa [#allocation3], 1
    %s1865 = scalar_lea.sflag [#allocation3], 1
    %1866 = vsyncpa %s1865, 1
    %1867 = vsyncpa [#allocation6], 1
    %1868 = vsyncpa [#allocation9], 1
    %1869 = vsyncpa [#allocation12], 1
    %s1870 = scalar_lea.sflag [#allocation12], 1
    %1871 = vsyncpa %s1870, 1
    %1872 = vsyncpa [#allocation4], 1
    %s1873 = scalar_lea.sflag [#allocation4], 1
    %1874 = vsyncpa %s1873, 1
    %1875 = vsyncpa [#allocation15], 1
    %s1876 = scalar_lea.sflag [#allocation15], 1
    %1877 = vsyncpa %s1876, 1

// kernel: tpu_custom_call.1
$region0: #{tpu_custom_call.1}
  #allocation0 [shape = 'u32[]', space=smem, size = 0x4, offset = 0x4, fixed_abs, tag = 'smem constant byte address 0x4 - core index']
  #allocation1 [shape = 'u32[144,128]{1,0:T(1,128)}', space=vmem, size = 0x12000, scoped, tag = 'internal scratch']
  %s0 = inlined_call_operand.hbm [shape: bf16[512,32], index: 0, kind: input, shape index: {}]
  %s1 = inlined_call_operand.hbm [shape: bf16[32,64], index: 1, kind: input, shape index: {}]
  %s2 = inlined_call_operand.hbm [shape: bf16[64,128], index: 2, kind: input, shape index: {}]
  %s3 = inlined_call_operand.hbm [shape: bf16[32,64], index: 3, kind: input, shape index: {}]
  %s4 = inlined_call_operand.hbm [shape: bf16[64,128], index: 4, kind: input, shape index: {}]
  %s5 = inlined_call_operand.hbm [shape: s32[512,1], index: 5, kind: input, shape index: {}]
  %s6 = inlined_call_operand.hbm [shape: f32[2,1,128], index: 6, kind: output, shape index: {0}]
  %s7 = inlined_call_operand.hbm [shape: f32[2,1,128], index: 7, kind: output, shape index: {1}]
  %8 = xla_tuple %s6, %s7
  %s9 = sld [smem:[#allocation0]]
  $region93: #{tpu_custom_call.1} parent=0
    _
  %s11 = ssub.s32 1, %s9
  %s12 = scalar_select 0, %s11, %s9
  $region1: #{tpu_custom_call.1} parent=0
    #allocation2 [shape = 'u8[65536]{0}', space=vmem, size = 0x10000, scoped, tag = 'input window, operand 0']
    #allocation3 [shape = 's32[2]{0}', space=sflag, size = 0x8, scoped, tag = 'scoped memory for tpu_custom_call.1']
    #allocation4 [shape = 's32[2]{0}', space=sflag, size = 0x8, scoped, tag = 'scoped memory for tpu_custom_call.1']
    #allocation5 [shape = 'u8[8192]{0}', space=vmem, size = 0x2000, scoped, tag = 'input window, operand 1, single buffered']
    #allocation6 [shape = 's32[1]{0}', space=sflag, size = 0x4, scoped, tag = 'scoped memory for tpu_custom_call.1']
    #allocation7 [shape = 'u8[16384]{0}', space=vmem, size = 0x4000, scoped, tag = 'input window, operand 2, single buffered']
    #allocation8 [shape = 'u8[8192]{0}', space=vmem, size = 0x2000, scoped, tag = 'input window, operand 3, single buffered']
    #allocation9 [shape = 's32[1]{0}', space=sflag, size = 0x4, scoped, tag = 'scoped memory for tpu_custom_call.1']
    #allocation10 [shape = 'u8[16384]{0}', space=vmem, size = 0x4000, scoped, tag = 'input window, operand 4, single buffered']
    #allocation11 [shape = 'u8[131072]{0}', space=vmem, size = 0x20000, scoped, tag = 'input window, operand 5']
    #allocation12 [shape = 's32[2]{0}', space=sflag, size = 0x8, scoped, tag = 'scoped memory for tpu_custom_call.1']
    #allocation13 [shape = 'u8[1024]{0}', space=vmem, size = 0x400, scoped, tag = 'output window, operand 0']
    #allocation14 [shape = 'u8[1024]{0}', space=vmem, size = 0x400, scoped, tag = 'output window, operand 1']
    #allocation15 [shape = 's32[2]{0}', space=sflag, size = 0x8, scoped, tag = 'scoped memory for tpu_custom_call.1']
    %13 = vsyncpa [#allocation3], 0
    %s14 = scalar_lea.sflag [#allocation3], 1
    %15 = vsyncpa %s14, 0
    %16 = vsyncpa [#allocation6], 0
    %17 = vsyncpa [#allocation9], 0
    %18 = vsyncpa [#allocation12], 0
    %s19 = scalar_lea.sflag [#allocation12], 1
    %20 = vsyncpa %s19, 0
    %21 = vsyncpa [#allocation4], 0
    %s22 = scalar_lea.sflag [#allocation4], 1
    %23 = vsyncpa %s22, 0
    %24 = vsyncpa [#allocation15], 0
    %s25 = scalar_lea.sflag [#allocation15], 1
    %26 = vsyncpa %s25, 0
    loop: start=0, step=1, limit=6
    $region2: #{tpu_custom_call.1} parent=1 // loop_pre_header
      _
    $region3: #{tpu_custom_call.1} parent=1 // loop_header
      %s28 = sphi 0, %s32
      %p29 = scmp.ge.s32.totalorder %s28, 6
      %s35 = sphi 0, %s47
      %s36 = sphi 0, %s43
      %s37 = sphi 0, %s35
      %s38 = sphi 0, %s36
      %s39 = sphi 0, %s37
      %s40 = sphi 0, %s38
      %s54 = sphi 0, %s56
      %s57 = sphi 0, %s54
      %s58 = sphi 0, %s57
      %s74 = sphi 0, %s58
      %s78 = sphi 0, %s78
      %s80 = sphi 0, %s78
      %s81 = sphi 0, %s80
      %s95 = sphi 0, %s81
      %s99 = sphi 0, %s99
      %s101 = sphi 0, %s99
      %s102 = sphi 0, %s101
      %s116 = sphi 0, %s102
      %s120 = sphi 0, %s120
      %s122 = sphi 0, %s120
      %s123 = sphi 0, %s122
      %s137 = sphi 0, %s123
      %s141 = sphi 0, %s141
      %s143 = sphi 0, %s141
      %s144 = sphi 0, %s143
      %s158 = sphi 0, %s144
      %s168 = sphi 0, %s170
      %s171 = sphi 0, %s168
      %s172 = sphi 0, %s171
      %s188 = sphi 0, %s172
      %s194 = sphi 0, %s196
      %s197 = sphi 0, %s194
      %s198 = sphi 0, %s197
      %s214 = sphi 0, %s198
      %s220 = sphi 0, %s222
      %s223 = sphi 0, %s220
      %s224 = sphi 0, %s223
      %s240 = sphi 0, %s224
    $region4: #{tpu_custom_call.1} parent=1 // loop_header_branch
      %31 = sbr.rel (%p29) target = $region8
    $region5: #{tpu_custom_call.1} parent=1 // loop_body
      %s33 = ssub.s32 %s28, 1
      %s34 = ssub.s32 %s28, 2
      %s41 = sadd.s32 1, %s36
      %p42 = scmp.ge.s32.totalorder %s41, 2
      %s43 = scalar_select %p42, 0, %s41
      %s44 = sadd.s32 1, %s35
      %s45 = scalar_select %p42, %s44, %s35
      %p46 = scmp.ge.s32.totalorder %s45, 2
      %s47 = scalar_select %p46, 0, %s45
      %s48 = smul.u32 %s35, 2
      %s49 = sadd.s32 %s48, %s36
      %s50 = smul.u32 %s47, 2
      %s51 = sadd.s32 %s50, %s43
      %s52 = ssub.s32 %s49, %s51
      %p53 = scmp.eq.s32.totalorder %s52, 0
      %s55 = sadd.s32 %s54, 1
      %s56 = scalar_select %p53, %s54, %s55
      %p59 = pneg %p53
      %p60 = scmp.eq.s32.totalorder %s28, 3
      %p61 = por %p59, %p60
      %p62 = scmp.ne.s32.totalorder %s54, %s57
      %p63 = scmp.eq.s32.totalorder %s28, 0
      %p64 = por %p62, %p63
      %p65 = scmp.ne.s32.totalorder %s54, %s57
      %p66 = scmp.eq.s32.totalorder %s33, 3
      %p67 = por %p65, %p66
      %p68 = scmp.ne.s32.totalorder %s57, %s58
      %p69 = scmp.eq.s32.totalorder %s33, 0
      %p70 = por %p68, %p69
      %p71 = scmp.ne.s32.totalorder %s57, %s58
      %p72 = scmp.eq.s32.totalorder %s34, 3
      %p73 = por %p71, %p72
      %p75 = scmp.ne.s32.totalorder %s58, %s74
      %p76 = scmp.eq.s32.totalorder %s34, 0
      %p77 = por %p75, %p76
      %s79 = sadd.s32 %s78, 1
      %p82 = scmp.eq.s32.totalorder %s28, 3
      %p83 = scmp.ne.s32.totalorder %s78, %s80
      %p84 = scmp.eq.s32.totalorder %s28, 0
      %p85 = por %p83, %p84
      %p86 = scmp.ne.s32.totalorder %s78, %s80
      %p87 = scmp.eq.s32.totalorder %s33, 3
      %p88 = por %p86, %p87
      %p89 = scmp.ne.s32.totalorder %s80, %s81
      %p90 = scmp.eq.s32.totalorder %s33, 0
      %p91 = por %p89, %p90
      %p92 = scmp.ne.s32.totalorder %s80, %s81
      %p93 = scmp.eq.s32.totalorder %s34, 3
      %p94 = por %p92, %p93
      %p96 = scmp.ne.s32.totalorder %s81, %s95
      %p97 = scmp.eq.s32.totalorder %s34, 0
      %p98 = por %p96, %p97
      %s100 = sadd.s32 %s99, 1
      %p103 = scmp.eq.s32.totalorder %s28, 3
      %p104 = scmp.ne.s32.totalorder %s99, %s101
      %p105 = scmp.eq.s32.totalorder %s28, 0
      %p106 = por %p104, %p105
      %p107 = scmp.ne.s32.totalorder %s99, %s101
      %p108 = scmp.eq.s32.totalorder %s33, 3
      %p109 = por %p107, %p108
      %p110 = scmp.ne.s32.totalorder %s101, %s102
      %p111 = scmp.eq.s32.totalorder %s33, 0
      %p112 = por %p110, %p111
      %p113 = scmp.ne.s32.totalorder %s101, %s102
      %p114 = scmp.eq.s32.totalorder %s34, 3
      %p115 = por %p113, %p114
      %p117 = scmp.ne.s32.totalorder %s102, %s116
      %p118 = scmp.eq.s32.totalorder %s34, 0
      %p119 = por %p117, %p118
      %s121 = sadd.s32 %s120, 1
      %p124 = scmp.eq.s32.totalorder %s28, 3
      %p125 = scmp.ne.s32.totalorder %s120, %s122
      %p126 = scmp.eq.s32.totalorder %s28, 0
      %p127 = por %p125, %p126
      %p128 = scmp.ne.s32.totalorder %s120, %s122
      %p129 = scmp.eq.s32.totalorder %s33, 3
      %p130 = por %p128, %p129
      %p131 = scmp.ne.s32.totalorder %s122, %s123
      %p132 = scmp.eq.s32.totalorder %s33, 0
      %p133 = por %p131, %p132
      %p134 = scmp.ne.s32.totalorder %s122, %s123
      %p135 = scmp.eq.s32.totalorder %s34, 3
      %p136 = por %p134, %p135
      %p138 = scmp.ne.s32.totalorder %s123, %s137
      %p139 = scmp.eq.s32.totalorder %s34, 0
      %p140 = por %p138, %p139
      %s142 = sadd.s32 %s141, 1
      %p145 = scmp.eq.s32.totalorder %s28, 3
      %p146 = scmp.ne.s32.totalorder %s141, %s143
      %p147 = scmp.eq.s32.totalorder %s28, 0
      %p148 = por %p146, %p147
      %p149 = scmp.ne.s32.totalorder %s141, %s143
      %p150 = scmp.eq.s32.totalorder %s33, 3
      %p151 = por %p149, %p150
      %p152 = scmp.ne.s32.totalorder %s143, %s144
      %p153 = scmp.eq.s32.totalorder %s33, 0
      %p154 = por %p152, %p153
      %p155 = scmp.ne.s32.totalorder %s143, %s144
      %p156 = scmp.eq.s32.totalorder %s34, 3
      %p157 = por %p155, %p156
      %p159 = scmp.ne.s32.totalorder %s144, %s158
      %p160 = scmp.eq.s32.totalorder %s34, 0
      %p161 = por %p159, %p160
      %s162 = smul.u32 %s35, 2
      %s163 = sadd.s32 %s162, %s36
      %s164 = smul.u32 %s47, 2
      %s165 = sadd.s32 %s164, %s43
      %s166 = ssub.s32 %s163, %s165
      %p167 = scmp.eq.s32.totalorder %s166, 0
      %s169 = sadd.s32 %s168, 1
      %s170 = scalar_select %p167, %s168, %s169
      %p173 = pneg %p167
      %p174 = scmp.eq.s32.totalorder %s28, 3
      %p175 = por %p173, %p174
      %p176 = scmp.ne.s32.totalorder %s168, %s171
      %p177 = scmp.eq.s32.totalorder %s28, 0
      %p178 = por %p176, %p177
      %p179 = scmp.ne.s32.totalorder %s168, %s171
      %p180 = scmp.eq.s32.totalorder %s33, 3
      %p181 = por %p179, %p180
      %p182 = scmp.ne.s32.totalorder %s171, %s172
      %p183 = scmp.eq.s32.totalorder %s33, 0
      %p184 = por %p182, %p183
      %p185 = scmp.ne.s32.totalorder %s171, %s172
      %p186 = scmp.eq.s32.totalorder %s34, 3
      %p187 = por %p185, %p186
      %p189 = scmp.ne.s32.totalorder %s172, %s188
      %p190 = scmp.eq.s32.totalorder %s34, 0
      %p191 = por %p189, %p190
      %s192 = ssub.s32 %s35, %s47
      %p193 = scmp.eq.s32.totalorder %s192, 0
      %s195 = sadd.s32 %s194, 1
      %s196 = scalar_select %p193, %s194, %s195
      %p199 = pneg %p193
      %p200 = scmp.eq.s32.totalorder %s28, 3
      %p201 = por %p199, %p200
      %p202 = scmp.ne.s32.totalorder %s194, %s197
      %p203 = scmp.eq.s32.totalorder %s28, 0
      %p204 = por %p202, %p203
      %p205 = scmp.ne.s32.totalorder %s194, %s197
      %p206 = scmp.eq.s32.totalorder %s33, 3
      %p207 = por %p205, %p206
      %p208 = scmp.ne.s32.totalorder %s197, %s198
      %p209 = scmp.eq.s32.totalorder %s33, 0
      %p210 = por %p208, %p209
      %p211 = scmp.ne.s32.totalorder %s197, %s198
      %p212 = scmp.eq.s32.totalorder %s34, 3
      %p213 = por %p211, %p212
      %p215 = scmp.ne.s32.totalorder %s198, %s214
      %p216 = scmp.eq.s32.totalorder %s34, 0
      %p217 = por %p215, %p216
      %s218 = ssub.s32 %s35, %s47
      %p219 = scmp.eq.s32.totalorder %s218, 0
      %s221 = sadd.s32 %s220, 1
      %s222 = scalar_select %p219, %s220, %s221
      %p225 = pneg %p219
      %p226 = scmp.eq.s32.totalorder %s28, 3
      %p227 = por %p225, %p226
      %p228 = scmp.ne.s32.totalorder %s220, %s223
      %p229 = scmp.eq.s32.totalorder %s28, 0
      %p230 = por %p228, %p229
      %p231 = scmp.ne.s32.totalorder %s220, %s223
      %p232 = scmp.eq.s32.totalorder %s33, 3
      %p233 = por %p231, %p232
      %p234 = scmp.ne.s32.totalorder %s223, %s224
      %p235 = scmp.eq.s32.totalorder %s33, 0
      %p236 = por %p234, %p235
      %p237 = scmp.ne.s32.totalorder %s223, %s224
      %p238 = scmp.eq.s32.totalorder %s34, 3
      %p239 = por %p237, %p238
      %p241 = scmp.ne.s32.totalorder %s224, %s240
      %p242 = scmp.eq.s32.totalorder %s34, 0
      %p243 = por %p241, %p242
      %p244 = scmp.le.s32.totalorder 1, %s28
      %p245 = scmp.lt.s32.totalorder %s28, 5
      %p246 = pnand %p244, %p245
      %p247 = pneg %p246
      // Predicated region
      $region9: #{tpu_custom_call.1} parent=5 // pred_check
        _
      $region10: #{tpu_custom_call.1} parent=5 // pred_check_branch
        %249 = sbr.rel (%p246) target = $region12
      $region11: #{tpu_custom_call.1} parent=5 // pred_region
        %s250 = ssub.s32 %s28, 1
        // Predicated region
        $region13: #{tpu_custom_call.1} parent=11 // pred_check
          %p251 = pneg %p91
        $region14: #{tpu_custom_call.1} parent=11 // pred_check_branch
          %253 = sbr.rel (%p251) target = $region16
        $region15: #{tpu_custom_call.1} parent=11 // pred_region
          %s255 = ssub.s32 256, 256
          %256 = vsyncadd [#allocation6], %s255
          %s257 = sshll.u32 [#allocation5], 4
          %s258 = int_to_ptr.vmem [resolvable:$true] %s257
          %263 = dma.hbm_to_vmem [thread:$0]  %s1, 256, %s258, [#allocation6], 64, 64, 4
        $region16: #{tpu_custom_call.1} parent=11 // pred_fallthru
          _
        // Predicated region
        $region17: #{tpu_custom_call.1} parent=11 // pred_check
          %p264 = pneg %p112
        $region18: #{tpu_custom_call.1} parent=11 // pred_check_branch
          %266 = sbr.rel (%p264) target = $region20
        $region19: #{tpu_custom_call.1} parent=11 // pred_region
          %s268 = ssub.s32 512, 512
          %269 = vsyncadd [#allocation6], %s268
          %s270 = sshll.u32 [#allocation7], 4
          %s271 = int_to_ptr.vmem [resolvable:$true] %s270
          %276 = dma.hbm_to_vmem [thread:$0]  %s2, 512, %s271, [#allocation6], 64, 64, 4
        $region20: #{tpu_custom_call.1} parent=11 // pred_fallthru
          _
        // Predicated region
        $region21: #{tpu_custom_call.1} parent=11 // pred_check
          %p277 = pneg %p133
        $region22: #{tpu_custom_call.1} parent=11 // pred_check_branch
          %279 = sbr.rel (%p277) target = $region24
        $region23: #{tpu_custom_call.1} parent=11 // pred_region
          %s281 = ssub.s32 256, 256
          %282 = vsyncadd [#allocation9], %s281
          %s283 = sshll.u32 [#allocation8], 4
          %s284 = int_to_ptr.vmem [resolvable:$true] %s283
          %289 = dma.hbm_to_vmem [thread:$0]  %s3, 256, %s284, [#allocation9], 64, 64, 4
        $region24: #{tpu_custom_call.1} parent=11 // pred_fallthru
          _
        // Predicated region
        $region25: #{tpu_custom_call.1} parent=11 // pred_check
          %p290 = pneg %p154
        $region26: #{tpu_custom_call.1} parent=11 // pred_check_branch
          %292 = sbr.rel (%p290) target = $region28
        $region27: #{tpu_custom_call.1} parent=11 // pred_region
          %s294 = ssub.s32 512, 512
          %295 = vsyncadd [#allocation9], %s294
          %s296 = sshll.u32 [#allocation10], 4
          %s297 = int_to_ptr.vmem [resolvable:$true] %s296
          %302 = dma.hbm_to_vmem [thread:$0]  %s4, 512, %s297, [#allocation9], 64, 64, 4
        $region28: #{tpu_custom_call.1} parent=11 // pred_fallthru
          _
      $region12: #{tpu_custom_call.1} parent=5 // pred_fallthru
        _
      %p303 = scmp.lt.s32.totalorder %s28, 4
      // Predicated region
      $region29: #{tpu_custom_call.1} parent=5 // pred_check
        %p304 = pneg %p303
      $region30: #{tpu_custom_call.1} parent=5 // pred_check_branch
        %306 = sbr.rel (%p304) target = $region32
      $region31: #{tpu_custom_call.1} parent=5 // pred_region
        // Predicated region
        $region33: #{tpu_custom_call.1} parent=31 // pred_check
          %p307 = pneg %p64
        $region34: #{tpu_custom_call.1} parent=31 // pred_check_branch
          %309 = sbr.rel (%p307) target = $region36
        $region35: #{tpu_custom_call.1} parent=31 // pred_region
          %s310 = sand.u32 %s54, 1
          %s311 = scalar_lea.sflag [#allocation3], %s310
          %s312 = sand.u32 %s54, 1
          %s313 = smul.addr %s312, 64
          %s314 = scalar_lea.vmem [#allocation2], %s313
          %s315 = smul.u32 %s35, 2
          %s316 = sadd.s32 %s315, %s36
          %s317 = smul.u32 16, %s316
          %s319 = ssub.s32 1024, 1024
          %320 = vsyncadd %s311, %s319
          %s321 = smul.addr %s317, 64
          %s322 = scalar_lea.hbm %s0, %s321
          %s323 = sshll.u32 %s314, 4
          %s324 = int_to_ptr.vmem [resolvable:$true] %s323
          %329 = dma.hbm_to_vmem [thread:$0]  %s322, 1024, %s324, %s311, 64, 64, 4
        $region36: #{tpu_custom_call.1} parent=31 // pred_fallthru
          _
        // Predicated region
        $region37: #{tpu_custom_call.1} parent=31 // pred_check
          %p330 = pneg %p178
        $region38: #{tpu_custom_call.1} parent=31 // pred_check_branch
          %332 = sbr.rel (%p330) target = $region40
        $region39: #{tpu_custom_call.1} parent=31 // pred_region
          %s333 = sand.u32 %s168, 1
          %s334 = scalar_lea.sflag [#allocation12], %s333
          %s335 = sand.u32 %s168, 1
          %s336 = smul.addr %s335, 128
          %s337 = scalar_lea.vmem [#allocation11], %s336
          %s338 = smul.u32 %s35, 2
          %s339 = sadd.s32 %s338, %s36
          %s340 = smul.u32 16, %s339
          %s342 = ssub.s32 2048, 2048
          %343 = vsyncadd %s334, %s342
          %s344 = smul.addr %s340, 128
          %s345 = scalar_lea.hbm %s5, %s344
          %s346 = sshll.u32 %s337, 4
          %s347 = int_to_ptr.vmem [resolvable:$true] %s346
          %352 = dma.hbm_to_vmem [thread:$0]  %s345, 2048, %s347, %s334, 128, 128, 8
        $region40: #{tpu_custom_call.1} parent=31 // pred_fallthru
          _
      $region32: #{tpu_custom_call.1} parent=5 // pred_fallthru
        _
      %p353 = scmp.le.s32.totalorder 1, %s28
      %p354 = scmp.lt.s32.totalorder %s28, 5
      %p355 = pnand %p353, %p354
      %p356 = pneg %p355
      // Predicated region
      $region41: #{tpu_custom_call.1} parent=5 // pred_check
        _
      $region42: #{tpu_custom_call.1} parent=5 // pred_check_branch
        %358 = sbr.rel (%p355) target = $region44
      $region43: #{tpu_custom_call.1} parent=5 // pred_region
        %s359 = ssub.s32 %s28, 1
        %s360 = sand.u32 %s57, 1
        %s361 = scalar_lea.sflag [#allocation3], %s360
        %s362 = sand.u32 %s57, 1
        %s363 = smul.addr %s362, 64
        %s364 = scalar_lea.vmem [#allocation2], %s363
        // Predicated region
        $region45: #{tpu_custom_call.1} parent=43 // pred_check
          %p365 = pneg %p70
        $region46: #{tpu_custom_call.1} parent=43 // pred_check_branch
          %367 = sbr.rel (%p365) target = $region48
        $region47: #{tpu_custom_call.1} parent=43 // pred_region
          %368 = dma.done %s361, 1024
        $region48: #{tpu_custom_call.1} parent=43 // pred_fallthru
          _
        // Predicated region
        $region49: #{tpu_custom_call.1} parent=43 // pred_check
          %p369 = pneg %p91
        $region50: #{tpu_custom_call.1} parent=43 // pred_check_branch
          %371 = sbr.rel (%p369) target = $region52
        $region51: #{tpu_custom_call.1} parent=43 // pred_region
          %372 = dma.done [#allocation6], 256
        $region52: #{tpu_custom_call.1} parent=43 // pred_fallthru
          _
        // Predicated region
        $region53: #{tpu_custom_call.1} parent=43 // pred_check
          %p373 = pneg %p112
        $region54: #{tpu_custom_call.1} parent=43 // pred_check_branch
          %375 = sbr.rel (%p373) target = $region56
        $region55: #{tpu_custom_call.1} parent=43 // pred_region
          %376 = dma.done [#allocation6], 512
        $region56: #{tpu_custom_call.1} parent=43 // pred_fallthru
          _
        // Predicated region
        $region57: #{tpu_custom_call.1} parent=43 // pred_check
          %p377 = pneg %p133
        $region58: #{tpu_custom_call.1} parent=43 // pred_check_branch
          %379 = sbr.rel (%p377) target = $region60
        $region59: #{tpu_custom_call.1} parent=43 // pred_region
          %380 = dma.done [#allocation9], 256
        $region60: #{tpu_custom_call.1} parent=43 // pred_fallthru
          _
        // Predicated region
        $region61: #{tpu_custom_call.1} parent=43 // pred_check
          %p381 = pneg %p154
        $region62: #{tpu_custom_call.1} parent=43 // pred_check_branch
          %383 = sbr.rel (%p381) target = $region64
        $region63: #{tpu_custom_call.1} parent=43 // pred_region
          %384 = dma.done [#allocation9], 512
        $region64: #{tpu_custom_call.1} parent=43 // pred_fallthru
          _
        %s385 = sand.u32 %s171, 1
        %s386 = scalar_lea.sflag [#allocation12], %s385
        %s387 = sand.u32 %s171, 1
        %s388 = smul.addr %s387, 128
        %s389 = scalar_lea.vmem [#allocation11], %s388
        // Predicated region
        $region65: #{tpu_custom_call.1} parent=43 // pred_check
          %p390 = pneg %p184
        $region66: #{tpu_custom_call.1} parent=43 // pred_check_branch
          %392 = sbr.rel (%p390) target = $region68
        $region67: #{tpu_custom_call.1} parent=43 // pred_region
          %393 = dma.done %s386, 2048
        $region68: #{tpu_custom_call.1} parent=43 // pred_fallthru
          _
        %s394 = sand.u32 %s57, 1
        %s395 = scalar_lea.sflag [#allocation3], %s394
        %s396 = sand.u32 %s57, 1
        %s397 = smul.addr %s396, 64
        %s398 = scalar_lea.vmem [#allocation2], %s397
        %p399 = pneg %p70
        %p400 = pneg %p67
        %p401 = pneg %p91
        %p402 = pneg %p88
        %p403 = pneg %p112
        %p404 = pneg %p109
        %p405 = pneg %p133
        %p406 = pneg %p130
        %p407 = pneg %p154
        %p408 = pneg %p151
        %s409 = sand.u32 %s171, 1
        %s410 = scalar_lea.sflag [#allocation12], %s409
        %s411 = sand.u32 %s171, 1
        %s412 = smul.addr %s411, 128
        %s413 = scalar_lea.vmem [#allocation11], %s412
        %p414 = pneg %p184
        %p415 = pneg %p181
        %p416 = pneg %p210
        %p417 = pneg %p207
        %s418 = sand.u32 %s197, 1
        %s419 = scalar_lea.sflag [#allocation4], %s418
        %s420 = sand.u32 %s197, 1
        %s421 = scalar_lea.vmem [#allocation13], %s420
        %p422 = pneg %p236
        %p423 = pneg %p233
        %s424 = sand.u32 %s223, 1
        %s425 = scalar_lea.sflag [#allocation15], %s424
        %s426 = sand.u32 %s223, 1
        %s427 = scalar_lea.vmem [#allocation14], %s426
        %s428 = smul.u32 %s37, 2
        %s429 = sadd.s32 %s428, %s38
        %s430 = smul.u32 16, %s429
        %s431 = smul.u32 %s37, 2
        %s432 = sadd.s32 %s431, %s38
        %s433 = smul.u32 16, %s432
        %p435 = scmp.eq.s32.totalorder %s38, 0
        // Predicated region
        $region69: #{tpu_custom_call.1} parent=43 // pred_check
          %p436 = pneg %p435
        $region70: #{tpu_custom_call.1} parent=43 // pred_check_branch
          %438 = sbr.rel (%p436) target = $region72
        $region71: #{tpu_custom_call.1} parent=43 // pred_region
          %439 = vst [vmem:[%s421] sm:$0x1] 0.0
          %440 = vst [vmem:[%s427] sm:$0x1] 0.0
        $region72: #{tpu_custom_call.1} parent=43 // pred_fallthru
          _
        %v441 = vld [vmem:[%s364] sm:$0xf]
        %v442 = vld [vmem:[%s364 + $0x4] sm:$0xf]
        %v443 = vld [vmem:[%s364 + $0x8] sm:$0xf]
        %v444 = vld [vmem:[%s364 + $0xc] sm:$0xf]
        %v445 = vld [vmem:[%s364 + $0x10] sm:$0xf]
        %v446 = vld [vmem:[%s364 + $0x14] sm:$0xf]
        %v447 = vld [vmem:[%s364 + $0x18] sm:$0xf]
        %v448 = vld [vmem:[%s364 + $0x1c] sm:$0xf]
        %v449 = vld [vmem:[%s364 + $0x20] sm:$0xf]
        %v450 = vld [vmem:[%s364 + $0x24] sm:$0xf]
        %v451 = vld [vmem:[%s364 + $0x28] sm:$0xf]
        %v452 = vld [vmem:[%s364 + $0x2c] sm:$0xf]
        %v453 = vld [vmem:[%s364 + $0x30] sm:$0xf]
        %v454 = vld [vmem:[%s364 + $0x34] sm:$0xf]
        %v455 = vld [vmem:[%s364 + $0x38] sm:$0xf]
        %v456 = vld [vmem:[%s364 + $0x3c] sm:$0xf]
        %v457 = vld [vmem:[#allocation5] sm:$0xf]
        %v458 = vld [vmem:[#allocation5 + $0x4] sm:$0xf]
        %v459 = vld [vmem:[#allocation5 + $0x8] sm:$0xf]
        %v460 = vld [vmem:[#allocation5 + $0xc] sm:$0xf]
        %v477 = vunpack.c.l.b16 %v441
        %v478 = vunpack.c.l.b16 %v442
        %v479 = vunpack.c.l.b16 %v443
        %v480 = vunpack.c.l.b16 %v444
        %v481 = vunpack.c.l.b16 %v445
        %v482 = vunpack.c.l.b16 %v446
        %v483 = vunpack.c.l.b16 %v447
        %v484 = vunpack.c.l.b16 %v448
        %v485 = vunpack.c.l.b16 %v449
        %v486 = vunpack.c.l.b16 %v450
        %v487 = vunpack.c.l.b16 %v451
        %v488 = vunpack.c.l.b16 %v452
        %v489 = vunpack.c.l.b16 %v453
        %v490 = vunpack.c.l.b16 %v454
        %v491 = vunpack.c.l.b16 %v455
        %v492 = vunpack.c.l.b16 %v456
        %v493 = vpack.c.b16 %v478, %v477
        %v494 = vpack.c.b16 %v480, %v479
        %v495 = vpack.c.b16 %v482, %v481
        %v496 = vpack.c.b16 %v484, %v483
        %v497 = vpack.c.b16 %v486, %v485
        %v498 = vpack.c.b16 %v488, %v487
        %v499 = vpack.c.b16 %v490, %v489
        %v500 = vpack.c.b16 %v492, %v491
        %v505 = vunpack.c.l.b16 %v457
        %v506 = vunpack.c.l.b16 %v458
        %v507 = vunpack.c.l.b16 %v459
        %v508 = vunpack.c.l.b16 %v460
        %v509 = vpack.c.b16 %v506, %v505
        %v510 = vpack.c.b16 %v508, %v507
        %vm513 = vcmask 261120
        %v515 = vsel %vm513, %v493, 0
        %v518 = vsel %vm513, %v494, 0
        %v521 = vsel %vm513, %v495, 0
        %v524 = vsel %vm513, %v496, 0
        %v527 = vsel %vm513, %v497, 0
        %v530 = vsel %vm513, %v498, 0
        %v533 = vsel %vm513, %v499, 0
        %v536 = vsel %vm513, %v500, 0
        %538 = vmatprep.subr.bf16.mxu0 0
        %539 = vmatpush1.bf16.msra.mxu0 %v509
        %540 = vmatprep.subr.bf16.mxu0 0
        %541 = vmatpush1.bf16.msra.mxu0 %v510
        %542 = vmatprep.subr.bf16.mxu0 0
        %543 = vmatpush1.bf16.msra.mxu0 0
        %544 = vmatprep.subr.bf16.mxu0 0
        %545 = vmatpush1.bf16.msra.mxu0 0
        %546 = vmatprep.subr.bf16.mxu0 0
        %547 = vmatpush1.bf16.msra.mxu0 0
        %548 = vmatprep.subr.bf16.mxu0 0
        %549 = vmatpush1.bf16.msra.mxu0 0
        %550 = vmatprep.subr.bf16.mxu0 0
        %551 = vmatpush1.bf16.msra.mxu0 0
        %552 = vmatprep.subr.bf16.mxu0 0
        %553 = vmatpush1.bf16.msra.mxu0 0
        %554 = vmatprep.subr.bf16.mxu0 0
        %555 = vmatpush1.bf16.msra.mxu0 0
        %556 = vmatprep.subr.bf16.mxu0 0
        %557 = vmatpush1.bf16.msra.mxu0 0
        %558 = vmatprep.subr.bf16.mxu0 0
        %559 = vmatpush1.bf16.msra.mxu0 0
        %560 = vmatprep.subr.bf16.mxu0 0
        %561 = vmatpush1.bf16.msra.mxu0 0
        %562 = vmatprep.subr.bf16.mxu0 0
        %563 = vmatpush1.bf16.msra.mxu0 0
        %564 = vmatprep.subr.bf16.mxu0 0
        %565 = vmatpush1.bf16.msra.mxu0 0
        %566 = vmatprep.subr.bf16.mxu0 0
        %567 = vmatpush1.bf16.msra.mxu0 0
        %568 = vmatprep.subr.bf16.mxu0 0
        %569 = vmatpush1.bf16.msra.mxu0 0
        %570 = vmatprep.mubr.bf16.mxu0 0
        %571 = vmatmul.mubr.bf16.gmra.mrb[0].mxu0 %v515
        %v572 = vpop.f32.mrb[0].mxu0
        %v573 = vadd.f32 0.0, %v572
        %v574 = vpop.f32.mrb[0].mxu0
        %v575 = vpop.f32.mrb[0].mxu0
        %v576 = vadd.f32 0.0, %v575
        %v577 = vpop.f32.mrb[0].mxu0
        %578 = vmatprep.mubr.bf16.mxu0 0
        %579 = vmatmul.mubr.bf16.gmra.mrb[0].mxu0 %v518
        %v580 = vpop.f32.mrb[0].mxu0
        %v581 = vadd.f32 0.0, %v580
        %v582 = vpop.f32.mrb[0].mxu0
        %v583 = vpop.f32.mrb[0].mxu0
        %v584 = vadd.f32 0.0, %v583
        %v585 = vpop.f32.mrb[0].mxu0
        %586 = vmatprep.mubr.bf16.mxu0 0
        %587 = vmatmul.mubr.bf16.gmra.mrb[0].mxu0 %v521
        %v588 = vpop.f32.mrb[0].mxu0
        %v589 = vadd.f32 0.0, %v588
        %v590 = vpop.f32.mrb[0].mxu0
        %v591 = vpop.f32.mrb[0].mxu0
        %v592 = vadd.f32 0.0, %v591
        %v593 = vpop.f32.mrb[0].mxu0
        %594 = vmatprep.mubr.bf16.mxu0 0
        %595 = vmatmul.mubr.bf16.gmra.mrb[0].mxu0 %v524
        %v596 = vpop.f32.mrb[0].mxu0
        %v597 = vadd.f32 0.0, %v596
        %v598 = vpop.f32.mrb[0].mxu0
        %v599 = vpop.f32.mrb[0].mxu0
        %v600 = vadd.f32 0.0, %v599
        %v601 = vpop.f32.mrb[0].mxu0
        %602 = vmatprep.mubr.bf16.mxu0 0
        %603 = vmatmul.mubr.bf16.gmra.mrb[0].mxu0 %v527
        %v604 = vpop.f32.mrb[0].mxu0
        %v605 = vadd.f32 0.0, %v604
        %v606 = vpop.f32.mrb[0].mxu0
        %v607 = vpop.f32.mrb[0].mxu0
        %v608 = vadd.f32 0.0, %v607
        %v609 = vpop.f32.mrb[0].mxu0
        %610 = vmatprep.mubr.bf16.mxu0 0
        %611 = vmatmul.mubr.bf16.gmra.mrb[0].mxu0 %v530
        %v612 = vpop.f32.mrb[0].mxu0
        %v613 = vadd.f32 0.0, %v612
        %v614 = vpop.f32.mrb[0].mxu0
        %v615 = vpop.f32.mrb[0].mxu0
        %v616 = vadd.f32 0.0, %v615
        %v617 = vpop.f32.mrb[0].mxu0
        %618 = vmatprep.mubr.bf16.mxu0 0
        %619 = vmatmul.mubr.bf16.gmra.mrb[0].mxu0 %v533
        %v620 = vpop.f32.mrb[0].mxu0
        %v621 = vadd.f32 0.0, %v620
        %v622 = vpop.f32.mrb[0].mxu0
        %v623 = vpop.f32.mrb[0].mxu0
        %v624 = vadd.f32 0.0, %v623
        %v625 = vpop.f32.mrb[0].mxu0
        %626 = vmatprep.mubr.bf16.mxu0 0
        %627 = vmatmul.mubr.bf16.gmra.mrb[0].mxu0 %v536
        %v628 = vpop.f32.mrb[0].mxu0
        %v629 = vadd.f32 0.0, %v628
        %v630 = vpop.f32.mrb[0].mxu0
        %v631 = vpop.f32.mrb[0].mxu0
        %v632 = vadd.f32 0.0, %v631
        %v633 = vpop.f32.mrb[0].mxu0
        %634 = vdwg.mxu0
        %v635 = vmax.f32 %v573, 0.0
        %v636 = vmax.f32 %v576, 0.0
        %v637 = vmax.f32 %v581, 0.0
        %v638 = vmax.f32 %v584, 0.0
        %v639 = vmax.f32 %v589, 0.0
        %v640 = vmax.f32 %v592, 0.0
        %v641 = vmax.f32 %v597, 0.0
        %v642 = vmax.f32 %v600, 0.0
        %v643 = vmax.f32 %v605, 0.0
        %v644 = vmax.f32 %v608, 0.0
        %v645 = vmax.f32 %v613, 0.0
        %v646 = vmax.f32 %v616, 0.0
        %v647 = vmax.f32 %v621, 0.0
        %v648 = vmax.f32 %v624, 0.0
        %v649 = vmax.f32 %v629, 0.0
        %v650 = vmax.f32 %v632, 0.0
        %v651 = vpack.c.bf16 %v636, %v635
        %v652 = vpack.c.bf16 %v638, %v637
        %v653 = vpack.c.bf16 %v640, %v639
        %v654 = vpack.c.bf16 %v642, %v641
        %v655 = vpack.c.bf16 %v644, %v643
        %v656 = vpack.c.bf16 %v646, %v645
        %v657 = vpack.c.bf16 %v648, %v647
        %v658 = vpack.c.bf16 %v650, %v649
        %v659 = vld [vmem:[#allocation7] sm:$0xf]
        %v660 = vld [vmem:[#allocation7 + $0x4] sm:$0xf]
        %v661 = vld [vmem:[#allocation7 + $0x8] sm:$0xf]
        %v662 = vld [vmem:[#allocation7 + $0xc] sm:$0xf]
        %v663 = vld [vmem:[#allocation7 + $0x10] sm:$0xf]
        %v664 = vld [vmem:[#allocation7 + $0x14] sm:$0xf]
        %v665 = vld [vmem:[#allocation7 + $0x18] sm:$0xf]
        %v666 = vld [vmem:[#allocation7 + $0x1c] sm:$0xf]
        %v675 = vunpack.c.l.b16 %v659
        %v676 = vunpack.c.l.b16 %v660
        %v677 = vunpack.c.l.b16 %v661
        %v678 = vunpack.c.l.b16 %v662
        %v679 = vunpack.c.l.b16 %v663
        %v680 = vunpack.c.l.b16 %v664
        %v681 = vunpack.c.l.b16 %v665
        %v682 = vunpack.c.l.b16 %v666
        %v683 = vpack.c.b16 %v676, %v675
        %v684 = vpack.c.b16 %v678, %v677
        %v685 = vpack.c.b16 %v680, %v679
        %v686 = vpack.c.b16 %v682, %v681
        %vm691 = vcmask 523264
        %v693 = vsel %vm691, %v651, 0
        %v696 = vsel %vm691, %v652, 0
        %v699 = vsel %vm691, %v653, 0
        %v702 = vsel %vm691, %v654, 0
        %v705 = vsel %vm691, %v655, 0
        %v708 = vsel %vm691, %v656, 0
        %v711 = vsel %vm691, %v657, 0
        %v714 = vsel %vm691, %v658, 0
        %716 = vmatprep.subr.bf16.mxu0 0
        %717 = vmatpush1.bf16.msra.mxu0 %v683
        %718 = vmatprep.subr.bf16.mxu0 0
        %719 = vmatpush1.bf16.msra.mxu0 %v684
        %720 = vmatprep.subr.bf16.mxu0 0
        %721 = vmatpush1.bf16.msra.mxu0 %v685
        %722 = vmatprep.subr.bf16.mxu0 0
        %723 = vmatpush1.bf16.msra.mxu0 %v686
        %724 = vmatprep.subr.bf16.mxu0 0
        %725 = vmatpush1.bf16.msra.mxu0 0
        %726 = vmatprep.subr.bf16.mxu0 0
        %727 = vmatpush1.bf16.msra.mxu0 0
        %728 = vmatprep.subr.bf16.mxu0 0
        %729 = vmatpush1.bf16.msra.mxu0 0
        %730 = vmatprep.subr.bf16.mxu0 0
        %731 = vmatpush1.bf16.msra.mxu0 0
        %732 = vmatprep.subr.bf16.mxu0 0
        %733 = vmatpush1.bf16.msra.mxu0 0
        %734 = vmatprep.subr.bf16.mxu0 0
        %735 = vmatpush1.bf16.msra.mxu0 0
        %736 = vmatprep.subr.bf16.mxu0 0
        %737 = vmatpush1.bf16.msra.mxu0 0
        %738 = vmatprep.subr.bf16.mxu0 0
        %739 = vmatpush1.bf16.msra.mxu0 0
        %740 = vmatprep.subr.bf16.mxu0 0
        %741 = vmatpush1.bf16.msra.mxu0 0
        %742 = vmatprep.subr.bf16.mxu0 0
        %743 = vmatpush1.bf16.msra.mxu0 0
        %744 = vmatprep.subr.bf16.mxu0 0
        %745 = vmatpush1.bf16.msra.mxu0 0
        %746 = vmatprep.subr.bf16.mxu0 0
        %747 = vmatpush1.bf16.msra.mxu0 0
        %748 = vmatprep.mubr.bf16.mxu0 0
        %749 = vmatmul.mubr.bf16.gmra.mrb[0].mxu0 %v693
        %v750 = vpop.f32.mrb[0].mxu0
        %v751 = vadd.f32 0.0, %v750
        %v752 = vpop.f32.mrb[0].mxu0
        %v753 = vpop.f32.mrb[0].mxu0
        %v754 = vadd.f32 0.0, %v753
        %v755 = vpop.f32.mrb[0].mxu0
        %756 = vmatprep.mubr.bf16.mxu0 0
        %757 = vmatmul.mubr.bf16.gmra.mrb[0].mxu0 %v696
        %v758 = vpop.f32.mrb[0].mxu0
        %v759 = vadd.f32 0.0, %v758
        %v760 = vpop.f32.mrb[0].mxu0
        %v761 = vpop.f32.mrb[0].mxu0
        %v762 = vadd.f32 0.0, %v761
        %v763 = vpop.f32.mrb[0].mxu0
        %764 = vmatprep.mubr.bf16.mxu0 0
        %765 = vmatmul.mubr.bf16.gmra.mrb[0].mxu0 %v699
        %v766 = vpop.f32.mrb[0].mxu0
        %v767 = vadd.f32 0.0, %v766
        %v768 = vpop.f32.mrb[0].mxu0
        %v769 = vpop.f32.mrb[0].mxu0
        %v770 = vadd.f32 0.0, %v769
        %v771 = vpop.f32.mrb[0].mxu0
        %772 = vmatprep.mubr.bf16.mxu0 0
        %773 = vmatmul.mubr.bf16.gmra.mrb[0].mxu0 %v702
        %v774 = vpop.f32.mrb[0].mxu0
        %v775 = vadd.f32 0.0, %v774
        %v776 = vpop.f32.mrb[0].mxu0
        %v777 = vpop.f32.mrb[0].mxu0
        %v778 = vadd.f32 0.0, %v777
        %v779 = vpop.f32.mrb[0].mxu0
        %780 = vmatprep.mubr.bf16.mxu0 0
        %781 = vmatmul.mubr.bf16.gmra.mrb[0].mxu0 %v705
        %v782 = vpop.f32.mrb[0].mxu0
        %v783 = vadd.f32 0.0, %v782
        %v784 = vpop.f32.mrb[0].mxu0
        %v785 = vpop.f32.mrb[0].mxu0
        %v786 = vadd.f32 0.0, %v785
        %v787 = vpop.f32.mrb[0].mxu0
        %788 = vmatprep.mubr.bf16.mxu0 0
        %789 = vmatmul.mubr.bf16.gmra.mrb[0].mxu0 %v708
        %v790 = vpop.f32.mrb[0].mxu0
        %v791 = vadd.f32 0.0, %v790
        %v792 = vpop.f32.mrb[0].mxu0
        %v793 = vpop.f32.mrb[0].mxu0
        %v794 = vadd.f32 0.0, %v793
        %v795 = vpop.f32.mrb[0].mxu0
        %796 = vmatprep.mubr.bf16.mxu0 0
        %797 = vmatmul.mubr.bf16.gmra.mrb[0].mxu0 %v711
        %v798 = vpop.f32.mrb[0].mxu0
        %v799 = vadd.f32 0.0, %v798
        %v800 = vpop.f32.mrb[0].mxu0
        %v801 = vpop.f32.mrb[0].mxu0
        %v802 = vadd.f32 0.0, %v801
        %v803 = vpop.f32.mrb[0].mxu0
        %804 = vmatprep.mubr.bf16.mxu0 0
        %805 = vmatmul.mubr.bf16.gmra.mrb[0].mxu0 %v714
        %v806 = vpop.f32.mrb[0].mxu0
        %v807 = vadd.f32 0.0, %v806
        %v808 = vpop.f32.mrb[0].mxu0
        %v809 = vpop.f32.mrb[0].mxu0
        %v810 = vadd.f32 0.0, %v809
        %v811 = vpop.f32.mrb[0].mxu0
        %812 = vdwg.mxu0
        %v813 = vld [vmem:[#allocation8] sm:$0xf]
        %v814 = vld [vmem:[#allocation8 + $0x4] sm:$0xf]
        %v815 = vld [vmem:[#allocation8 + $0x8] sm:$0xf]
        %v816 = vld [vmem:[#allocation8 + $0xc] sm:$0xf]
        %v821 = vunpack.c.l.b16 %v813
        %v822 = vunpack.c.l.b16 %v814
        %v823 = vunpack.c.l.b16 %v815
        %v824 = vunpack.c.l.b16 %v816
        %v825 = vpack.c.b16 %v822, %v821
        %v826 = vpack.c.b16 %v824, %v823
        %829 = vmatprep.subr.bf16.mxu0 0
        %830 = vmatpush1.bf16.msra.mxu0 %v825
        %831 = vmatprep.subr.bf16.mxu0 0
        %832 = vmatpush1.bf16.msra.mxu0 %v826
        %833 = vmatprep.subr.bf16.mxu0 0
        %834 = vmatpush1.bf16.msra.mxu0 0
        %835 = vmatprep.subr.bf16.mxu0 0
        %836 = vmatpush1.bf16.msra.mxu0 0
        %837 = vmatprep.subr.bf16.mxu0 0
        %838 = vmatpush1.bf16.msra.mxu0 0
        %839 = vmatprep.subr.bf16.mxu0 0
        %840 = vmatpush1.bf16.msra.mxu0 0
        %841 = vmatprep.subr.bf16.mxu0 0
        %842 = vmatpush1.bf16.msra.mxu0 0
        %843 = vmatprep.subr.bf16.mxu0 0
        %844 = vmatpush1.bf16.msra.mxu0 0
        %845 = vmatprep.subr.bf16.mxu0 0
        %846 = vmatpush1.bf16.msra.mxu0 0
        %847 = vmatprep.subr.bf16.mxu0 0
        %848 = vmatpush1.bf16.msra.mxu0 0
        %849 = vmatprep.subr.bf16.mxu0 0
        %850 = vmatpush1.bf16.msra.mxu0 0
        %851 = vmatprep.subr.bf16.mxu0 0
        %852 = vmatpush1.bf16.msra.mxu0 0
        %853 = vmatprep.subr.bf16.mxu0 0
        %854 = vmatpush1.bf16.msra.mxu0 0
        %855 = vmatprep.subr.bf16.mxu0 0
        %856 = vmatpush1.bf16.msra.mxu0 0
        %857 = vmatprep.subr.bf16.mxu0 0
        %858 = vmatpush1.bf16.msra.mxu0 0
        %859 = vmatprep.subr.bf16.mxu0 0
        %860 = vmatpush1.bf16.msra.mxu0 0
        %861 = vmatprep.mubr.bf16.mxu0 0
        %862 = vmatmul.mubr.bf16.gmra.mrb[0].mxu0 %v515
        %v863 = vpop.f32.mrb[0].mxu0
        %v864 = vadd.f32 0.0, %v863
        %v865 = vpop.f32.mrb[0].mxu0
        %v866 = vpop.f32.mrb[0].mxu0
        %v867 = vadd.f32 0.0, %v866
        %v868 = vpop.f32.mrb[0].mxu0
        %869 = vmatprep.mubr.bf16.mxu0 0
        %870 = vmatmul.mubr.bf16.gmra.mrb[0].mxu0 %v518
        %v871 = vpop.f32.mrb[0].mxu0
        %v872 = vadd.f32 0.0, %v871
        %v873 = vpop.f32.mrb[0].mxu0
        %v874 = vpop.f32.mrb[0].mxu0
        %v875 = vadd.f32 0.0, %v874
        %v876 = vpop.f32.mrb[0].mxu0
        %877 = vmatprep.mubr.bf16.mxu0 0
        %878 = vmatmul.mubr.bf16.gmra.mrb[0].mxu0 %v521
        %v879 = vpop.f32.mrb[0].mxu0
        %v880 = vadd.f32 0.0, %v879
        %v881 = vpop.f32.mrb[0].mxu0
        %v882 = vpop.f32.mrb[0].mxu0
        %v883 = vadd.f32 0.0, %v882
        %v884 = vpop.f32.mrb[0].mxu0
        %885 = vmatprep.mubr.bf16.mxu0 0
        %886 = vmatmul.mubr.bf16.gmra.mrb[0].mxu0 %v524
        %v887 = vpop.f32.mrb[0].mxu0
        %v888 = vadd.f32 0.0, %v887
        %v889 = vpop.f32.mrb[0].mxu0
        %v890 = vpop.f32.mrb[0].mxu0
        %v891 = vadd.f32 0.0, %v890
        %v892 = vpop.f32.mrb[0].mxu0
        %893 = vmatprep.mubr.bf16.mxu0 0
        %894 = vmatmul.mubr.bf16.gmra.mrb[0].mxu0 %v527
        %v895 = vpop.f32.mrb[0].mxu0
        %v896 = vadd.f32 0.0, %v895
        %v897 = vpop.f32.mrb[0].mxu0
        %v898 = vpop.f32.mrb[0].mxu0
        %v899 = vadd.f32 0.0, %v898
        %v900 = vpop.f32.mrb[0].mxu0
        %901 = vmatprep.mubr.bf16.mxu0 0
        %902 = vmatmul.mubr.bf16.gmra.mrb[0].mxu0 %v530
        %v903 = vpop.f32.mrb[0].mxu0
        %v904 = vadd.f32 0.0, %v903
        %v905 = vpop.f32.mrb[0].mxu0
        %v906 = vpop.f32.mrb[0].mxu0
        %v907 = vadd.f32 0.0, %v906
        %v908 = vpop.f32.mrb[0].mxu0
        %909 = vmatprep.mubr.bf16.mxu0 0
        %910 = vmatmul.mubr.bf16.gmra.mrb[0].mxu0 %v533
        %v911 = vpop.f32.mrb[0].mxu0
        %v912 = vadd.f32 0.0, %v911
        %v913 = vpop.f32.mrb[0].mxu0
        %v914 = vpop.f32.mrb[0].mxu0
        %v915 = vadd.f32 0.0, %v914
        %v916 = vpop.f32.mrb[0].mxu0
        %917 = vmatprep.mubr.bf16.mxu0 0
        %918 = vmatmul.mubr.bf16.gmra.mrb[0].mxu0 %v536
        %v919 = vpop.f32.mrb[0].mxu0
        %v920 = vadd.f32 0.0, %v919
        %v921 = vpop.f32.mrb[0].mxu0
        %v922 = vpop.f32.mrb[0].mxu0
        %v923 = vadd.f32 0.0, %v922
        %v924 = vpop.f32.mrb[0].mxu0
        %925 = vdwg.mxu0
        %v926 = vmax.f32 %v864, 0.0
        %v927 = vmax.f32 %v867, 0.0
        %v928 = vmax.f32 %v872, 0.0
        %v929 = vmax.f32 %v875, 0.0
        %v930 = vmax.f32 %v880, 0.0
        %v931 = vmax.f32 %v883, 0.0
        %v932 = vmax.f32 %v888, 0.0
        %v933 = vmax.f32 %v891, 0.0
        %v934 = vmax.f32 %v896, 0.0
        %v935 = vmax.f32 %v899, 0.0
        %v936 = vmax.f32 %v904, 0.0
        %v937 = vmax.f32 %v907, 0.0
        %v938 = vmax.f32 %v912, 0.0
        %v939 = vmax.f32 %v915, 0.0
        %v940 = vmax.f32 %v920, 0.0
        %v941 = vmax.f32 %v923, 0.0
        %v942 = vpack.c.bf16 %v927, %v926
        %v943 = vpack.c.bf16 %v929, %v928
        %v944 = vpack.c.bf16 %v931, %v930
        %v945 = vpack.c.bf16 %v933, %v932
        %v946 = vpack.c.bf16 %v935, %v934
        %v947 = vpack.c.bf16 %v937, %v936
        %v948 = vpack.c.bf16 %v939, %v938
        %v949 = vpack.c.bf16 %v941, %v940
        %v950 = vld [vmem:[#allocation10] sm:$0xf]
        %v951 = vld [vmem:[#allocation10 + $0x4] sm:$0xf]
        %v952 = vld [vmem:[#allocation10 + $0x8] sm:$0xf]
        %v953 = vld [vmem:[#allocation10 + $0xc] sm:$0xf]
        %v954 = vld [vmem:[#allocation10 + $0x10] sm:$0xf]
        %v955 = vld [vmem:[#allocation10 + $0x14] sm:$0xf]
        %v956 = vld [vmem:[#allocation10 + $0x18] sm:$0xf]
        %v957 = vld [vmem:[#allocation10 + $0x1c] sm:$0xf]
        %v966 = vunpack.c.l.b16 %v950
        %v967 = vunpack.c.l.b16 %v951
        %v968 = vunpack.c.l.b16 %v952
        %v969 = vunpack.c.l.b16 %v953
        %v970 = vunpack.c.l.b16 %v954
        %v971 = vunpack.c.l.b16 %v955
        %v972 = vunpack.c.l.b16 %v956
        %v973 = vunpack.c.l.b16 %v957
        %v974 = vpack.c.b16 %v967, %v966
        %v975 = vpack.c.b16 %v969, %v968
        %v976 = vpack.c.b16 %v971, %v970
        %v977 = vpack.c.b16 %v973, %v972
        %v983 = vsel %vm691, %v942, 0
        %v986 = vsel %vm691, %v943, 0
        %v989 = vsel %vm691, %v944, 0
        %v992 = vsel %vm691, %v945, 0
        %v995 = vsel %vm691, %v946, 0
        %v998 = vsel %vm691, %v947, 0
        %v1001 = vsel %vm691, %v948, 0
        %v1004 = vsel %vm691, %v949, 0
        %1006 = vmatprep.subr.bf16.mxu0 0
        %1007 = vmatpush1.bf16.msra.mxu0 %v974
        %1008 = vmatprep.subr.bf16.mxu0 0
        %1009 = vmatpush1.bf16.msra.mxu0 %v975
        %1010 = vmatprep.subr.bf16.mxu0 0
        %1011 = vmatpush1.bf16.msra.mxu0 %v976
        %1012 = vmatprep.subr.bf16.mxu0 0
        %1013 = vmatpush1.bf16.msra.mxu0 %v977
        %1014 = vmatprep.subr.bf16.mxu0 0
        %1015 = vmatpush1.bf16.msra.mxu0 0
        %1016 = vmatprep.subr.bf16.mxu0 0
        %1017 = vmatpush1.bf16.msra.mxu0 0
        %1018 = vmatprep.subr.bf16.mxu0 0
        %1019 = vmatpush1.bf16.msra.mxu0 0
        %1020 = vmatprep.subr.bf16.mxu0 0
        %1021 = vmatpush1.bf16.msra.mxu0 0
        %1022 = vmatprep.subr.bf16.mxu0 0
        %1023 = vmatpush1.bf16.msra.mxu0 0
        %1024 = vmatprep.subr.bf16.mxu0 0
        %1025 = vmatpush1.bf16.msra.mxu0 0
        %1026 = vmatprep.subr.bf16.mxu0 0
        %1027 = vmatpush1.bf16.msra.mxu0 0
        %1028 = vmatprep.subr.bf16.mxu0 0
        %1029 = vmatpush1.bf16.msra.mxu0 0
        %1030 = vmatprep.subr.bf16.mxu0 0
        %1031 = vmatpush1.bf16.msra.mxu0 0
        %1032 = vmatprep.subr.bf16.mxu0 0
        %1033 = vmatpush1.bf16.msra.mxu0 0
        %1034 = vmatprep.subr.bf16.mxu0 0
        %1035 = vmatpush1.bf16.msra.mxu0 0
        %1036 = vmatprep.subr.bf16.mxu0 0
        %1037 = vmatpush1.bf16.msra.mxu0 0
        %1038 = vmatprep.mubr.bf16.mxu0 0
        %1039 = vmatmul.mubr.bf16.gmra.mrb[0].mxu0 %v983
        %v1040 = vpop.f32.mrb[0].mxu0
        %v1041 = vadd.f32 0.0, %v1040
        %v1042 = vpop.f32.mrb[0].mxu0
        %v1043 = vpop.f32.mrb[0].mxu0
        %v1044 = vadd.f32 0.0, %v1043
        %v1045 = vpop.f32.mrb[0].mxu0
        %1046 = vmatprep.mubr.bf16.mxu0 0
        %1047 = vmatmul.mubr.bf16.gmra.mrb[0].mxu0 %v986
        %v1048 = vpop.f32.mrb[0].mxu0
        %v1049 = vadd.f32 0.0, %v1048
        %v1050 = vpop.f32.mrb[0].mxu0
        %v1051 = vpop.f32.mrb[0].mxu0
        %v1052 = vadd.f32 0.0, %v1051
        %v1053 = vpop.f32.mrb[0].mxu0
        %1054 = vmatprep.mubr.bf16.mxu0 0
        %1055 = vmatmul.mubr.bf16.gmra.mrb[0].mxu0 %v989
        %v1056 = vpop.f32.mrb[0].mxu0
        %v1057 = vadd.f32 0.0, %v1056
        %v1058 = vpop.f32.mrb[0].mxu0
        %v1059 = vpop.f32.mrb[0].mxu0
        %v1060 = vadd.f32 0.0, %v1059
        %v1061 = vpop.f32.mrb[0].mxu0
        %1062 = vmatprep.mubr.bf16.mxu0 0
        %1063 = vmatmul.mubr.bf16.gmra.mrb[0].mxu0 %v992
        %v1064 = vpop.f32.mrb[0].mxu0
        %v1065 = vadd.f32 0.0, %v1064
        %v1066 = vpop.f32.mrb[0].mxu0
        %v1067 = vpop.f32.mrb[0].mxu0
        %v1068 = vadd.f32 0.0, %v1067
        %v1069 = vpop.f32.mrb[0].mxu0
        %1070 = vmatprep.mubr.bf16.mxu0 0
        %1071 = vmatmul.mubr.bf16.gmra.mrb[0].mxu0 %v995
        %v1072 = vpop.f32.mrb[0].mxu0
        %v1073 = vadd.f32 0.0, %v1072
        %v1074 = vpop.f32.mrb[0].mxu0
        %v1075 = vpop.f32.mrb[0].mxu0
        %v1076 = vadd.f32 0.0, %v1075
        %v1077 = vpop.f32.mrb[0].mxu0
        %1078 = vmatprep.mubr.bf16.mxu0 0
        %1079 = vmatmul.mubr.bf16.gmra.mrb[0].mxu0 %v998
        %v1080 = vpop.f32.mrb[0].mxu0
        %v1081 = vadd.f32 0.0, %v1080
        %v1082 = vpop.f32.mrb[0].mxu0
        %v1083 = vpop.f32.mrb[0].mxu0
        %v1084 = vadd.f32 0.0, %v1083
        %v1085 = vpop.f32.mrb[0].mxu0
        %1086 = vmatprep.mubr.bf16.mxu0 0
        %1087 = vmatmul.mubr.bf16.gmra.mrb[0].mxu0 %v1001
        %v1088 = vpop.f32.mrb[0].mxu0
        %v1089 = vadd.f32 0.0, %v1088
        %v1090 = vpop.f32.mrb[0].mxu0
        %v1091 = vpop.f32.mrb[0].mxu0
        %v1092 = vadd.f32 0.0, %v1091
        %v1093 = vpop.f32.mrb[0].mxu0
        %1094 = vmatprep.mubr.bf16.mxu0 0
        %1095 = vmatmul.mubr.bf16.gmra.mrb[0].mxu0 %v1004
        %v1096 = vpop.f32.mrb[0].mxu0
        %v1097 = vadd.f32 0.0, %v1096
        %v1098 = vpop.f32.mrb[0].mxu0
        %v1099 = vpop.f32.mrb[0].mxu0
        %v1100 = vadd.f32 0.0, %v1099
        %v1101 = vpop.f32.mrb[0].mxu0
        %1102 = vdwg.mxu0
        %v1103 = vld [vmem:[%s389] sm:$0xff]
        %v1104 = vld [vmem:[%s389 + $0x8] sm:$0xff]
        %v1105 = vld [vmem:[%s389 + $0x10] sm:$0xff]
        %v1106 = vld [vmem:[%s389 + $0x18] sm:$0xff]
        %v1107 = vld [vmem:[%s389 + $0x20] sm:$0xff]
        %v1108 = vld [vmem:[%s389 + $0x28] sm:$0xff]
        %v1109 = vld [vmem:[%s389 + $0x30] sm:$0xff]
        %v1110 = vld [vmem:[%s389 + $0x38] sm:$0xff]
        %v1111 = vld [vmem:[%s389 + $0x40] sm:$0xff]
        %v1112 = vld [vmem:[%s389 + $0x48] sm:$0xff]
        %v1113 = vld [vmem:[%s389 + $0x50] sm:$0xff]
        %v1114 = vld [vmem:[%s389 + $0x58] sm:$0xff]
        %v1115 = vld [vmem:[%s389 + $0x60] sm:$0xff]
        %v1116 = vld [vmem:[%s389 + $0x68] sm:$0xff]
        %v1117 = vld [vmem:[%s389 + $0x70] sm:$0xff]
        %v1118 = vld [vmem:[%s389 + $0x78] sm:$0xff]
        %1119 = vmax.xlane.f32.xlu0 %v1041
        %v1120 = vpop.xlane.xlu0 %1119
        %1121 = vmax.xlane.f32.xlu0 %v1044
        %v1122 = vpop.xlane.xlu0 %1121
        %1123 = vmax.xlane.f32.xlu0 %v1049
        %v1124 = vpop.xlane.xlu0 %1123
        %1125 = vmax.xlane.f32.xlu0 %v1052
        %v1126 = vpop.xlane.xlu0 %1125
        %1127 = vmax.xlane.f32.xlu0 %v1057
        %v1128 = vpop.xlane.xlu0 %1127
        %1129 = vmax.xlane.f32.xlu0 %v1060
        %v1130 = vpop.xlane.xlu0 %1129
        %1131 = vmax.xlane.f32.xlu0 %v1065
        %v1132 = vpop.xlane.xlu0 %1131
        %1133 = vmax.xlane.f32.xlu0 %v1068
        %v1134 = vpop.xlane.xlu0 %1133
        %1135 = vmax.xlane.f32.xlu0 %v1073
        %v1136 = vpop.xlane.xlu0 %1135
        %1137 = vmax.xlane.f32.xlu0 %v1076
        %v1138 = vpop.xlane.xlu0 %1137
        %1139 = vmax.xlane.f32.xlu0 %v1081
        %v1140 = vpop.xlane.xlu0 %1139
        %1141 = vmax.xlane.f32.xlu0 %v1084
        %v1142 = vpop.xlane.xlu0 %1141
        %1143 = vmax.xlane.f32.xlu0 %v1089
        %v1144 = vpop.xlane.xlu0 %1143
        %1145 = vmax.xlane.f32.xlu0 %v1092
        %v1146 = vpop.xlane.xlu0 %1145
        %1147 = vmax.xlane.f32.xlu0 %v1097
        %v1148 = vpop.xlane.xlu0 %1147
        %1149 = vmax.xlane.f32.xlu0 %v1100
        %v1150 = vpop.xlane.xlu0 %1149
        %v1151 = vsub.f32 %v1041, %v1120
        %v1152 = vsub.f32 %v1044, %v1122
        %v1153 = vsub.f32 %v1049, %v1124
        %v1154 = vsub.f32 %v1052, %v1126
        %v1155 = vsub.f32 %v1057, %v1128
        %v1156 = vsub.f32 %v1060, %v1130
        %v1157 = vsub.f32 %v1065, %v1132
        %v1158 = vsub.f32 %v1068, %v1134
        %v1159 = vsub.f32 %v1073, %v1136
        %v1160 = vsub.f32 %v1076, %v1138
        %v1161 = vsub.f32 %v1081, %v1140
        %v1162 = vsub.f32 %v1084, %v1142
        %v1163 = vsub.f32 %v1089, %v1144
        %v1164 = vsub.f32 %v1092, %v1146
        %v1165 = vsub.f32 %v1097, %v1148
        %v1166 = vsub.f32 %v1100, %v1150
        %v1167 = vmul.f32 %v1151, 0.5
        %v1168 = vmul.f32 %v1152, 0.5
        %v1169 = vmul.f32 %v1153, 0.5
        %v1170 = vmul.f32 %v1154, 0.5
        %v1171 = vmul.f32 %v1155, 0.5
        %v1172 = vmul.f32 %v1156, 0.5
        %v1173 = vmul.f32 %v1157, 0.5
        %v1174 = vmul.f32 %v1158, 0.5
        %v1175 = vmul.f32 %v1159, 0.5
        %v1176 = vmul.f32 %v1160, 0.5
        %v1177 = vmul.f32 %v1161, 0.5
        %v1178 = vmul.f32 %v1162, 0.5
        %v1179 = vmul.f32 %v1163, 0.5
        %v1180 = vmul.f32 %v1164, 0.5
        %v1181 = vmul.f32 %v1165, 0.5
        %v1182 = vmul.f32 %v1166, 0.5
        %v1183 = vmul.f32 %v1167, 1.442695
        %v1184 = vpow.pop %v1183
        %v1185 = vmul.f32 %v1168, 1.442695
        %v1186 = vpow.pop %v1185
        %v1187 = vmul.f32 %v1169, 1.442695
        %v1188 = vpow.pop %v1187
        %v1189 = vmul.f32 %v1170, 1.442695
        %v1190 = vpow.pop %v1189
        %v1191 = vmul.f32 %v1171, 1.442695
        %v1192 = vpow.pop %v1191
        %v1193 = vmul.f32 %v1172, 1.442695
        %v1194 = vpow.pop %v1193
        %v1195 = vmul.f32 %v1173, 1.442695
        %v1196 = vpow.pop %v1195
        %v1197 = vmul.f32 %v1174, 1.442695
        %v1198 = vpow.pop %v1197
        %v1199 = vmul.f32 %v1175, 1.442695
        %v1200 = vpow.pop %v1199
        %v1201 = vmul.f32 %v1176, 1.442695
        %v1202 = vpow.pop %v1201
        %v1203 = vmul.f32 %v1177, 1.442695
        %v1204 = vpow.pop %v1203
        %v1205 = vmul.f32 %v1178, 1.442695
        %v1206 = vpow.pop %v1205
        %v1207 = vmul.f32 %v1179, 1.442695
        %v1208 = vpow.pop %v1207
        %v1209 = vmul.f32 %v1180, 1.442695
        %v1210 = vpow.pop %v1209
        %v1211 = vmul.f32 %v1181, 1.442695
        %v1212 = vpow.pop %v1211
        %v1213 = vmul.f32 %v1182, 1.442695
        %v1214 = vpow.pop %v1213
        %v1215 = vmul.f32 %v1184, %v1184
        %v1216 = vmul.f32 %v1186, %v1186
        %v1217 = vmul.f32 %v1188, %v1188
        %v1218 = vmul.f32 %v1190, %v1190
        %v1219 = vmul.f32 %v1192, %v1192
        %v1220 = vmul.f32 %v1194, %v1194
        %v1221 = vmul.f32 %v1196, %v1196
        %v1222 = vmul.f32 %v1198, %v1198
        %v1223 = vmul.f32 %v1200, %v1200
        %v1224 = vmul.f32 %v1202, %v1202
        %v1225 = vmul.f32 %v1204, %v1204
        %v1226 = vmul.f32 %v1206, %v1206
        %v1227 = vmul.f32 %v1208, %v1208
        %v1228 = vmul.f32 %v1210, %v1210
        %v1229 = vmul.f32 %v1212, %v1212
        %v1230 = vmul.f32 %v1214, %v1214
        %1231 = vadd.xlane.f32.xlu0 %v1215
        %v1232 = vpop.xlane.xlu0 %1231
        %1233 = vadd.xlane.f32.xlu0 %v1216
        %v1234 = vpop.xlane.xlu0 %1233
        %1235 = vadd.xlane.f32.xlu0 %v1217
        %v1236 = vpop.xlane.xlu0 %1235
        %1237 = vadd.xlane.f32.xlu0 %v1218
        %v1238 = vpop.xlane.xlu0 %1237
        %1239 = vadd.xlane.f32.xlu0 %v1219
        %v1240 = vpop.xlane.xlu0 %1239
        %1241 = vadd.xlane.f32.xlu0 %v1220
        %v1242 = vpop.xlane.xlu0 %1241
        %1243 = vadd.xlane.f32.xlu0 %v1221
        %v1244 = vpop.xlane.xlu0 %1243
        %1245 = vadd.xlane.f32.xlu0 %v1222
        %v1246 = vpop.xlane.xlu0 %1245
        %1247 = vadd.xlane.f32.xlu0 %v1223
        %v1248 = vpop.xlane.xlu0 %1247
        %1249 = vadd.xlane.f32.xlu0 %v1224
        %v1250 = vpop.xlane.xlu0 %1249
        %1251 = vadd.xlane.f32.xlu0 %v1225
        %v1252 = vpop.xlane.xlu0 %1251
        %1253 = vadd.xlane.f32.xlu0 %v1226
        %v1254 = vpop.xlane.xlu0 %1253
        %1255 = vadd.xlane.f32.xlu0 %v1227
        %v1256 = vpop.xlane.xlu0 %1255
        %1257 = vadd.xlane.f32.xlu0 %v1228
        %v1258 = vpop.xlane.xlu0 %1257
        %1259 = vadd.xlane.f32.xlu0 %v1229
        %v1260 = vpop.xlane.xlu0 %1259
        %1261 = vadd.xlane.f32.xlu0 %v1230
        %v1262 = vpop.xlane.xlu0 %1261
        %v1263 = vlog2.pop %v1232
        %v1264 = vmul.f32 %v1263, 0.6931472
        %v1265 = vlog2.pop %v1234
        %v1266 = vmul.f32 %v1265, 0.6931472
        %v1267 = vlog2.pop %v1236
        %v1268 = vmul.f32 %v1267, 0.6931472
        %v1269 = vlog2.pop %v1238
        %v1270 = vmul.f32 %v1269, 0.6931472
        %v1271 = vlog2.pop %v1240
        %v1272 = vmul.f32 %v1271, 0.6931472
        %v1273 = vlog2.pop %v1242
        %v1274 = vmul.f32 %v1273, 0.6931472
        %v1275 = vlog2.pop %v1244
        %v1276 = vmul.f32 %v1275, 0.6931472
        %v1277 = vlog2.pop %v1246
        %v1278 = vmul.f32 %v1277, 0.6931472
        %v1279 = vlog2.pop %v1248
        %v1280 = vmul.f32 %v1279, 0.6931472
        %v1281 = vlog2.pop %v1250
        %v1282 = vmul.f32 %v1281, 0.6931472
        %v1283 = vlog2.pop %v1252
        %v1284 = vmul.f32 %v1283, 0.6931472
        %v1285 = vlog2.pop %v1254
        %v1286 = vmul.f32 %v1285, 0.6931472
        %v1287 = vlog2.pop %v1256
        %v1288 = vmul.f32 %v1287, 0.6931472
        %v1289 = vlog2.pop %v1258
        %v1290 = vmul.f32 %v1289, 0.6931472
        %v1291 = vlog2.pop %v1260
        %v1292 = vmul.f32 %v1291, 0.6931472
        %v1293 = vlog2.pop %v1262
        %v1294 = vmul.f32 %v1293, 0.6931472
        %1295 = vadd.xlane.f32.xlu0 %v1184
        %v1296 = vpop.xlane.xlu0 %1295
        %1297 = vadd.xlane.f32.xlu0 %v1186
        %v1298 = vpop.xlane.xlu0 %1297
        %1299 = vadd.xlane.f32.xlu0 %v1188
        %v1300 = vpop.xlane.xlu0 %1299
        %1301 = vadd.xlane.f32.xlu0 %v1190
        %v1302 = vpop.xlane.xlu0 %1301
        %1303 = vadd.xlane.f32.xlu0 %v1192
        %v1304 = vpop.xlane.xlu0 %1303
        %1305 = vadd.xlane.f32.xlu0 %v1194
        %v1306 = vpop.xlane.xlu0 %1305
        %1307 = vadd.xlane.f32.xlu0 %v1196
        %v1308 = vpop.xlane.xlu0 %1307
        %1309 = vadd.xlane.f32.xlu0 %v1198
        %v1310 = vpop.xlane.xlu0 %1309
        %1311 = vadd.xlane.f32.xlu0 %v1200
        %v1312 = vpop.xlane.xlu0 %1311
        %1313 = vadd.xlane.f32.xlu0 %v1202
        %v1314 = vpop.xlane.xlu0 %1313
        %1315 = vadd.xlane.f32.xlu0 %v1204
        %v1316 = vpop.xlane.xlu0 %1315
        %1317 = vadd.xlane.f32.xlu0 %v1206
        %v1318 = vpop.xlane.xlu0 %1317
        %1319 = vadd.xlane.f32.xlu0 %v1208
        %v1320 = vpop.xlane.xlu0 %1319
        %1321 = vadd.xlane.f32.xlu0 %v1210
        %v1322 = vpop.xlane.xlu0 %1321
        %1323 = vadd.xlane.f32.xlu0 %v1212
        %v1324 = vpop.xlane.xlu0 %1323
        %1325 = vadd.xlane.f32.xlu0 %v1214
        %v1326 = vpop.xlane.xlu0 %1325
        %v1327 = vlog2.pop %v1296
        %v1328 = vmul.f32 %v1327, 0.6931472
        %v1329 = vlog2.pop %v1298
        %v1330 = vmul.f32 %v1329, 0.6931472
        %v1331 = vlog2.pop %v1300
        %v1332 = vmul.f32 %v1331, 0.6931472
        %v1333 = vlog2.pop %v1302
        %v1334 = vmul.f32 %v1333, 0.6931472
        %v1335 = vlog2.pop %v1304
        %v1336 = vmul.f32 %v1335, 0.6931472
        %v1337 = vlog2.pop %v1306
        %v1338 = vmul.f32 %v1337, 0.6931472
        %v1339 = vlog2.pop %v1308
        %v1340 = vmul.f32 %v1339, 0.6931472
        %v1341 = vlog2.pop %v1310
        %v1342 = vmul.f32 %v1341, 0.6931472
        %v1343 = vlog2.pop %v1312
        %v1344 = vmul.f32 %v1343, 0.6931472
        %v1345 = vlog2.pop %v1314
        %v1346 = vmul.f32 %v1345, 0.6931472
        %v1347 = vlog2.pop %v1316
        %v1348 = vmul.f32 %v1347, 0.6931472
        %v1349 = vlog2.pop %v1318
        %v1350 = vmul.f32 %v1349, 0.6931472
        %v1351 = vlog2.pop %v1320
        %v1352 = vmul.f32 %v1351, 0.6931472
        %v1353 = vlog2.pop %v1322
        %v1354 = vmul.f32 %v1353, 0.6931472
        %v1355 = vlog2.pop %v1324
        %v1356 = vmul.f32 %v1355, 0.6931472
        %v1357 = vlog2.pop %v1326
        %v1358 = vmul.f32 %v1357, 0.6931472
        %v1359 = vsub.f32 %v1151, %v1264
        %v1360 = vsub.f32 %v1152, %v1266
        %v1361 = vsub.f32 %v1153, %v1268
        %v1362 = vsub.f32 %v1154, %v1270
        %v1363 = vsub.f32 %v1155, %v1272
        %v1364 = vsub.f32 %v1156, %v1274
        %v1365 = vsub.f32 %v1157, %v1276
        %v1366 = vsub.f32 %v1158, %v1278
        %v1367 = vsub.f32 %v1159, %v1280
        %v1368 = vsub.f32 %v1160, %v1282
        %v1369 = vsub.f32 %v1161, %v1284
        %v1370 = vsub.f32 %v1162, %v1286
        %v1371 = vsub.f32 %v1163, %v1288
        %v1372 = vsub.f32 %v1164, %v1290
        %v1373 = vsub.f32 %v1165, %v1292
        %v1374 = vsub.f32 %v1166, %v1294
        %v1375 = vlaneseq
        %v1376 = vand.u32 %v1375, 127
        %1377 = vset.pattern.permute.xlu0 0
        %1378 = vperm.xlu0 %1377, %v1103
        %v1379 = vpop.permute.xlu0 %1378
        %1380 = vset.pattern.permute.xlu0 0
        %1381 = vperm.xlu0 %1380, %v1104
        %v1382 = vpop.permute.xlu0 %1381
        %1383 = vset.pattern.permute.xlu0 0
        %1384 = vperm.xlu0 %1383, %v1105
        %v1385 = vpop.permute.xlu0 %1384
        %1386 = vset.pattern.permute.xlu0 0
        %1387 = vperm.xlu0 %1386, %v1106
        %v1388 = vpop.permute.xlu0 %1387
        %1389 = vset.pattern.permute.xlu0 0
        %1390 = vperm.xlu0 %1389, %v1107
        %v1391 = vpop.permute.xlu0 %1390
        %1392 = vset.pattern.permute.xlu0 0
        %1393 = vperm.xlu0 %1392, %v1108
        %v1394 = vpop.permute.xlu0 %1393
        %1395 = vset.pattern.permute.xlu0 0
        %1396 = vperm.xlu0 %1395, %v1109
        %v1397 = vpop.permute.xlu0 %1396
        %1398 = vset.pattern.permute.xlu0 0
        %1399 = vperm.xlu0 %1398, %v1110
        %v1400 = vpop.permute.xlu0 %1399
        %1401 = vset.pattern.permute.xlu0 0
        %1402 = vperm.xlu0 %1401, %v1111
        %v1403 = vpop.permute.xlu0 %1402
        %1404 = vset.pattern.permute.xlu0 0
        %1405 = vperm.xlu0 %1404, %v1112
        %v1406 = vpop.permute.xlu0 %1405
        %1407 = vset.pattern.permute.xlu0 0
        %1408 = vperm.xlu0 %1407, %v1113
        %v1409 = vpop.permute.xlu0 %1408
        %1410 = vset.pattern.permute.xlu0 0
        %1411 = vperm.xlu0 %1410, %v1114
        %v1412 = vpop.permute.xlu0 %1411
        %1413 = vset.pattern.permute.xlu0 0
        %1414 = vperm.xlu0 %1413, %v1115
        %v1415 = vpop.permute.xlu0 %1414
        %1416 = vset.pattern.permute.xlu0 0
        %1417 = vperm.xlu0 %1416, %v1116
        %v1418 = vpop.permute.xlu0 %1417
        %1419 = vset.pattern.permute.xlu0 0
        %1420 = vperm.xlu0 %1419, %v1117
        %v1421 = vpop.permute.xlu0 %1420
        %1422 = vset.pattern.permute.xlu0 0
        %1423 = vperm.xlu0 %1422, %v1118
        %v1424 = vpop.permute.xlu0 %1423
        %vm1425 = vcmp.eq.s32.totalorder %v1376, %v1379
        %vm1426 = vcmp.eq.s32.totalorder %v1376, %v1382
        %vm1427 = vcmp.eq.s32.totalorder %v1376, %v1385
        %vm1428 = vcmp.eq.s32.totalorder %v1376, %v1388
        %vm1429 = vcmp.eq.s32.totalorder %v1376, %v1391
        %vm1430 = vcmp.eq.s32.totalorder %v1376, %v1394
        %vm1431 = vcmp.eq.s32.totalorder %v1376, %v1397
        %vm1432 = vcmp.eq.s32.totalorder %v1376, %v1400
        %vm1433 = vcmp.eq.s32.totalorder %v1376, %v1403
        %vm1434 = vcmp.eq.s32.totalorder %v1376, %v1406
        %vm1435 = vcmp.eq.s32.totalorder %v1376, %v1409
        %vm1436 = vcmp.eq.s32.totalorder %v1376, %v1412
        %vm1437 = vcmp.eq.s32.totalorder %v1376, %v1415
        %vm1438 = vcmp.eq.s32.totalorder %v1376, %v1418
        %vm1439 = vcmp.eq.s32.totalorder %v1376, %v1421
        %vm1440 = vcmp.eq.s32.totalorder %v1376, %v1424
        %v1441 = vsel %vm1425, 1, 0
        %v1442 = vsel %vm1426, 1, 0
        %v1443 = vsel %vm1427, 1, 0
        %v1444 = vsel %vm1428, 1, 0
        %v1445 = vsel %vm1429, 1, 0
        %v1446 = vsel %vm1430, 1, 0
        %v1447 = vsel %vm1431, 1, 0
        %v1448 = vsel %vm1432, 1, 0
        %v1449 = vsel %vm1433, 1, 0
        %v1450 = vsel %vm1434, 1, 0
        %v1451 = vsel %vm1435, 1, 0
        %v1452 = vsel %vm1436, 1, 0
        %v1453 = vsel %vm1437, 1, 0
        %v1454 = vsel %vm1438, 1, 0
        %v1455 = vsel %vm1439, 1, 0
        %v1456 = vsel %vm1440, 1, 0
        %v1457 = vcvt.s32.f32 %v1441
        %v1458 = vcvt.s32.f32 %v1442
        %v1459 = vcvt.s32.f32 %v1443
        %v1460 = vcvt.s32.f32 %v1444
        %v1461 = vcvt.s32.f32 %v1445
        %v1462 = vcvt.s32.f32 %v1446
        %v1463 = vcvt.s32.f32 %v1447
        %v1464 = vcvt.s32.f32 %v1448
        %v1465 = vcvt.s32.f32 %v1449
        %v1466 = vcvt.s32.f32 %v1450
        %v1467 = vcvt.s32.f32 %v1451
        %v1468 = vcvt.s32.f32 %v1452
        %v1469 = vcvt.s32.f32 %v1453
        %v1470 = vcvt.s32.f32 %v1454
        %v1471 = vcvt.s32.f32 %v1455
        %v1472 = vcvt.s32.f32 %v1456
        %v1473 = vsub.f32 0.0, %v1359
        %v1474 = vsub.f32 0.0, %v1360
        %v1475 = vsub.f32 0.0, %v1361
        %v1476 = vsub.f32 0.0, %v1362
        %v1477 = vsub.f32 0.0, %v1363
        %v1478 = vsub.f32 0.0, %v1364
        %v1479 = vsub.f32 0.0, %v1365
        %v1480 = vsub.f32 0.0, %v1366
        %v1481 = vsub.f32 0.0, %v1367
        %v1482 = vsub.f32 0.0, %v1368
        %v1483 = vsub.f32 0.0, %v1369
        %v1484 = vsub.f32 0.0, %v1370
        %v1485 = vsub.f32 0.0, %v1371
        %v1486 = vsub.f32 0.0, %v1372
        %v1487 = vsub.f32 0.0, %v1373
        %v1488 = vsub.f32 0.0, %v1374
        %v1489 = vmul.f32 %v1457, %v1473
        %v1490 = vmul.f32 %v1458, %v1474
        %v1491 = vmul.f32 %v1459, %v1475
        %v1492 = vmul.f32 %v1460, %v1476
        %v1493 = vmul.f32 %v1461, %v1477
        %v1494 = vmul.f32 %v1462, %v1478
        %v1495 = vmul.f32 %v1463, %v1479
        %v1496 = vmul.f32 %v1464, %v1480
        %v1497 = vmul.f32 %v1465, %v1481
        %v1498 = vmul.f32 %v1466, %v1482
        %v1499 = vmul.f32 %v1467, %v1483
        %v1500 = vmul.f32 %v1468, %v1484
        %v1501 = vmul.f32 %v1469, %v1485
        %v1502 = vmul.f32 %v1470, %v1486
        %v1503 = vmul.f32 %v1471, %v1487
        %v1504 = vmul.f32 %v1472, %v1488
        %v1505 = vadd.f32 %v1489, %v1490
        %v1506 = vadd.f32 %v1505, %v1491
        %v1507 = vadd.f32 %v1506, %v1492
        %v1508 = vadd.f32 %v1507, %v1493
        %v1509 = vadd.f32 %v1508, %v1494
        %v1510 = vadd.f32 %v1509, %v1495
        %v1511 = vadd.f32 %v1510, %v1496
        %v1512 = vadd.f32 %v1511, %v1497
        %v1513 = vadd.f32 %v1512, %v1498
        %v1514 = vadd.f32 %v1513, %v1499
        %v1515 = vadd.f32 %v1514, %v1500
        %v1516 = vadd.f32 %v1515, %v1501
        %v1517 = vadd.f32 %v1516, %v1502
        %v1518 = vadd.f32 %v1517, %v1503
        %v1519 = vadd.f32 %v1518, %v1504
        %v1520 = vrot.slane %v1519, 4
        %v1521 = vadd.f32 %v1519, %v1520
        %v1522 = vrot.slane %v1521, 2
        %v1523 = vadd.f32 %v1521, %v1522
        %v1524 = vrot.slane %v1523, 1
        %v1525 = vadd.f32 %v1523, %v1524
        %1526 = vmax.xlane.f32.xlu0 %v751
        %v1527 = vpop.xlane.xlu0 %1526
        %1528 = vmax.xlane.f32.xlu0 %v754
        %v1529 = vpop.xlane.xlu0 %1528
        %1530 = vmax.xlane.f32.xlu0 %v759
        %v1531 = vpop.xlane.xlu0 %1530
        %1532 = vmax.xlane.f32.xlu0 %v762
        %v1533 = vpop.xlane.xlu0 %1532
        %1534 = vmax.xlane.f32.xlu0 %v767
        %v1535 = vpop.xlane.xlu0 %1534
        %1536 = vmax.xlane.f32.xlu0 %v770
        %v1537 = vpop.xlane.xlu0 %1536
        %1538 = vmax.xlane.f32.xlu0 %v775
        %v1539 = vpop.xlane.xlu0 %1538
        %1540 = vmax.xlane.f32.xlu0 %v778
        %v1541 = vpop.xlane.xlu0 %1540
        %1542 = vmax.xlane.f32.xlu0 %v783
        %v1543 = vpop.xlane.xlu0 %1542
        %1544 = vmax.xlane.f32.xlu0 %v786
        %v1545 = vpop.xlane.xlu0 %1544
        %1546 = vmax.xlane.f32.xlu0 %v791
        %v1547 = vpop.xlane.xlu0 %1546
        %1548 = vmax.xlane.f32.xlu0 %v794
        %v1549 = vpop.xlane.xlu0 %1548
        %1550 = vmax.xlane.f32.xlu0 %v799
        %v1551 = vpop.xlane.xlu0 %1550
        %1552 = vmax.xlane.f32.xlu0 %v802
        %v1553 = vpop.xlane.xlu0 %1552
        %1554 = vmax.xlane.f32.xlu0 %v807
        %v1555 = vpop.xlane.xlu0 %1554
        %1556 = vmax.xlane.f32.xlu0 %v810
        %v1557 = vpop.xlane.xlu0 %1556
        %v1558 = vsub.f32 %v751, %v1527
        %v1559 = vsub.f32 %v754, %v1529
        %v1560 = vsub.f32 %v759, %v1531
        %v1561 = vsub.f32 %v762, %v1533
        %v1562 = vsub.f32 %v767, %v1535
        %v1563 = vsub.f32 %v770, %v1537
        %v1564 = vsub.f32 %v775, %v1539
        %v1565 = vsub.f32 %v778, %v1541
        %v1566 = vsub.f32 %v783, %v1543
        %v1567 = vsub.f32 %v786, %v1545
        %v1568 = vsub.f32 %v791, %v1547
        %v1569 = vsub.f32 %v794, %v1549
        %v1570 = vsub.f32 %v799, %v1551
        %v1571 = vsub.f32 %v802, %v1553
        %v1572 = vsub.f32 %v807, %v1555
        %v1573 = vsub.f32 %v810, %v1557
        %v1574 = vmul.f32 %v1558, 0.5
        %v1575 = vmul.f32 %v1559, 0.5
        %v1576 = vmul.f32 %v1560, 0.5
        %v1577 = vmul.f32 %v1561, 0.5
        %v1578 = vmul.f32 %v1562, 0.5
        %v1579 = vmul.f32 %v1563, 0.5
        %v1580 = vmul.f32 %v1564, 0.5
        %v1581 = vmul.f32 %v1565, 0.5
        %v1582 = vmul.f32 %v1566, 0.5
        %v1583 = vmul.f32 %v1567, 0.5
        %v1584 = vmul.f32 %v1568, 0.5
        %v1585 = vmul.f32 %v1569, 0.5
        %v1586 = vmul.f32 %v1570, 0.5
        %v1587 = vmul.f32 %v1571, 0.5
        %v1588 = vmul.f32 %v1572, 0.5
        %v1589 = vmul.f32 %v1573, 0.5
        %v1590 = vmul.f32 %v1574, 1.442695
        %v1591 = vpow.pop %v1590
        %v1592 = vmul.f32 %v1575, 1.442695
        %v1593 = vpow.pop %v1592
        %v1594 = vmul.f32 %v1576, 1.442695
        %v1595 = vpow.pop %v1594
        %v1596 = vmul.f32 %v1577, 1.442695
        %v1597 = vpow.pop %v1596
        %v1598 = vmul.f32 %v1578, 1.442695
        %v1599 = vpow.pop %v1598
        %v1600 = vmul.f32 %v1579, 1.442695
        %v1601 = vpow.pop %v1600
        %v1602 = vmul.f32 %v1580, 1.442695
        %v1603 = vpow.pop %v1602
        %v1604 = vmul.f32 %v1581, 1.442695
        %v1605 = vpow.pop %v1604
        %v1606 = vmul.f32 %v1582, 1.442695
        %v1607 = vpow.pop %v1606
        %v1608 = vmul.f32 %v1583, 1.442695
        %v1609 = vpow.pop %v1608
        %v1610 = vmul.f32 %v1584, 1.442695
        %v1611 = vpow.pop %v1610
        %v1612 = vmul.f32 %v1585, 1.442695
        %v1613 = vpow.pop %v1612
        %v1614 = vmul.f32 %v1586, 1.442695
        %v1615 = vpow.pop %v1614
        %v1616 = vmul.f32 %v1587, 1.442695
        %v1617 = vpow.pop %v1616
        %v1618 = vmul.f32 %v1588, 1.442695
        %v1619 = vpow.pop %v1618
        %v1620 = vmul.f32 %v1589, 1.442695
        %v1621 = vpow.pop %v1620
        %1622 = vadd.xlane.f32.xlu0 %v1591
        %v1623 = vpop.xlane.xlu0 %1622
        %1624 = vadd.xlane.f32.xlu0 %v1593
        %v1625 = vpop.xlane.xlu0 %1624
        %1626 = vadd.xlane.f32.xlu0 %v1595
        %v1627 = vpop.xlane.xlu0 %1626
        %1628 = vadd.xlane.f32.xlu0 %v1597
        %v1629 = vpop.xlane.xlu0 %1628
        %1630 = vadd.xlane.f32.xlu0 %v1599
        %v1631 = vpop.xlane.xlu0 %1630
        %1632 = vadd.xlane.f32.xlu0 %v1601
        %v1633 = vpop.xlane.xlu0 %1632
        %1634 = vadd.xlane.f32.xlu0 %v1603
        %v1635 = vpop.xlane.xlu0 %1634
        %1636 = vadd.xlane.f32.xlu0 %v1605
        %v1637 = vpop.xlane.xlu0 %1636
        %1638 = vadd.xlane.f32.xlu0 %v1607
        %v1639 = vpop.xlane.xlu0 %1638
        %1640 = vadd.xlane.f32.xlu0 %v1609
        %v1641 = vpop.xlane.xlu0 %1640
        %1642 = vadd.xlane.f32.xlu0 %v1611
        %v1643 = vpop.xlane.xlu0 %1642
        %1644 = vadd.xlane.f32.xlu0 %v1613
        %v1645 = vpop.xlane.xlu0 %1644
        %1646 = vadd.xlane.f32.xlu0 %v1615
        %v1647 = vpop.xlane.xlu0 %1646
        %1648 = vadd.xlane.f32.xlu0 %v1617
        %v1649 = vpop.xlane.xlu0 %1648
        %1650 = vadd.xlane.f32.xlu0 %v1619
        %v1651 = vpop.xlane.xlu0 %1650
        %1652 = vadd.xlane.f32.xlu0 %v1621
        %v1653 = vpop.xlane.xlu0 %1652
        %v1654 = vrcp.pop %v1623
        %v1655 = vmul.f32 %v1591, %v1654
        %v1656 = vrcp.pop %v1625
        %v1657 = vmul.f32 %v1593, %v1656
        %v1658 = vrcp.pop %v1627
        %v1659 = vmul.f32 %v1595, %v1658
        %v1660 = vrcp.pop %v1629
        %v1661 = vmul.f32 %v1597, %v1660
        %v1662 = vrcp.pop %v1631
        %v1663 = vmul.f32 %v1599, %v1662
        %v1664 = vrcp.pop %v1633
        %v1665 = vmul.f32 %v1601, %v1664
        %v1666 = vrcp.pop %v1635
        %v1667 = vmul.f32 %v1603, %v1666
        %v1668 = vrcp.pop %v1637
        %v1669 = vmul.f32 %v1605, %v1668
        %v1670 = vrcp.pop %v1639
        %v1671 = vmul.f32 %v1607, %v1670
        %v1672 = vrcp.pop %v1641
        %v1673 = vmul.f32 %v1609, %v1672
        %v1674 = vrcp.pop %v1643
        %v1675 = vmul.f32 %v1611, %v1674
        %v1676 = vrcp.pop %v1645
        %v1677 = vmul.f32 %v1613, %v1676
        %v1678 = vrcp.pop %v1647
        %v1679 = vmul.f32 %v1615, %v1678
        %v1680 = vrcp.pop %v1649
        %v1681 = vmul.f32 %v1617, %v1680
        %v1682 = vrcp.pop %v1651
        %v1683 = vmul.f32 %v1619, %v1682
        %v1684 = vrcp.pop %v1653
        %v1685 = vmul.f32 %v1621, %v1684
        %v1686 = vsub.f32 %v1574, %v1167
        %v1687 = vsub.f32 %v1575, %v1168
        %v1688 = vsub.f32 %v1576, %v1169
        %v1689 = vsub.f32 %v1577, %v1170
        %v1690 = vsub.f32 %v1578, %v1171
        %v1691 = vsub.f32 %v1579, %v1172
        %v1692 = vsub.f32 %v1580, %v1173
        %v1693 = vsub.f32 %v1581, %v1174
        %v1694 = vsub.f32 %v1582, %v1175
        %v1695 = vsub.f32 %v1583, %v1176
        %v1696 = vsub.f32 %v1584, %v1177
        %v1697 = vsub.f32 %v1585, %v1178
        %v1698 = vsub.f32 %v1586, %v1179
        %v1699 = vsub.f32 %v1587, %v1180
        %v1700 = vsub.f32 %v1588, %v1181
        %v1701 = vsub.f32 %v1589, %v1182
        %v1702 = vlog2.pop %v1623
        %v1703 = vmul.f32 %v1702, 0.6931472
        %v1704 = vlog2.pop %v1625
        %v1705 = vmul.f32 %v1704, 0.6931472
        %v1706 = vlog2.pop %v1627
        %v1707 = vmul.f32 %v1706, 0.6931472
        %v1708 = vlog2.pop %v1629
        %v1709 = vmul.f32 %v1708, 0.6931472
        %v1710 = vlog2.pop %v1631
        %v1711 = vmul.f32 %v1710, 0.6931472
        %v1712 = vlog2.pop %v1633
        %v1713 = vmul.f32 %v1712, 0.6931472
        %v1714 = vlog2.pop %v1635
        %v1715 = vmul.f32 %v1714, 0.6931472
        %v1716 = vlog2.pop %v1637
        %v1717 = vmul.f32 %v1716, 0.6931472
        %v1718 = vlog2.pop %v1639
        %v1719 = vmul.f32 %v1718, 0.6931472
        %v1720 = vlog2.pop %v1641
        %v1721 = vmul.f32 %v1720, 0.6931472
        %v1722 = vlog2.pop %v1643
        %v1723 = vmul.f32 %v1722, 0.6931472
        %v1724 = vlog2.pop %v1645
        %v1725 = vmul.f32 %v1724, 0.6931472
        %v1726 = vlog2.pop %v1647
        %v1727 = vmul.f32 %v1726, 0.6931472
        %v1728 = vlog2.pop %v1649
        %v1729 = vmul.f32 %v1728, 0.6931472
        %v1730 = vlog2.pop %v1651
        %v1731 = vmul.f32 %v1730, 0.6931472
        %v1732 = vlog2.pop %v1653
        %v1733 = vmul.f32 %v1732, 0.6931472
        %v1734 = vsub.f32 %v1328, %v1703
        %v1735 = vsub.f32 %v1330, %v1705
        %v1736 = vsub.f32 %v1332, %v1707
        %v1737 = vsub.f32 %v1334, %v1709
        %v1738 = vsub.f32 %v1336, %v1711
        %v1739 = vsub.f32 %v1338, %v1713
        %v1740 = vsub.f32 %v1340, %v1715
        %v1741 = vsub.f32 %v1342, %v1717
        %v1742 = vsub.f32 %v1344, %v1719
        %v1743 = vsub.f32 %v1346, %v1721
        %v1744 = vsub.f32 %v1348, %v1723
        %v1745 = vsub.f32 %v1350, %v1725
        %v1746 = vsub.f32 %v1352, %v1727
        %v1747 = vsub.f32 %v1354, %v1729
        %v1748 = vsub.f32 %v1356, %v1731
        %v1749 = vsub.f32 %v1358, %v1733
        %v1750 = vadd.f32 %v1686, %v1734
        %v1751 = vadd.f32 %v1687, %v1735
        %v1752 = vadd.f32 %v1688, %v1736
        %v1753 = vadd.f32 %v1689, %v1737
        %v1754 = vadd.f32 %v1690, %v1738
        %v1755 = vadd.f32 %v1691, %v1739
        %v1756 = vadd.f32 %v1692, %v1740
        %v1757 = vadd.f32 %v1693, %v1741
        %v1758 = vadd.f32 %v1694, %v1742
        %v1759 = vadd.f32 %v1695, %v1743
        %v1760 = vadd.f32 %v1696, %v1744
        %v1761 = vadd.f32 %v1697, %v1745
        %v1762 = vadd.f32 %v1698, %v1746
        %v1763 = vadd.f32 %v1699, %v1747
        %v1764 = vadd.f32 %v1700, %v1748
        %v1765 = vadd.f32 %v1701, %v1749
        %v1766 = vmul.f32 %v1655, %v1750
        %v1767 = vmul.f32 %v1657, %v1751
        %v1768 = vmul.f32 %v1659, %v1752
        %v1769 = vmul.f32 %v1661, %v1753
        %v1770 = vmul.f32 %v1663, %v1754
        %v1771 = vmul.f32 %v1665, %v1755
        %v1772 = vmul.f32 %v1667, %v1756
        %v1773 = vmul.f32 %v1669, %v1757
        %v1774 = vmul.f32 %v1671, %v1758
        %v1775 = vmul.f32 %v1673, %v1759
        %v1776 = vmul.f32 %v1675, %v1760
        %v1777 = vmul.f32 %v1677, %v1761
        %v1778 = vmul.f32 %v1679, %v1762
        %v1779 = vmul.f32 %v1681, %v1763
        %v1780 = vmul.f32 %v1683, %v1764
        %v1781 = vmul.f32 %v1685, %v1765
        %v1782 = vadd.f32 %v1766, %v1767
        %v1783 = vadd.f32 %v1782, %v1768
        %v1784 = vadd.f32 %v1783, %v1769
        %v1785 = vadd.f32 %v1784, %v1770
        %v1786 = vadd.f32 %v1785, %v1771
        %v1787 = vadd.f32 %v1786, %v1772
        %v1788 = vadd.f32 %v1787, %v1773
        %v1789 = vadd.f32 %v1788, %v1774
        %v1790 = vadd.f32 %v1789, %v1775
        %v1791 = vadd.f32 %v1790, %v1776
        %v1792 = vadd.f32 %v1791, %v1777
        %v1793 = vadd.f32 %v1792, %v1778
        %v1794 = vadd.f32 %v1793, %v1779
        %v1795 = vadd.f32 %v1794, %v1780
        %v1796 = vadd.f32 %v1795, %v1781
        %v1797 = vrot.slane %v1796, 4
        %v1798 = vadd.f32 %v1796, %v1797
        %v1799 = vrot.slane %v1798, 2
        %v1800 = vadd.f32 %v1798, %v1799
        %v1801 = vrot.slane %v1800, 1
        %v1802 = vadd.f32 %v1800, %v1801
        %v1803 = vld [vmem:[%s421] sm:$0x1]
        %v1804 = vadd.f32 %v1803, %v1525
        %1805 = vst [vmem:[%s421] sm:$0x1] %v1804
        %v1806 = vld [vmem:[%s427] sm:$0x1]
        %v1807 = vadd.f32 %v1806, %v1802
        %1808 = vst [vmem:[%s427] sm:$0x1] %v1807
        %s1809 = sand.u32 %s197, 1
        %s1810 = scalar_lea.sflag [#allocation4], %s1809
        %s1811 = sand.u32 %s197, 1
        %s1812 = scalar_lea.vmem [#allocation13], %s1811
        %s1813 = sand.u32 %s223, 1
        %s1814 = scalar_lea.sflag [#allocation15], %s1813
        %s1815 = sand.u32 %s223, 1
        %s1816 = scalar_lea.vmem [#allocation14], %s1815
        // Predicated region
        $region73: #{tpu_custom_call.1} parent=43 // pred_check
          %p1817 = pneg %p207
        $region74: #{tpu_custom_call.1} parent=43 // pred_check_branch
          %1819 = sbr.rel (%p1817) target = $region76
        $region75: #{tpu_custom_call.1} parent=43 // pred_region
          %s1821 = ssub.s32 16, 16
          %1822 = vsyncadd %s1810, %s1821
          %s1823 = smul.addr %s37, 16
          %s1824 = scalar_lea.hbm %s6, %s1823
          %s1826 = sshll.u32 %s1812, 4
          %s1827 = int_to_ptr.vmem [resolvable:$true] %s1826
          %1829 = dma.vmem_to_hbm [thread:$0]  %s1827, 16, %s1824, %s1810
        $region76: #{tpu_custom_call.1} parent=43 // pred_fallthru
          _
        // Predicated region
        $region77: #{tpu_custom_call.1} parent=43 // pred_check
          %p1830 = pneg %p233
        $region78: #{tpu_custom_call.1} parent=43 // pred_check_branch
          %1832 = sbr.rel (%p1830) target = $region80
        $region79: #{tpu_custom_call.1} parent=43 // pred_region
          %s1834 = ssub.s32 16, 16
          %1835 = vsyncadd %s1814, %s1834
          %s1836 = smul.addr %s37, 16
          %s1837 = scalar_lea.hbm %s7, %s1836
          %s1839 = sshll.u32 %s1816, 4
          %s1840 = int_to_ptr.vmem [resolvable:$true] %s1839
          %1842 = dma.vmem_to_hbm [thread:$0]  %s1840, 16, %s1837, %s1814
        $region80: #{tpu_custom_call.1} parent=43 // pred_fallthru
          _
      $region44: #{tpu_custom_call.1} parent=5 // pred_fallthru
        _
      %p1843 = scmp.le.s32.totalorder 2, %s28
      // Predicated region
      $region81: #{tpu_custom_call.1} parent=5 // pred_check
        %p1844 = pneg %p1843
      $region82: #{tpu_custom_call.1} parent=5 // pred_check_branch
        %1846 = sbr.rel (%p1844) target = $region84
      $region83: #{tpu_custom_call.1} parent=5 // pred_region
        %s1847 = ssub.s32 %s28, 2
        // Predicated region
        $region85: #{tpu_custom_call.1} parent=83 // pred_check
          %p1848 = pneg %p213
        $region86: #{tpu_custom_call.1} parent=83 // pred_check_branch
          %1850 = sbr.rel (%p1848) target = $region88
        $region87: #{tpu_custom_call.1} parent=83 // pred_region
          %s1851 = sand.u32 %s198, 1
          %s1852 = scalar_lea.sflag [#allocation4], %s1851
          %s1853 = sand.u32 %s198, 1
          %s1854 = scalar_lea.vmem [#allocation13], %s1853
          %1855 = dma.done %s1852, 16
        $region88: #{tpu_custom_call.1} parent=83 // pred_fallthru
          _
        // Predicated region
        $region89: #{tpu_custom_call.1} parent=83 // pred_check
          %p1856 = pneg %p239
        $region90: #{tpu_custom_call.1} parent=83 // pred_check_branch
          %1858 = sbr.rel (%p1856) target = $region92
        $region91: #{tpu_custom_call.1} parent=83 // pred_region
          %s1859 = sand.u32 %s224, 1
          %s1860 = scalar_lea.sflag [#allocation15], %s1859
          %s1861 = sand.u32 %s224, 1
          %s1862 = scalar_lea.vmem [#allocation14], %s1861
          %1863 = dma.done %s1860, 16
        $region92: #{tpu_custom_call.1} parent=83 // pred_fallthru
          _
      $region84: #{tpu_custom_call.1} parent=5 // pred_fallthru
        _
    $region6: #{tpu_custom_call.1} parent=1 // loop_footer
      %s32 = sadd.s32 1, %s28
    $region7: #{tpu_custom_call.1} parent=1 // loop_footer_branch
      %27 = sbr.rel target = $region3
    $region8: #{tpu_custom_call.1} parent=1 // loop_exit
      _
    %1864 = vsyncpa [#allocation3], 1
    %s1865 = scalar_lea.sflag [#allocation3], 1
    %1866 = vsyncpa %s1865, 1
    %1867 = vsyncpa [#allocation6], 1
    %1868 = vsyncpa [#allocation9], 1
    %1869 = vsyncpa [#allocation12], 1
    %s1870 = scalar_lea.sflag [#allocation12], 1
    %1871 = vsyncpa %s1870, 1
    %1872 = vsyncpa [#allocation4], 1
    %s1873 = scalar_lea.sflag [#allocation4], 1
    %1874 = vsyncpa %s1873, 1
    %1875 = vsyncpa [#allocation15], 1
    %s1876 = scalar_lea.sflag [#allocation15], 1
    %1877 = vsyncpa %s1876, 1

</llo_original>
